<compile_context>
chip_gen: v7x
topology: tpu7x:2x2x1
jax: 0.10.0
libtpu: 0.0.40
codegen_flags: <defaults>
</compile_context>

<pallas_src>
import functools

import numpy as np
import jax
import jax.numpy as jnp
from jax.experimental import pallas as pl
from jax.experimental.pallas import tpu as pltpu

TN = 128          # output-channel tile (every layer width here pads to 1 block)
BN_EPS = 1e-3     # BatchNorm2d(c, 0.001)


def _round_up(x, m):
    return (x + m - 1) // m * m


def _tile_m(m):
    """Row tile: big enough to amortize per-step overhead, and >=2 grid blocks
    along M when M allows it (keeps both v7x TensorCores busy)."""
    m8 = _round_up(m, 8)
    for tm in (512, 256, 128):
        if m8 >= 2 * tm:
            return tm
    return m8


# ----------------------------------------------------------------------------
# Pallas kernels: bf16 matmul -> folded-BN affine -> PReLU [-> + res -> ReLU]
# ----------------------------------------------------------------------------
def _epilogue(acc, p):
    scale, shift, alpha = p[0:1, :], p[1:2, :], p[2:3, :]
    y = acc * scale + shift
    return jnp.where(y >= 0.0, y, alpha * y)


def _mm_bn_act_kernel(x_ref, w_ref, p_ref, o_ref):
    acc = jnp.dot(x_ref[...], w_ref[...], preferred_element_type=jnp.float32)
    o_ref[...] = _epilogue(acc, p_ref[...])


def _mm_bn_act_res_kernel(x_ref, w_ref, p_ref, r_ref, o_ref):
    acc = jnp.dot(x_ref[...], w_ref[...], preferred_element_type=jnp.float32)
    o_ref[...] = jnp.maximum(r_ref[...] + _epilogue(acc, p_ref[...]), 0.0)


def matmul_bn_act(x, w, scale, shift, alpha, residual=None):
    """y = prelu((x @ w) * scale + shift, alpha); with residual given the
    result is relu(residual + y).  x:[M,K]  w:[K,N]  scale/shift/alpha:[N]."""
    M, K = x.shape
    N = w.shape[1]
    Kp, Np = _round_up(K, 128), _round_up(N, TN)
    tm = _tile_m(M)
    Mp = _round_up(M, tm)

    xp = jnp.pad(x, ((0, Mp - M), (0, Kp - K))).astype(jnp.bfloat16)
    wp = jnp.pad(w, ((0, Kp - K), (0, Np - N))).astype(jnp.bfloat16)
    params = jnp.zeros((8, Np), jnp.float32)
    params = params.at[0, :N].set(scale)
    params = params.at[1, :N].set(shift)
    params = params.at[2, :N].set(alpha)

    grid = (Mp // tm, Np // TN)
    x_spec = pl.BlockSpec((tm, Kp), lambda i, j: (i, 0))
    w_spec = pl.BlockSpec((Kp, TN), lambda i, j: (0, j))
    p_spec = pl.BlockSpec((8, TN), lambda i, j: (0, j))
    o_spec = pl.BlockSpec((tm, TN), lambda i, j: (i, j))
    cparams = pltpu.CompilerParams(
        dimension_semantics=("parallel", "parallel"))

    if residual is None:
        out = pl.pallas_call(
            _mm_bn_act_kernel,
            out_shape=jax.ShapeDtypeStruct((Mp, Np), jnp.float32),
            grid_spec=pltpu.PrefetchScalarGridSpec(
                num_scalar_prefetch=0, grid=grid,
                in_specs=[x_spec, w_spec, p_spec], out_specs=o_spec),
            compiler_params=cparams,
        )(xp, wp, params)
    else:
        rp = jnp.pad(residual, ((0, Mp - M), (0, Np - N))).astype(jnp.float32)
        r_spec = pl.BlockSpec((tm, TN), lambda i, j: (i, j))
        out = pl.pallas_call(
            _mm_bn_act_res_kernel,
            out_shape=jax.ShapeDtypeStruct((Mp, Np), jnp.float32),
            grid_spec=pltpu.PrefetchScalarGridSpec(
                num_scalar_prefetch=0, grid=grid,
                in_specs=[x_spec, w_spec, p_spec, r_spec], out_specs=o_spec),
            compiler_params=cparams,
        )(xp, wp, params, rp)
    return out[:M, :N]


# ----------------------------------------------------------------------------
# Conv / pooling glue (NHWC, im2col + Pallas matmul)
# ----------------------------------------------------------------------------
def im2col_nhwc(x, kh, kw, stride, padding, dilation=1):
    N, H, W, C = x.shape
    ph, pw = padding
    xp = jnp.pad(x, ((0, 0), (ph, ph), (pw, pw), (0, 0)))
    Hp, Wp = H + 2 * ph, W + 2 * pw
    Ho = (Hp - dilation * (kh - 1) - 1) // stride + 1
    Wo = (Wp - dilation * (kw - 1) - 1) // stride + 1
    cols = []
    for i in range(kh):
        for j in range(kw):
            hi, wj = i * dilation, j * dilation
            cols.append(xp[:, hi: hi + stride * (Ho - 1) + 1: stride,
                           wj: wj + stride * (Wo - 1) + 1: stride, :])
    col = jnp.concatenate(cols, axis=-1)           # [N, Ho, Wo, kh*kw*C]
    return col.reshape(N * Ho * Wo, kh * kw * C), Ho, Wo


def conv2d(x, w, *, bias=None, stride=1, padding=(0, 0), dilation=1,
           scale=None, shift=None, alpha=None, residual=None):
    """PyTorch-semantics Conv2d in NHWC; epilogue = (*scale + shift), PReLU(alpha),
    optionally fused residual relu(residual + .)."""
    Cout, Cin, kh, kw = w.shape
    N = x.shape[0]
    if kh == 1 and kw == 1 and dilation == 1 and padding == (0, 0):
        if stride != 1:
            x = x[:, ::stride, ::stride, :]
        Ho, Wo = x.shape[1], x.shape[2]
        col = x.reshape(N * Ho * Wo, Cin)
        w2 = w.reshape(Cout, Cin).T
    else:
        col, Ho, Wo = im2col_nhwc(x, kh, kw, stride, padding, dilation)
        w2 = jnp.transpose(w, (2, 3, 1, 0)).reshape(kh * kw * Cin, Cout)
    if scale is None:
        scale = jnp.ones((Cout,), jnp.float32)
    if shift is None:
        shift = bias if bias is not None else jnp.zeros((Cout,), jnp.float32)
    if alpha is None:
        alpha = jnp.ones((Cout,), jnp.float32)     # identity activation
    res = residual.reshape(N * Ho * Wo, Cout) if residual is not None else None
    out = matmul_bn_act(col, w2, scale, shift, alpha, residual=res)
    return out.reshape(N, Ho, Wo, Cout)


def _convT3x3_weight_matrix(w):
    """w: [Cin, Cout, 3, 3] -> [4*Cin, 4*Cout] subpixel matrix.
    Rows: tap order (x[i,j], x[i,j+1], x[i+1,j], x[i+1,j+1]);
    cols: subpixel order ((a,b) in row-major) x Cout."""
    Cin, Cout = w.shape[0], w.shape[1]
    z = jnp.zeros((Cin, Cout), w.dtype)

    def W(u, v):
        return w[:, :, u, v]

    blocks = [
        [W(1, 1), W(1, 2), W(2, 1), W(2, 2)],   # tap x[i, j]
        [z,       W(1, 0), z,       W(2, 0)],   # tap x[i, j+1]
        [z,       z,       W(0, 1), W(0, 2)],   # tap x[i+1, j]
        [z,       z,       z,       W(0, 0)],   # tap x[i+1, j+1]
    ]
    rows = [jnp.concatenate(b, axis=1) for b in blocks]
    return jnp.concatenate(rows, axis=0)


def _pixel_shuffle2(out, N, H, W, Cout):
    out = out.reshape(N, H, W, 2, 2, Cout).transpose(0, 1, 3, 2, 4, 5)
    return out.reshape(N, 2 * H, 2 * W, Cout)


def conv_transpose3x3_s2(x, w, *, scale, shift, alpha):
    """ConvTranspose2d(k=3, stride=2, padding=1, output_padding=1), NHWC,
    subpixel decomposition: one matmul to 4*Cout columns + pixel shuffle."""
    N, H, W, Cin = x.shape
    Cout = w.shape[1]
    xp = jnp.pad(x, ((0, 0), (0, 1), (0, 1), (0, 0)))
    taps = [xp[:, :H, :W, :], xp[:, :H, 1:W + 1, :],
            xp[:, 1:H + 1, :W, :], xp[:, 1:H + 1, 1:W + 1, :]]
    col = jnp.concatenate(taps, axis=-1).reshape(N * H * W, 4 * Cin)
    wm = _convT3x3_weight_matrix(w)
    out = matmul_bn_act(col, wm, jnp.tile(scale, 4), jnp.tile(shift, 4),
                        jnp.tile(alpha, 4))
    return _pixel_shuffle2(out, N, H, W, Cout)


def conv_transpose2x2_s2(x, w, bias):
    """ConvTranspose2d(k=2, stride=2), NHWC: pure subpixel 1x1 matmul."""
    N, H, W, Cin = x.shape
    Cout = w.shape[1]
    wm = jnp.transpose(w, (0, 2, 3, 1)).reshape(Cin, 4 * Cout)
    col = x.reshape(N * H * W, Cin)
    ones = jnp.ones((4 * Cout,), jnp.float32)
    shift = (jnp.tile(bias, 4) if bias is not None
             else jnp.zeros((4 * Cout,), jnp.float32))
    out = matmul_bn_act(col, wm, ones, shift, ones)
    return _pixel_shuffle2(out, N, H, W, Cout)


def maxpool2x2(x, return_indices=False):
    N, H, W, C = x.shape
    Ho, Wo = H // 2, W // 2
    xr = x.reshape(N, Ho, 2, Wo, 2, C).transpose(0, 1, 3, 2, 4, 5)
    xr = xr.reshape(N, Ho, Wo, 4, C)
    vals = jnp.max(xr, axis=3)
    if not return_indices:
        return vals
    # store the local 2x2 sub-index k = 2*dh + dw (consumed only by our unpool)
    arg = jnp.argmax(xr, axis=3).astype(jnp.int32)
    return vals, arg


def max_unpool2x2(x, k):
    """Place each value at its recorded 2x2 position; zeros elsewhere.
    Pure 4-way select (VPU) instead of an XLA scatter."""
    N, H, W, C = x.shape
    sub = jnp.stack([jnp.where(k == i, x, 0.0) for i in range(4)], axis=3)
    sub = sub.reshape(N, H, W, 2, 2, C).transpose(0, 1, 3, 2, 4, 5)
    return sub.reshape(N, 2 * H, 2 * W, C)


def bn_fold(bn, bias=None):
    scale = bn["gamma"] / jnp.sqrt(bn["var"] + BN_EPS)
    b = bias if bias is not None else jnp.zeros_like(bn["mean"])
    shift = bn["beta"] + (b - bn["mean"]) * scale
    return scale, shift


# ----------------------------------------------------------------------------
# Deterministic parameter construction
# ----------------------------------------------------------------------------
class ParamGen:
    def __init__(self, seed=0):
        self._key = jax.random.PRNGKey(seed)

    def normal(self, shape, scale=1.0):
        self._key, sub = jax.random.split(self._key)
        return (scale * jax.random.normal(sub, shape)).astype(jnp.float32)


def make_conv(pg, cout, cin, kh, kw, bias):
    fan_in = cin * kh * kw
    p = {"w": pg.normal((cout, cin, kh, kw), scale=1.0 / np.sqrt(fan_in))}
    p["b"] = pg.normal((cout,), scale=0.05) if bias else None
    return p


def make_convT(pg, cin, cout, kh, kw, bias):
    fan_in = cin * kh * kw
    p = {"w": pg.normal((cin, cout, kh, kw), scale=1.0 / np.sqrt(fan_in))}
    p["b"] = pg.normal((cout,), scale=0.05) if bias else None
    return p


def make_bn(pg, c):
    return {
        "gamma": 1.0 + pg.normal((c,), 0.1),
        "beta": pg.normal((c,), 0.1),
        "mean": pg.normal((c,), 0.1),
        "var": 1.0 + jnp.abs(pg.normal((c,), 0.1)),
    }


def make_act(c, use_relu):
    # nn.PReLU(c) initialises alpha = 0.25; ReLU == alpha 0.
    return (jnp.zeros((c,), jnp.float32) if use_relu
            else jnp.full((c,), 0.25, jnp.float32))


def make_initial(pg, in_ch, branch_ch):
    return {"conv": make_conv(pg, branch_ch, in_ch, 3, 3, bias=True),
            "bn": make_bn(pg, branch_ch),
            "prelu": jnp.full((branch_ch,), 0.25, jnp.float32)}


def make_bottleneck(pg, in_ch, out_ch, *, downsampling=False, upsampling=False,
                    dilated=False, dilation_rate=None, separable=False,
                    use_relu=False):
    internal = out_ch // 4
    cfg = dict(in_ch=in_ch, out_ch=out_ch, internal=internal,
               downsampling=downsampling, upsampling=upsampling,
               dilated=dilated, dilation_rate=dilation_rate,
               separable=separable, use_relu=use_relu)
    input_stride = 2 if downsampling else 1
    prm = {}
    # block1x1_1: Conv2d(in, internal, k=input_stride, stride=input_stride, bias=False)
    prm["conv1"] = make_conv(pg, internal, in_ch, input_stride, input_stride, bias=False)
    prm["bn1"] = make_bn(pg, internal)
    prm["act1"] = make_act(internal, use_relu)
    if downsampling:
        prm["mid"] = make_conv(pg, internal, internal, 3, 3, bias=True)
    elif upsampling:
        prm["pre_conv"] = make_conv(pg, out_ch, in_ch, 1, 1, bias=False)
        prm["pre_bn"] = make_bn(pg, out_ch)
        prm["mid"] = make_convT(pg, internal, internal, 3, 3, bias=True)
    elif dilated:
        prm["mid"] = make_conv(pg, internal, internal, 3, 3, bias=True)
    elif separable:
        prm["mid_a"] = make_conv(pg, internal, internal, 5, 1, bias=False)
        prm["mid_b"] = make_conv(pg, internal, internal, 1, 5, bias=True)
    else:
        prm["mid"] = make_conv(pg, internal, internal, 3, 3, bias=True)
    prm["bn_mid"] = make_bn(pg, internal)
    prm["act_mid"] = make_act(internal, use_relu)
    prm["conv2"] = make_conv(pg, out_ch, internal, 1, 1, bias=False)
    prm["bn2"] = make_bn(pg, out_ch)
    prm["act2"] = make_act(out_ch, use_relu)
    return cfg, prm


# ----------------------------------------------------------------------------
# Forward passes (NHWC)
# ----------------------------------------------------------------------------
def initial_forward(prm, x):
    s, sh = bn_fold(prm["bn"], bias=prm["conv"]["b"])
    branch = conv2d(x, prm["conv"]["w"], stride=2, padding=(1, 1),
                    scale=s, shift=sh, alpha=prm["prelu"])
    pooled = maxpool2x2(x)
    return jnp.concatenate([branch, pooled], axis=-1)


def bottleneck_forward(cfg, prm, x, pooling_indices=None):
    in_ch, out_ch = cfg["in_ch"], cfg["out_ch"]
    indices = None

    # ---- main (skip) branch ----
    if cfg["downsampling"]:
        main, indices = maxpool2x2(x, return_indices=True)
        if out_ch != in_ch:
            main = jnp.pad(main, ((0, 0), (0, 0), (0, 0), (0, out_ch - in_ch)))
    elif cfg["upsampling"]:
        s, sh = bn_fold(prm["pre_bn"])
        pre = conv2d(x, prm["pre_conv"]["w"], scale=s, shift=sh)
        main = max_unpool2x2(pre, pooling_indices)
    else:
        main = x

    # ---- other branch: projection ----
    s1, sh1 = bn_fold(prm["bn1"])
    stride1 = 2 if cfg["downsampling"] else 1
    other = conv2d(x, prm["conv1"]["w"], stride=stride1,
                   scale=s1, shift=sh1, alpha=prm["act1"])

    # ---- other branch: middle conv ----
    if cfg["upsampling"]:
        sm, shm = bn_fold(prm["bn_mid"], bias=prm["mid"]["b"])
        other = conv_transpose3x3_s2(other, prm["mid"]["w"],
                                     scale=sm, shift=shm, alpha=prm["act_mid"])
    elif cfg["separable"]:
        other = conv2d(other, prm["mid_a"]["w"], padding=(2, 0))
        sm, shm = bn_fold(prm["bn_mid"], bias=prm["mid_b"]["b"])
        other = conv2d(other, prm["mid_b"]["w"], padding=(0, 2),
                       scale=sm, shift=shm, alpha=prm["act_mid"])
    elif cfg["dilated"]:
        d = cfg["dilation_rate"]
        sm, shm = bn_fold(prm["bn_mid"], bias=prm["mid"]["b"])
        other = conv2d(other, prm["mid"]["w"], padding=(d, d), dilation=d,
                       scale=sm, shift=shm, alpha=prm["act_mid"])
    else:  # regular 3x3 (also the downsampling middle conv)
        sm, shm = bn_fold(prm["bn_mid"], bias=prm["mid"]["b"])
        other = conv2d(other, prm["mid"]["w"], padding=(1, 1),
                       scale=sm, shift=shm, alpha=prm["act_mid"])

    # ---- expansion conv with fused residual: relu(main + prelu(bn(conv(.)))) ----
    s2, sh2 = bn_fold(prm["bn2"])
    y = conv2d(other, prm["conv2"]["w"], scale=s2, shift=sh2,
               alpha=prm["act2"], residual=main)

    if cfg["downsampling"]:
        return y, indices
    return y


def build_enet(pg, n_classes, in_bands, hidden):
    h0, h1, h2, h3 = hidden
    enc_static, enc_params = [], []

    def add_enc(kind, cfg, prm):
        enc_static.append((kind, cfg))
        enc_params.append(prm)

    add_enc("initial", None, make_initial(pg, in_bands, h0))
    cfg, prm = make_bottleneck(pg, h1, h2, downsampling=True)
    add_enc("bottleneck", cfg, prm)
    for _ in range(4):
        cfg, prm = make_bottleneck(pg, h2, h2)
        add_enc("bottleneck", cfg, prm)
    cfg, prm = make_bottleneck(pg, h2, h3, downsampling=True)
    add_enc("bottleneck", cfg, prm)
    stage = [dict(), dict(dilated=True, dilation_rate=2), dict(separable=True),
             dict(dilated=True, dilation_rate=4), dict(),
             dict(dilated=True, dilation_rate=8), dict(separable=True),
             dict(dilated=True, dilation_rate=16)]
    for _ in range(2):
        for kw in stage:
            cfg, prm = make_bottleneck(pg, h3, h3, **kw)
            add_enc("bottleneck", cfg, prm)

    dec_static, dec_params = [], []

    def add_dec(kind, cfg, prm):
        dec_static.append((kind, cfg))
        dec_params.append(prm)

    cfg, prm = make_bottleneck(pg, h3, h2, upsampling=True, use_relu=True)
    add_dec("bottleneck", cfg, prm)
    for _ in range(2):
        cfg, prm = make_bottleneck(pg, h2, h2, use_relu=True)
        add_dec("bottleneck", cfg, prm)
    cfg, prm = make_bottleneck(pg, h2, h1, upsampling=True, use_relu=True)
    add_dec("bottleneck", cfg, prm)
    cfg, prm = make_bottleneck(pg, h1, h1, use_relu=True)
    add_dec("bottleneck", cfg, prm)
    add_dec("deconv", None, make_convT(pg, h1, n_classes, 2, 2, bias=True))

    return (enc_static, dec_static), (enc_params, dec_params)


def enet_forward(static, params, x_nchw):
    enc_static, dec_static = static
    enc_params, dec_params = params
    y = jnp.transpose(x_nchw, (0, 2, 3, 1))   # NCHW -> NHWC once
    pooling_stack = []
    # encoder
    for (kind, cfg), prm in zip(enc_static, enc_params):
        if kind == "initial":
            y = initial_forward(prm, y)
        elif cfg["downsampling"]:
            y, idx = bottleneck_forward(cfg, prm, y)
            pooling_stack.append(idx)
        else:
            y = bottleneck_forward(cfg, prm, y)
    # decoder
    for (kind, cfg), prm in zip(dec_static, dec_params):
        if kind == "deconv":
            y = conv_transpose2x2_s2(y, prm["w"], prm["b"])
        elif cfg["upsampling"]:
            y = bottleneck_forward(cfg, prm, y,
                                   pooling_indices=pooling_stack.pop())
        else:
            y = bottleneck_forward(cfg, prm, y)
    return jnp.transpose(y, (0, 3, 1, 2))     # NHWC -> NCHW once


if __name__ == "__main__":
    n_classes = 4
    hidden = (13, 16, 32, 64)        # h0 + bands must equal h1 (ENet constraint)
    H = W = 32
    bands = hidden[1] - hidden[0]    # = 3
    batch = 2

    pg = ParamGen(seed=0)
    static, params = build_enet(pg, n_classes, bands, hidden)

    x = jax.random.normal(jax.random.PRNGKey(0), (batch, bands, H, W),
                          dtype=jnp.float32)

    fwd = jax.jit(functools.partial(enet_forward, static))
    y = jax.block_until_ready(fwd(params, x))

    assert y.shape == (batch, n_classes, H, W), y.shape
    assert bool(jnp.all(jnp.isfinite(y)))
    print("KERNEL_OK")
</pallas_src>

<mosaic_0001>
module attributes {stable_mosaic.version = 11 : i64} {
  func.func @_mm_bn_act_kernel(%arg0: i32, %arg1: i32, %arg2: memref<256x128xbf16, #tpu.memory_space<vmem>>, %arg3: memref<128x128xbf16, #tpu.memory_space<vmem>>, %arg4: memref<8x128xf32, #tpu.memory_space<vmem>>, %arg5: memref<256x128xf32, #tpu.memory_space<vmem>>) attributes {dimension_semantics = [#tpu.dimension_semantics<parallel>, #tpu.dimension_semantics<parallel>], iteration_bounds = array<i64: 2, 1>, scalar_prefetch = 0 : i64, scratch_operands = 0 : i64, tpu.core_type = #tpu.core_type<tc>, window_params = [{transform_indices = @transform_0, window_bounds = array<i64: 256, 128>}, {transform_indices = @transform_1, window_bounds = array<i64: 128, 128>}, {transform_indices = @transform_2, window_bounds = array<i64: 8, 128>}, {transform_indices = @transform_3, window_bounds = array<i64: 256, 128>}]} {
    %c0 = arith.constant 0 : index
    %c0_0 = arith.constant 0 : index
    %0 = vector.load %arg2[%c0, %c0_0] : memref<256x128xbf16, #tpu.memory_space<vmem>>, vector<256x128xbf16>
    %c0_1 = arith.constant 0 : index
    %c0_2 = arith.constant 0 : index
    %1 = vector.load %arg3[%c0_1, %c0_2] : memref<128x128xbf16, #tpu.memory_space<vmem>>, vector<128x128xbf16>
    %cst = arith.constant dense<0.000000e+00> : vector<256x128xf32>
    %2 = tpu.matmul %0, %1, %cst {dimension_numbers = #tpu.dot_dimension_numbers<[1], [0], [0], [1], [0, 0, 1, 1], [], []>} : vector<256x128xbf16>, vector<128x128xbf16>, vector<256x128xf32> -> vector<256x128xf32>
    %c0_3 = arith.constant 0 : index
    %c0_4 = arith.constant 0 : index
    %3 = vector.load %arg4[%c0_3, %c0_4] : memref<8x128xf32, #tpu.memory_space<vmem>>, vector<8x128xf32>
    %4 = vector.extract_strided_slice %3 {offsets = [0, 0], sizes = [1, 128], strides = [1, 1]} : vector<8x128xf32> to vector<1x128xf32>
    %5 = vector.extract_strided_slice %3 {offsets = [1, 0], sizes = [1, 128], strides = [1, 1]} : vector<8x128xf32> to vector<1x128xf32>
    %6 = vector.extract_strided_slice %3 {offsets = [2, 0], sizes = [1, 128], strides = [1, 1]} : vector<8x128xf32> to vector<1x128xf32>
    %7 = vector.broadcast %4 : vector<1x128xf32> to vector<256x128xf32>
    %8 = arith.mulf %2, %7 : vector<256x128xf32>
    %9 = vector.broadcast %5 : vector<1x128xf32> to vector<256x128xf32>
    %10 = arith.addf %8, %9 : vector<256x128xf32>
    %cst_5 = arith.constant 0.000000e+00 : f32
    %11 = vector.broadcast %cst_5 : f32 to vector<256x128xf32>
    %12 = arith.cmpf oge, %10, %11 : vector<256x128xf32>
    %13 = vector.broadcast %6 : vector<1x128xf32> to vector<256x128xf32>
    %14 = arith.mulf %13, %10 : vector<256x128xf32>
    %15 = arith.select %12, %10, %14 : vector<256x128xi1>, vector<256x128xf32>
    %c0_6 = arith.constant 0 : index
    %c0_7 = arith.constant 0 : index
    %16 = vector.load %arg5[%c0_6, %c0_7] : memref<256x128xf32, #tpu.memory_space<vmem>>, vector<256x128xf32>
    tpu.vector_store %arg5[%c0_6, %c0_7], %15 {strides = array<i32>} : memref<256x128xf32, #tpu.memory_space<vmem>>, vector<256x128xf32>,
    return
  }
  func.func @transform_0(%arg0: i32, %arg1: i32) -> (i32, i32) {
    %c0_i32 = arith.constant 0 : i32
    %c0_i32_0 = arith.constant 0 : i32
    return %arg0, %c0_i32 : i32, i32
  }
  func.func @transform_1(%arg0: i32, %arg1: i32) -> (i32, i32) {
    %c0_i32 = arith.constant 0 : i32
    %c0_i32_0 = arith.constant 0 : i32
    return %c0_i32, %arg1 : i32, i32
  }
  func.func @transform_2(%arg0: i32, %arg1: i32) -> (i32, i32) {
    %c0_i32 = arith.constant 0 : i32
    %c0_i32_0 = arith.constant 0 : i32
    return %c0_i32, %arg1 : i32, i32
  }
  func.func @transform_3(%arg0: i32, %arg1: i32) -> (i32, i32) {
    %c0_i32 = arith.constant 0 : i32
    return %arg0, %arg1 : i32, i32
  }
}

module attributes {stable_mosaic.version = 11 : i64} {
  func.func @_mm_bn_act_kernel(%arg0: i32, %arg1: i32, %arg2: memref<128x128xbf16, #tpu.memory_space<vmem>>, %arg3: memref<128x128xbf16, #tpu.memory_space<vmem>>, %arg4: memref<8x128xf32, #tpu.memory_space<vmem>>, %arg5: memref<128x128xf32, #tpu.memory_space<vmem>>) attributes {dimension_semantics = [#tpu.dimension_semantics<parallel>, #tpu.dimension_semantics<parallel>], iteration_bounds = array<i64: 1, 1>, scalar_prefetch = 0 : i64, scratch_operands = 0 : i64, tpu.core_type = #tpu.core_type<tc>, window_params = [{transform_indices = @transform_0, window_bounds = array<i64: 128, 128>}, {transform_indices = @transform_1, window_bounds = array<i64: 128, 128>}, {transform_indices = @transform_2, window_bounds = array<i64: 8, 128>}, {transform_indices = @transform_3, window_bounds = array<i64: 128, 128>}]} {
    %c0 = arith.constant 0 : index
    %c0_0 = arith.constant 0 : index
    %0 = vector.load %arg2[%c0, %c0_0] : memref<128x128xbf16, #tpu.memory_space<vmem>>, vector<128x128xbf16>
    %c0_1 = arith.constant 0 : index
    %c0_2 = arith.constant 0 : index
    %1 = vector.load %arg3[%c0_1, %c0_2] : memref<128x128xbf16, #tpu.memory_space<vmem>>, vector<128x128xbf16>
    %cst = arith.constant dense<0.000000e+00> : vector<128x128xf32>
    %2 = tpu.matmul %0, %1, %cst {dimension_numbers = #tpu.dot_dimension_numbers<[1], [0], [0], [1], [0, 0, 1, 1], [], []>} : vector<128x128xbf16>, vector<128x128xbf16>, vector<128x128xf32> -> vector<128x128xf32>
    %c0_3 = arith.constant 0 : index
    %c0_4 = arith.constant 0 : index
    %3 = vector.load %arg4[%c0_3, %c0_4] : memref<8x128xf32, #tpu.memory_space<vmem>>, vector<8x128xf32>
    %4 = vector.extract_strided_slice %3 {offsets = [0, 0], sizes = [1, 128], strides = [1, 1]} : vector<8x128xf32> to vector<1x128xf32>
    %5 = vector.extract_strided_slice %3 {offsets = [1, 0], sizes = [1, 128], strides = [1, 1]} : vector<8x128xf32> to vector<1x128xf32>
    %6 = vector.extract_strided_slice %3 {offsets = [2, 0], sizes = [1, 128], strides = [1, 1]} : vector<8x128xf32> to vector<1x128xf32>
    %7 = vector.broadcast %4 : vector<1x128xf32> to vector<128x128xf32>
    %8 = arith.mulf %2, %7 : vector<128x128xf32>
    %9 = vector.broadcast %5 : vector<1x128xf32> to vector<128x128xf32>
    %10 = arith.addf %8, %9 : vector<128x128xf32>
    %cst_5 = arith.constant 0.000000e+00 : f32
    %11 = vector.broadcast %cst_5 : f32 to vector<128x128xf32>
    %12 = arith.cmpf oge, %10, %11 : vector<128x128xf32>
    %13 = vector.broadcast %6 : vector<1x128xf32> to vector<128x128xf32>
    %14 = arith.mulf %13, %10 : vector<128x128xf32>
    %15 = arith.select %12, %10, %14 : vector<128x128xi1>, vector<128x128xf32>
    %c0_6 = arith.constant 0 : index
    %c0_7 = arith.constant 0 : index
    %16 = vector.load %arg5[%c0_6, %c0_7] : memref<128x128xf32, #tpu.memory_space<vmem>>, vector<128x128xf32>
    tpu.vector_store %arg5[%c0_6, %c0_7], %15 {strides = array<i32>} : memref<128x128xf32, #tpu.memory_space<vmem>>, vector<128x128xf32>,
    return
  }
  func.func @transform_0(%arg0: i32, %arg1: i32) -> (i32, i32) {
    %c0_i32 = arith.constant 0 : i32
    %c0_i32_0 = arith.constant 0 : i32
    return %arg0, %c0_i32 : i32, i32
  }
  func.func @transform_1(%arg0: i32, %arg1: i32) -> (i32, i32) {
    %c0_i32 = arith.constant 0 : i32
    %c0_i32_0 = arith.constant 0 : i32
    return %c0_i32, %arg1 : i32, i32
  }
  func.func @transform_2(%arg0: i32, %arg1: i32) -> (i32, i32) {
    %c0_i32 = arith.constant 0 : i32
    %c0_i32_0 = arith.constant 0 : i32
    return %c0_i32, %arg1 : i32, i32
  }
  func.func @transform_3(%arg0: i32, %arg1: i32) -> (i32, i32) {
    %c0_i32 = arith.constant 0 : i32
    return %arg0, %arg1 : i32, i32
  }
}

module attributes {stable_mosaic.version = 11 : i64} {
  func.func @_mm_bn_act_res_kernel(%arg0: i32, %arg1: i32, %arg2: memref<128x128xbf16, #tpu.memory_space<vmem>>, %arg3: memref<128x128xbf16, #tpu.memory_space<vmem>>, %arg4: memref<8x128xf32, #tpu.memory_space<vmem>>, %arg5: memref<128x128xf32, #tpu.memory_space<vmem>>, %arg6: memref<128x128xf32, #tpu.memory_space<vmem>>) attributes {dimension_semantics = [#tpu.dimension_semantics<parallel>, #tpu.dimension_semantics<parallel>], iteration_bounds = array<i64: 1, 1>, scalar_prefetch = 0 : i64, scratch_operands = 0 : i64, tpu.core_type = #tpu.core_type<tc>, window_params = [{transform_indices = @transform_0, window_bounds = array<i64: 128, 128>}, {transform_indices = @transform_1, window_bounds = array<i64: 128, 128>}, {transform_indices = @transform_2, window_bounds = array<i64: 8, 128>}, {transform_indices = @transform_3, window_bounds = array<i64: 128, 128>}, {transform_indices = @transform_4, window_bounds = array<i64: 128, 128>}]} {
    %c0 = arith.constant 0 : index
    %c0_0 = arith.constant 0 : index
    %0 = vector.load %arg2[%c0, %c0_0] : memref<128x128xbf16, #tpu.memory_space<vmem>>, vector<128x128xbf16>
    %c0_1 = arith.constant 0 : index
    %c0_2 = arith.constant 0 : index
    %1 = vector.load %arg3[%c0_1, %c0_2] : memref<128x128xbf16, #tpu.memory_space<vmem>>, vector<128x128xbf16>
    %cst = arith.constant dense<0.000000e+00> : vector<128x128xf32>
    %2 = tpu.matmul %0, %1, %cst {dimension_numbers = #tpu.dot_dimension_numbers<[1], [0], [0], [1], [0, 0, 1, 1], [], []>} : vector<128x128xbf16>, vector<128x128xbf16>, vector<128x128xf32> -> vector<128x128xf32>
    %c0_3 = arith.constant 0 : index
    %c0_4 = arith.constant 0 : index
    %3 = vector.load %arg5[%c0_3, %c0_4] : memref<128x128xf32, #tpu.memory_space<vmem>>, vector<128x128xf32>
    %c0_5 = arith.constant 0 : index
    %c0_6 = arith.constant 0 : index
    %4 = vector.load %arg4[%c0_5, %c0_6] : memref<8x128xf32, #tpu.memory_space<vmem>>, vector<8x128xf32>
    %5 = vector.extract_strided_slice %4 {offsets = [0, 0], sizes = [1, 128], strides = [1, 1]} : vector<8x128xf32> to vector<1x128xf32>
    %6 = vector.extract_strided_slice %4 {offsets = [1, 0], sizes = [1, 128], strides = [1, 1]} : vector<8x128xf32> to vector<1x128xf32>
    %7 = vector.extract_strided_slice %4 {offsets = [2, 0], sizes = [1, 128], strides = [1, 1]} : vector<8x128xf32> to vector<1x128xf32>
    %8 = vector.broadcast %5 : vector<1x128xf32> to vector<128x128xf32>
    %9 = arith.mulf %2, %8 : vector<128x128xf32>
    %10 = vector.broadcast %6 : vector<1x128xf32> to vector<128x128xf32>
    %11 = arith.addf %9, %10 : vector<128x128xf32>
    %cst_7 = arith.constant 0.000000e+00 : f32
    %12 = vector.broadcast %cst_7 : f32 to vector<128x128xf32>
    %13 = arith.cmpf oge, %11, %12 : vector<128x128xf32>
    %14 = vector.broadcast %7 : vector<1x128xf32> to vector<128x128xf32>
    %15 = arith.mulf %14, %11 : vector<128x128xf32>
    %16 = arith.select %13, %11, %15 : vector<128x128xi1>, vector<128x128xf32>
    %17 = arith.addf %3, %16 : vector<128x128xf32>
    %cst_8 = arith.constant 0.000000e+00 : f32
    %18 = vector.broadcast %cst_8 : f32 to vector<128x128xf32>
    %19 = arith.maximumf %17, %18 : vector<128x128xf32>
    %c0_9 = arith.constant 0 : index
    %c0_10 = arith.constant 0 : index
    %20 = vector.load %arg6[%c0_9, %c0_10] : memref<128x128xf32, #tpu.memory_space<vmem>>, vector<128x128xf32>
    tpu.vector_store %arg6[%c0_9, %c0_10], %19 {strides = array<i32>} : memref<128x128xf32, #tpu.memory_space<vmem>>, vector<128x128xf32>,
    return
  }
  func.func @transform_0(%arg0: i32, %arg1: i32) -> (i32, i32) {
    %c0_i32 = arith.constant 0 : i32
    %c0_i32_0 = arith.constant 0 : i32
    return %arg0, %c0_i32 : i32, i32
  }
  func.func @transform_1(%arg0: i32, %arg1: i32) -> (i32, i32) {
    %c0_i32 = arith.constant 0 : i32
    %c0_i32_0 = arith.constant 0 : i32
    return %c0_i32, %arg1 : i32, i32
  }
  func.func @transform_2(%arg0: i32, %arg1: i32) -> (i32, i32) {
    %c0_i32 = arith.constant 0 : i32
    %c0_i32_0 = arith.constant 0 : i32
    return %c0_i32, %arg1 : i32, i32
  }
  func.func @transform_3(%arg0: i32, %arg1: i32) -> (i32, i32) {
    %c0_i32 = arith.constant 0 : i32
    return %arg0, %arg1 : i32, i32
  }
  func.func @transform_4(%arg0: i32, %arg1: i32) -> (i32, i32) {
    %c0_i32 = arith.constant 0 : i32
    return %arg0, %arg1 : i32, i32
  }
}

module attributes {stable_mosaic.version = 11 : i64} {
  func.func @_mm_bn_act_kernel(%arg0: i32, %arg1: i32, %arg2: memref<32x128xbf16, #tpu.memory_space<vmem>>, %arg3: memref<128x128xbf16, #tpu.memory_space<vmem>>, %arg4: memref<8x128xf32, #tpu.memory_space<vmem>>, %arg5: memref<32x128xf32, #tpu.memory_space<vmem>>) attributes {dimension_semantics = [#tpu.dimension_semantics<parallel>, #tpu.dimension_semantics<parallel>], iteration_bounds = array<i64: 1, 1>, scalar_prefetch = 0 : i64, scratch_operands = 0 : i64, tpu.core_type = #tpu.core_type<tc>, window_params = [{transform_indices = @transform_0, window_bounds = array<i64: 32, 128>}, {transform_indices = @transform_1, window_bounds = array<i64: 128, 128>}, {transform_indices = @transform_2, window_bounds = array<i64: 8, 128>}, {transform_indices = @transform_3, window_bounds = array<i64: 32, 128>}]} {
    %c0 = arith.constant 0 : index
    %c0_0 = arith.constant 0 : index
    %0 = vector.load %arg2[%c0, %c0_0] : memref<32x128xbf16, #tpu.memory_space<vmem>>, vector<32x128xbf16>
    %c0_1 = arith.constant 0 : index
    %c0_2 = arith.constant 0 : index
    %1 = vector.load %arg3[%c0_1, %c0_2] : memref<128x128xbf16, #tpu.memory_space<vmem>>, vector<128x128xbf16>
    %cst = arith.constant dense<0.000000e+00> : vector<32x128xf32>
    %2 = tpu.matmul %0, %1, %cst {dimension_numbers = #tpu.dot_dimension_numbers<[1], [0], [0], [1], [0, 0, 1, 1], [], []>} : vector<32x128xbf16>, vector<128x128xbf16>, vector<32x128xf32> -> vector<32x128xf32>
    %c0_3 = arith.constant 0 : index
    %c0_4 = arith.constant 0 : index
    %3 = vector.load %arg4[%c0_3, %c0_4] : memref<8x128xf32, #tpu.memory_space<vmem>>, vector<8x128xf32>
    %4 = vector.extract_strided_slice %3 {offsets = [0, 0], sizes = [1, 128], strides = [1, 1]} : vector<8x128xf32> to vector<1x128xf32>
    %5 = vector.extract_strided_slice %3 {offsets = [1, 0], sizes = [1, 128], strides = [1, 1]} : vector<8x128xf32> to vector<1x128xf32>
    %6 = vector.extract_strided_slice %3 {offsets = [2, 0], sizes = [1, 128], strides = [1, 1]} : vector<8x128xf32> to vector<1x128xf32>
    %7 = vector.broadcast %4 : vector<1x128xf32> to vector<32x128xf32>
    %8 = arith.mulf %2, %7 : vector<32x128xf32>
    %9 = vector.broadcast %5 : vector<1x128xf32> to vector<32x128xf32>
    %10 = arith.addf %8, %9 : vector<32x128xf32>
    %cst_5 = arith.constant 0.000000e+00 : f32
    %11 = vector.broadcast %cst_5 : f32 to vector<32x128xf32>
    %12 = arith.cmpf oge, %10, %11 : vector<32x128xf32>
    %13 = vector.broadcast %6 : vector<1x128xf32> to vector<32x128xf32>
    %14 = arith.mulf %13, %10 : vector<32x128xf32>
    %15 = arith.select %12, %10, %14 : vector<32x128xi1>, vector<32x128xf32>
    %c0_6 = arith.constant 0 : index
    %c0_7 = arith.constant 0 : index
    %16 = vector.load %arg5[%c0_6, %c0_7] : memref<32x128xf32, #tpu.memory_space<vmem>>, vector<32x128xf32>
    tpu.vector_store %arg5[%c0_6, %c0_7], %15 {strides = array<i32>} : memref<32x128xf32, #tpu.memory_space<vmem>>, vector<32x128xf32>,
    return
  }
  func.func @transform_0(%arg0: i32, %arg1: i32) -> (i32, i32) {
    %c0_i32 = arith.constant 0 : i32
    %c0_i32_0 = arith.constant 0 : i32
    return %arg0, %c0_i32 : i32, i32
  }
  func.func @transform_1(%arg0: i32, %arg1: i32) -> (i32, i32) {
    %c0_i32 = arith.constant 0 : i32
    %c0_i32_0 = arith.constant 0 : i32
    return %c0_i32, %arg1 : i32, i32
  }
  func.func @transform_2(%arg0: i32, %arg1: i32) -> (i32, i32) {
    %c0_i32 = arith.constant 0 : i32
    %c0_i32_0 = arith.constant 0 : i32
    return %c0_i32, %arg1 : i32, i32
  }
  func.func @transform_3(%arg0: i32, %arg1: i32) -> (i32, i32) {
    %c0_i32 = arith.constant 0 : i32
    return %arg0, %arg1 : i32, i32
  }
}

module attributes {stable_mosaic.version = 11 : i64} {
  func.func @_mm_bn_act_kernel(%arg0: i32, %arg1: i32, %arg2: memref<32x256xbf16, #tpu.memory_space<vmem>>, %arg3: memref<256x128xbf16, #tpu.memory_space<vmem>>, %arg4: memref<8x128xf32, #tpu.memory_space<vmem>>, %arg5: memref<32x128xf32, #tpu.memory_space<vmem>>) attributes {dimension_semantics = [#tpu.dimension_semantics<parallel>, #tpu.dimension_semantics<parallel>], iteration_bounds = array<i64: 1, 1>, scalar_prefetch = 0 : i64, scratch_operands = 0 : i64, tpu.core_type = #tpu.core_type<tc>, window_params = [{transform_indices = @transform_0, window_bounds = array<i64: 32, 256>}, {transform_indices = @transform_1, window_bounds = array<i64: 256, 128>}, {transform_indices = @transform_2, window_bounds = array<i64: 8, 128>}, {transform_indices = @transform_3, window_bounds = array<i64: 32, 128>}]} {
    %c0 = arith.constant 0 : index
    %c0_0 = arith.constant 0 : index
    %0 = vector.load %arg2[%c0, %c0_0] : memref<32x256xbf16, #tpu.memory_space<vmem>>, vector<32x256xbf16>
    %c0_1 = arith.constant 0 : index
    %c0_2 = arith.constant 0 : index
    %1 = vector.load %arg3[%c0_1, %c0_2] : memref<256x128xbf16, #tpu.memory_space<vmem>>, vector<256x128xbf16>
    %cst = arith.constant dense<0.000000e+00> : vector<32x128xf32>
    %2 = tpu.matmul %0, %1, %cst {dimension_numbers = #tpu.dot_dimension_numbers<[1], [0], [0], [1], [0, 0, 1, 1], [], []>} : vector<32x256xbf16>, vector<256x128xbf16>, vector<32x128xf32> -> vector<32x128xf32>
    %c0_3 = arith.constant 0 : index
    %c0_4 = arith.constant 0 : index
    %3 = vector.load %arg4[%c0_3, %c0_4] : memref<8x128xf32, #tpu.memory_space<vmem>>, vector<8x128xf32>
    %4 = vector.extract_strided_slice %3 {offsets = [0, 0], sizes = [1, 128], strides = [1, 1]} : vector<8x128xf32> to vector<1x128xf32>
    %5 = vector.extract_strided_slice %3 {offsets = [1, 0], sizes = [1, 128], strides = [1, 1]} : vector<8x128xf32> to vector<1x128xf32>
    %6 = vector.extract_strided_slice %3 {offsets = [2, 0], sizes = [1, 128], strides = [1, 1]} : vector<8x128xf32> to vector<1x128xf32>
    %7 = vector.broadcast %4 : vector<1x128xf32> to vector<32x128xf32>
    %8 = arith.mulf %2, %7 : vector<32x128xf32>
    %9 = vector.broadcast %5 : vector<1x128xf32> to vector<32x128xf32>
    %10 = arith.addf %8, %9 : vector<32x128xf32>
    %cst_5 = arith.constant 0.000000e+00 : f32
    %11 = vector.broadcast %cst_5 : f32 to vector<32x128xf32>
    %12 = arith.cmpf oge, %10, %11 : vector<32x128xf32>
    %13 = vector.broadcast %6 : vector<1x128xf32> to vector<32x128xf32>
    %14 = arith.mulf %13, %10 : vector<32x128xf32>
    %15 = arith.select %12, %10, %14 : vector<32x128xi1>, vector<32x128xf32>
    %c0_6 = arith.constant 0 : index
    %c0_7 = arith.constant 0 : index
    %16 = vector.load %arg5[%c0_6, %c0_7] : memref<32x128xf32, #tpu.memory_space<vmem>>, vector<32x128xf32>
    tpu.vector_store %arg5[%c0_6, %c0_7], %15 {strides = array<i32>} : memref<32x128xf32, #tpu.memory_space<vmem>>, vector<32x128xf32>,
    return
  }
  func.func @transform_0(%arg0: i32, %arg1: i32) -> (i32, i32) {
    %c0_i32 = arith.constant 0 : i32
    %c0_i32_0 = arith.constant 0 : i32
    return %arg0, %c0_i32 : i32, i32
  }
  func.func @transform_1(%arg0: i32, %arg1: i32) -> (i32, i32) {
    %c0_i32 = arith.constant 0 : i32
    %c0_i32_0 = arith.constant 0 : i32
    return %c0_i32, %arg1 : i32, i32
  }
  func.func @transform_2(%arg0: i32, %arg1: i32) -> (i32, i32) {
    %c0_i32 = arith.constant 0 : i32
    %c0_i32_0 = arith.constant 0 : i32
    return %c0_i32, %arg1 : i32, i32
  }
  func.func @transform_3(%arg0: i32, %arg1: i32) -> (i32, i32) {
    %c0_i32 = arith.constant 0 : i32
    return %arg0, %arg1 : i32, i32
  }
}

module attributes {stable_mosaic.version = 11 : i64} {
  func.func @_mm_bn_act_res_kernel(%arg0: i32, %arg1: i32, %arg2: memref<32x128xbf16, #tpu.memory_space<vmem>>, %arg3: memref<128x128xbf16, #tpu.memory_space<vmem>>, %arg4: memref<8x128xf32, #tpu.memory_space<vmem>>, %arg5: memref<32x128xf32, #tpu.memory_space<vmem>>, %arg6: memref<32x128xf32, #tpu.memory_space<vmem>>) attributes {dimension_semantics = [#tpu.dimension_semantics<parallel>, #tpu.dimension_semantics<parallel>], iteration_bounds = array<i64: 1, 1>, scalar_prefetch = 0 : i64, scratch_operands = 0 : i64, tpu.core_type = #tpu.core_type<tc>, window_params = [{transform_indices = @transform_0, window_bounds = array<i64: 32, 128>}, {transform_indices = @transform_1, window_bounds = array<i64: 128, 128>}, {transform_indices = @transform_2, window_bounds = array<i64: 8, 128>}, {transform_indices = @transform_3, window_bounds = array<i64: 32, 128>}, {transform_indices = @transform_4, window_bounds = array<i64: 32, 128>}]} {
    %c0 = arith.constant 0 : index
    %c0_0 = arith.constant 0 : index
    %0 = vector.load %arg2[%c0, %c0_0] : memref<32x128xbf16, #tpu.memory_space<vmem>>, vector<32x128xbf16>
    %c0_1 = arith.constant 0 : index
    %c0_2 = arith.constant 0 : index
    %1 = vector.load %arg3[%c0_1, %c0_2] : memref<128x128xbf16, #tpu.memory_space<vmem>>, vector<128x128xbf16>
    %cst = arith.constant dense<0.000000e+00> : vector<32x128xf32>
    %2 = tpu.matmul %0, %1, %cst {dimension_numbers = #tpu.dot_dimension_numbers<[1], [0], [0], [1], [0, 0, 1, 1], [], []>} : vector<32x128xbf16>, vector<128x128xbf16>, vector<32x128xf32> -> vector<32x128xf32>
    %c0_3 = arith.constant 0 : index
    %c0_4 = arith.constant 0 : index
    %3 = vector.load %arg5[%c0_3, %c0_4] : memref<32x128xf32, #tpu.memory_space<vmem>>, vector<32x128xf32>
    %c0_5 = arith.constant 0 : index
    %c0_6 = arith.constant 0 : index
    %4 = vector.load %arg4[%c0_5, %c0_6] : memref<8x128xf32, #tpu.memory_space<vmem>>, vector<8x128xf32>
    %5 = vector.extract_strided_slice %4 {offsets = [0, 0], sizes = [1, 128], strides = [1, 1]} : vector<8x128xf32> to vector<1x128xf32>
    %6 = vector.extract_strided_slice %4 {offsets = [1, 0], sizes = [1, 128], strides = [1, 1]} : vector<8x128xf32> to vector<1x128xf32>
    %7 = vector.extract_strided_slice %4 {offsets = [2, 0], sizes = [1, 128], strides = [1, 1]} : vector<8x128xf32> to vector<1x128xf32>
    %8 = vector.broadcast %5 : vector<1x128xf32> to vector<32x128xf32>
    %9 = arith.mulf %2, %8 : vector<32x128xf32>
    %10 = vector.broadcast %6 : vector<1x128xf32> to vector<32x128xf32>
    %11 = arith.addf %9, %10 : vector<32x128xf32>
    %cst_7 = arith.constant 0.000000e+00 : f32
    %12 = vector.broadcast %cst_7 : f32 to vector<32x128xf32>
    %13 = arith.cmpf oge, %11, %12 : vector<32x128xf32>
    %14 = vector.broadcast %7 : vector<1x128xf32> to vector<32x128xf32>
    %15 = arith.mulf %14, %11 : vector<32x128xf32>
    %16 = arith.select %13, %11, %15 : vector<32x128xi1>, vector<32x128xf32>
    %17 = arith.addf %3, %16 : vector<32x128xf32>
    %cst_8 = arith.constant 0.000000e+00 : f32
    %18 = vector.broadcast %cst_8 : f32 to vector<32x128xf32>
    %19 = arith.maximumf %17, %18 : vector<32x128xf32>
    %c0_9 = arith.constant 0 : index
    %c0_10 = arith.constant 0 : index
    %20 = vector.load %arg6[%c0_9, %c0_10] : memref<32x128xf32, #tpu.memory_space<vmem>>, vector<32x128xf32>
    tpu.vector_store %arg6[%c0_9, %c0_10], %19 {strides = array<i32>} : memref<32x128xf32, #tpu.memory_space<vmem>>, vector<32x128xf32>,
    return
  }
  func.func @transform_0(%arg0: i32, %arg1: i32) -> (i32, i32) {
    %c0_i32 = arith.constant 0 : i32
    %c0_i32_0 = arith.constant 0 : i32
    return %arg0, %c0_i32 : i32, i32
  }
  func.func @transform_1(%arg0: i32, %arg1: i32) -> (i32, i32) {
    %c0_i32 = arith.constant 0 : i32
    %c0_i32_0 = arith.constant 0 : i32
    return %c0_i32, %arg1 : i32, i32
  }
  func.func @transform_2(%arg0: i32, %arg1: i32) -> (i32, i32) {
    %c0_i32 = arith.constant 0 : i32
    %c0_i32_0 = arith.constant 0 : i32
    return %c0_i32, %arg1 : i32, i32
  }
  func.func @transform_3(%arg0: i32, %arg1: i32) -> (i32, i32) {
    %c0_i32 = arith.constant 0 : i32
    return %arg0, %arg1 : i32, i32
  }
  func.func @transform_4(%arg0: i32, %arg1: i32) -> (i32, i32) {
    %c0_i32 = arith.constant 0 : i32
    return %arg0, %arg1 : i32, i32
  }
}

module attributes {stable_mosaic.version = 11 : i64} {
  func.func @_mm_bn_act_res_kernel(%arg0: i32, %arg1: i32, %arg2: memref<256x128xbf16, #tpu.memory_space<vmem>>, %arg3: memref<128x128xbf16, #tpu.memory_space<vmem>>, %arg4: memref<8x128xf32, #tpu.memory_space<vmem>>, %arg5: memref<256x128xf32, #tpu.memory_space<vmem>>, %arg6: memref<256x128xf32, #tpu.memory_space<vmem>>) attributes {dimension_semantics = [#tpu.dimension_semantics<parallel>, #tpu.dimension_semantics<parallel>], iteration_bounds = array<i64: 2, 1>, scalar_prefetch = 0 : i64, scratch_operands = 0 : i64, tpu.core_type = #tpu.core_type<tc>, window_params = [{transform_indices = @transform_0, window_bounds = array<i64: 256, 128>}, {transform_indices = @transform_1, window_bounds = array<i64: 128, 128>}, {transform_indices = @transform_2, window_bounds = array<i64: 8, 128>}, {transform_indices = @transform_3, window_bounds = array<i64: 256, 128>}, {transform_indices = @transform_4, window_bounds = array<i64: 256, 128>}]} {
    %c0 = arith.constant 0 : index
    %c0_0 = arith.constant 0 : index
    %0 = vector.load %arg2[%c0, %c0_0] : memref<256x128xbf16, #tpu.memory_space<vmem>>, vector<256x128xbf16>
    %c0_1 = arith.constant 0 : index
    %c0_2 = arith.constant 0 : index
    %1 = vector.load %arg3[%c0_1, %c0_2] : memref<128x128xbf16, #tpu.memory_space<vmem>>, vector<128x128xbf16>
    %cst = arith.constant dense<0.000000e+00> : vector<256x128xf32>
    %2 = tpu.matmul %0, %1, %cst {dimension_numbers = #tpu.dot_dimension_numbers<[1], [0], [0], [1], [0, 0, 1, 1], [], []>} : vector<256x128xbf16>, vector<128x128xbf16>, vector<256x128xf32> -> vector<256x128xf32>
    %c0_3 = arith.constant 0 : index
    %c0_4 = arith.constant 0 : index
    %3 = vector.load %arg5[%c0_3, %c0_4] : memref<256x128xf32, #tpu.memory_space<vmem>>, vector<256x128xf32>
    %c0_5 = arith.constant 0 : index
    %c0_6 = arith.constant 0 : index
    %4 = vector.load %arg4[%c0_5, %c0_6] : memref<8x128xf32, #tpu.memory_space<vmem>>, vector<8x128xf32>
    %5 = vector.extract_strided_slice %4 {offsets = [0, 0], sizes = [1, 128], strides = [1, 1]} : vector<8x128xf32> to vector<1x128xf32>
    %6 = vector.extract_strided_slice %4 {offsets = [1, 0], sizes = [1, 128], strides = [1, 1]} : vector<8x128xf32> to vector<1x128xf32>
    %7 = vector.extract_strided_slice %4 {offsets = [2, 0], sizes = [1, 128], strides = [1, 1]} : vector<8x128xf32> to vector<1x128xf32>
    %8 = vector.broadcast %5 : vector<1x128xf32> to vector<256x128xf32>
    %9 = arith.mulf %2, %8 : vector<256x128xf32>
    %10 = vector.broadcast %6 : vector<1x128xf32> to vector<256x128xf32>
    %11 = arith.addf %9, %10 : vector<256x128xf32>
    %cst_7 = arith.constant 0.000000e+00 : f32
    %12 = vector.broadcast %cst_7 : f32 to vector<256x128xf32>
    %13 = arith.cmpf oge, %11, %12 : vector<256x128xf32>
    %14 = vector.broadcast %7 : vector<1x128xf32> to vector<256x128xf32>
    %15 = arith.mulf %14, %11 : vector<256x128xf32>
    %16 = arith.select %13, %11, %15 : vector<256x128xi1>, vector<256x128xf32>
    %17 = arith.addf %3, %16 : vector<256x128xf32>
    %cst_8 = arith.constant 0.000000e+00 : f32
    %18 = vector.broadcast %cst_8 : f32 to vector<256x128xf32>
    %19 = arith.maximumf %17, %18 : vector<256x128xf32>
    %c0_9 = arith.constant 0 : index
    %c0_10 = arith.constant 0 : index
    %20 = vector.load %arg6[%c0_9, %c0_10] : memref<256x128xf32, #tpu.memory_space<vmem>>, vector<256x128xf32>
    tpu.vector_store %arg6[%c0_9, %c0_10], %19 {strides = array<i32>} : memref<256x128xf32, #tpu.memory_space<vmem>>, vector<256x128xf32>,
    return
  }
  func.func @transform_0(%arg0: i32, %arg1: i32) -> (i32, i32) {
    %c0_i32 = arith.constant 0 : i32
    %c0_i32_0 = arith.constant 0 : i32
    return %arg0, %c0_i32 : i32, i32
  }
  func.func @transform_1(%arg0: i32, %arg1: i32) -> (i32, i32) {
    %c0_i32 = arith.constant 0 : i32
    %c0_i32_0 = arith.constant 0 : i32
    return %c0_i32, %arg1 : i32, i32
  }
  func.func @transform_2(%arg0: i32, %arg1: i32) -> (i32, i32) {
    %c0_i32 = arith.constant 0 : i32
    %c0_i32_0 = arith.constant 0 : i32
    return %c0_i32, %arg1 : i32, i32
  }
  func.func @transform_3(%arg0: i32, %arg1: i32) -> (i32, i32) {
    %c0_i32 = arith.constant 0 : i32
    return %arg0, %arg1 : i32, i32
  }
  func.func @transform_4(%arg0: i32, %arg1: i32) -> (i32, i32) {
    %c0_i32 = arith.constant 0 : i32
    return %arg0, %arg1 : i32, i32
  }
}

</mosaic_0001>

<llo_original>
// kernel: enet_forward.89
$region0: #{enet_forward.89}
  #allocation0 [shape = 'u32[]', space=smem, size = 0x4, offset = 0x4, fixed_abs, tag = 'smem constant byte address 0x4 - core index']
  #allocation1 [shape = 'u32[144,128]{1,0:T(1,128)}', space=vmem, size = 0x12000, scoped, tag = 'internal scratch']
  %s0 = inlined_call_operand.vmem [shape: bf16[512,128], index: 0, kind: input, shape index: {}]
  %s1 = inlined_call_operand.vmem [shape: bf16[128,128], index: 1, kind: input, shape index: {}]
  %s2 = inlined_call_operand.vmem [shape: f32[8,128], index: 2, kind: input, shape index: {}]
  %s3 = inlined_call_operand.vmem [shape: f32[512,128], index: 3, kind: output, shape index: {}]
  %s4 = sld [smem:[#allocation0]]
  $region45: #{enet_forward.89} parent=0
    _
  %s6 = ssub.s32 1, %s4
  %s7 = scalar_select 0, %s6, %s4
  loop: start=0, step=1, limit=4
  $region2: #{enet_forward.89} parent=0 // loop_pre_header
    _
  $region3: #{enet_forward.89} parent=0 // loop_header
    %s9 = sphi 0, %s13
    %p10 = scmp.ge.s32.totalorder %s9, 4
    %s16 = sphi 0, %s28
    %s17 = sphi 0, %s24
    %s18 = sphi 0, %s16
    %s19 = sphi 0, %s17
    %s20 = sphi 0, %s18
    %s21 = sphi 0, %s19
    %s31 = sphi 0, %s33
    %s34 = sphi 0, %s31
    %s35 = sphi 0, %s34
    %s51 = sphi 0, %s35
    %s57 = sphi 0, %s59
    %s60 = sphi 0, %s57
    %s61 = sphi 0, %s60
    %s77 = sphi 0, %s61
    %s83 = sphi 0, %s85
    %s86 = sphi 0, %s83
    %s87 = sphi 0, %s86
    %s103 = sphi 0, %s87
    %s111 = sphi 0, %s113
    %s114 = sphi 0, %s111
    %s115 = sphi 0, %s114
    %s131 = sphi 0, %s115
  $region4: #{enet_forward.89} parent=0 // loop_header_branch
    %12 = sbr.rel (%p10) target = $region8
  $region5: #{enet_forward.89} parent=0 // loop_body
    %s14 = ssub.s32 %s9, 1
    %s15 = ssub.s32 %s9, 2
    %s22 = sadd.s32 1, %s17
    %p23 = scmp.ge.s32.totalorder %s22, 1
    %s24 = scalar_select %p23, 0, %s22
    %s25 = sadd.s32 1, %s16
    %s26 = scalar_select %p23, %s25, %s16
    %p27 = scmp.ge.s32.totalorder %s26, 2
    %s28 = scalar_select %p27, 0, %s26
    %s29 = ssub.s32 %s16, %s28
    %p30 = scmp.eq.s32.totalorder %s29, 0
    %s32 = sadd.s32 %s31, 1
    %s33 = scalar_select %p30, %s31, %s32
    %p36 = pneg %p30
    %p37 = scmp.eq.s32.totalorder %s9, 1
    %p38 = por %p36, %p37
    %p39 = scmp.ne.s32.totalorder %s31, %s34
    %p40 = scmp.eq.s32.totalorder %s9, 0
    %p41 = por %p39, %p40
    %p42 = scmp.ne.s32.totalorder %s31, %s34
    %p43 = scmp.eq.s32.totalorder %s14, 1
    %p44 = por %p42, %p43
    %p45 = scmp.ne.s32.totalorder %s34, %s35
    %p46 = scmp.eq.s32.totalorder %s14, 0
    %p47 = por %p45, %p46
    %p48 = scmp.ne.s32.totalorder %s34, %s35
    %p49 = scmp.eq.s32.totalorder %s15, 1
    %p50 = por %p48, %p49
    %p52 = scmp.ne.s32.totalorder %s35, %s51
    %p53 = scmp.eq.s32.totalorder %s15, 0
    %p54 = por %p52, %p53
    %s55 = ssub.s32 %s17, %s24
    %p56 = scmp.eq.s32.totalorder %s55, 0
    %s58 = sadd.s32 %s57, 1
    %s59 = scalar_select %p56, %s57, %s58
    %p62 = pneg %p56
    %p63 = scmp.eq.s32.totalorder %s9, 1
    %p64 = por %p62, %p63
    %p65 = scmp.ne.s32.totalorder %s57, %s60
    %p66 = scmp.eq.s32.totalorder %s9, 0
    %p67 = por %p65, %p66
    %p68 = scmp.ne.s32.totalorder %s57, %s60
    %p69 = scmp.eq.s32.totalorder %s14, 1
    %p70 = por %p68, %p69
    %p71 = scmp.ne.s32.totalorder %s60, %s61
    %p72 = scmp.eq.s32.totalorder %s14, 0
    %p73 = por %p71, %p72
    %p74 = scmp.ne.s32.totalorder %s60, %s61
    %p75 = scmp.eq.s32.totalorder %s15, 1
    %p76 = por %p74, %p75
    %p78 = scmp.ne.s32.totalorder %s61, %s77
    %p79 = scmp.eq.s32.totalorder %s15, 0
    %p80 = por %p78, %p79
    %s81 = ssub.s32 %s17, %s24
    %p82 = scmp.eq.s32.totalorder %s81, 0
    %s84 = sadd.s32 %s83, 1
    %s85 = scalar_select %p82, %s83, %s84
    %p88 = pneg %p82
    %p89 = scmp.eq.s32.totalorder %s9, 1
    %p90 = por %p88, %p89
    %p91 = scmp.ne.s32.totalorder %s83, %s86
    %p92 = scmp.eq.s32.totalorder %s9, 0
    %p93 = por %p91, %p92
    %p94 = scmp.ne.s32.totalorder %s83, %s86
    %p95 = scmp.eq.s32.totalorder %s14, 1
    %p96 = por %p94, %p95
    %p97 = scmp.ne.s32.totalorder %s86, %s87
    %p98 = scmp.eq.s32.totalorder %s14, 0
    %p99 = por %p97, %p98
    %p100 = scmp.ne.s32.totalorder %s86, %s87
    %p101 = scmp.eq.s32.totalorder %s15, 1
    %p102 = por %p100, %p101
    %p104 = scmp.ne.s32.totalorder %s87, %s103
    %p105 = scmp.eq.s32.totalorder %s15, 0
    %p106 = por %p104, %p105
    %s107 = ssub.s32 %s16, %s28
    %s108 = ssub.s32 %s17, %s24
    %s109 = sor.u32 %s107, %s108
    %p110 = scmp.eq.s32.totalorder %s109, 0
    %s112 = sadd.s32 %s111, 1
    %s113 = scalar_select %p110, %s111, %s112
    %p116 = pneg %p110
    %p117 = scmp.eq.s32.totalorder %s9, 1
    %p118 = por %p116, %p117
    %p119 = scmp.ne.s32.totalorder %s111, %s114
    %p120 = scmp.eq.s32.totalorder %s9, 0
    %p121 = por %p119, %p120
    %p122 = scmp.ne.s32.totalorder %s111, %s114
    %p123 = scmp.eq.s32.totalorder %s14, 1
    %p124 = por %p122, %p123
    %p125 = scmp.ne.s32.totalorder %s114, %s115
    %p126 = scmp.eq.s32.totalorder %s14, 0
    %p127 = por %p125, %p126
    %p128 = scmp.ne.s32.totalorder %s114, %s115
    %p129 = scmp.eq.s32.totalorder %s15, 1
    %p130 = por %p128, %p129
    %p132 = scmp.ne.s32.totalorder %s115, %s131
    %p133 = scmp.eq.s32.totalorder %s15, 0
    %p134 = por %p132, %p133
    %p135 = scmp.le.s32.totalorder 1, %s9
    %p136 = scmp.lt.s32.totalorder %s9, 3
    %p137 = pnand %p135, %p136
    %p138 = pneg %p137
    // Predicated region
    $region9: #{enet_forward.89} parent=5 // pred_check
      _
    $region10: #{enet_forward.89} parent=5 // pred_check_branch
      %140 = sbr.rel (%p137) target = $region12
    $region11: #{enet_forward.89} parent=5 // pred_region
      %s141 = ssub.s32 %s9, 1
      // Predicated region
      $region13: #{enet_forward.89} parent=11 // pred_check
        %p142 = pneg %p73
      $region14: #{enet_forward.89} parent=11 // pred_check_branch
        %144 = sbr.rel (%p142) target = $region16
      $region15: #{enet_forward.89} parent=11 // pred_region
        %p145 = scmp.lt.s32.totalorder %s19, 0
        %s146 = scalar_select %p145, %s19, 0
        %s147 = smul.addr %s146, 4
        %s148 = scalar_lea.vmem %s1, %s147
      $region16: #{enet_forward.89} parent=11 // pred_fallthru
        _
      // Predicated region
      $region17: #{enet_forward.89} parent=11 // pred_check
        %p149 = pneg %p99
      $region18: #{enet_forward.89} parent=11 // pred_check_branch
        %151 = sbr.rel (%p149) target = $region20
      $region19: #{enet_forward.89} parent=11 // pred_region
        %p152 = scmp.lt.s32.totalorder %s19, 0
        %s153 = scalar_select %p152, %s19, 0
        %s154 = smul.addr %s153, 8
        %s155 = scalar_lea.vmem %s2, %s154
      $region20: #{enet_forward.89} parent=11 // pred_fallthru
        _
    $region12: #{enet_forward.89} parent=5 // pred_fallthru
      _
    %p156 = scmp.lt.s32.totalorder %s9, 2
    // Predicated region
    $region21: #{enet_forward.89} parent=5 // pred_check
      %p157 = pneg %p156
    $region22: #{enet_forward.89} parent=5 // pred_check_branch
      %159 = sbr.rel (%p157) target = $region24
    $region23: #{enet_forward.89} parent=5 // pred_region
      // Predicated region
      $region25: #{enet_forward.89} parent=23 // pred_check
        %p160 = pneg %p41
      $region26: #{enet_forward.89} parent=23 // pred_check_branch
        %162 = sbr.rel (%p160) target = $region28
      $region27: #{enet_forward.89} parent=23 // pred_region
        %s163 = smul.u32 32, %s16
        %p164 = scmp.lt.s32.totalorder %s163, 63
        %s165 = scalar_select %p164, %s163, 63
        %s166 = smul.addr %s165, 4
        %s167 = scalar_lea.vmem %s0, %s166
        %s168 = smul.u32 32, %s16
      $region28: #{enet_forward.89} parent=23 // pred_fallthru
        _
    $region24: #{enet_forward.89} parent=5 // pred_fallthru
      _
    %p169 = scmp.le.s32.totalorder 1, %s9
    %p170 = scmp.lt.s32.totalorder %s9, 3
    %p171 = pnand %p169, %p170
    %p172 = pneg %p171
    // Predicated region
    $region29: #{enet_forward.89} parent=5 // pred_check
      _
    $region30: #{enet_forward.89} parent=5 // pred_check_branch
      %174 = sbr.rel (%p171) target = $region32
    $region31: #{enet_forward.89} parent=5 // pred_region
      %s175 = ssub.s32 %s9, 1
      %s176 = smul.u32 32, %s18
      %p177 = scmp.lt.s32.totalorder %s176, 63
      %s178 = scalar_select %p177, %s176, 63
      %s179 = smul.addr %s178, 4
      %s180 = scalar_lea.vmem %s0, %s179
      %p181 = pneg %p47
      %p182 = pneg %p44
      %p183 = scmp.lt.s32.totalorder %s19, 0
      %s184 = scalar_select %p183, %s19, 0
      %s185 = smul.addr %s184, 4
      %s186 = scalar_lea.vmem %s1, %s185
      %p187 = pneg %p73
      %p188 = pneg %p70
      %p189 = scmp.lt.s32.totalorder %s19, 0
      %s190 = scalar_select %p189, %s19, 0
      %s191 = smul.addr %s190, 8
      %s192 = scalar_lea.vmem %s2, %s191
      %p193 = pneg %p99
      %p194 = pneg %p96
      %p195 = pneg %p127
      %p196 = pneg %p124
      %s197 = smul.u32 32, %s18
      %p198 = scmp.lt.s32.totalorder %s197, 63
      %s199 = scalar_select %p198, %s197, 63
      %p200 = scmp.lt.s32.totalorder %s19, 0
      %s201 = scalar_select %p200, %s19, 0
      %s202 = sadd.s32 %s201, %s199
      %s203 = smul.addr %s202, 8
      %s204 = scalar_lea.vmem %s3, %s203
      %s205 = smul.u32 32, %s18
      %p206 = scmp.lt.s32.totalorder %s205, 63
      %s207 = scalar_select %p206, %s205, 63
      %s208 = smul.addr %s207, 4
      %s209 = scalar_lea.vmem %s0, %s208
      %s210 = smul.u32 32, %s18
      %p211 = scmp.lt.s32.totalorder %s19, 0
      %s212 = scalar_select %p211, %s19, 0
      %s213 = smul.addr %s212, 4
      %s214 = scalar_lea.vmem %s1, %s213
      %p215 = scmp.lt.s32.totalorder %s19, 0
      %s216 = scalar_select %p215, %s19, 0
      %s217 = smul.addr %s216, 8
      %s218 = scalar_lea.vmem %s2, %s217
      %s219 = smul.u32 32, %s18
      %p220 = scmp.lt.s32.totalorder %s219, 63
      %s221 = scalar_select %p220, %s219, 63
      %p222 = scmp.lt.s32.totalorder %s19, 0
      %s223 = scalar_select %p222, %s19, 0
      %s224 = sadd.s32 %s223, %s221
      %s225 = smul.addr %s224, 8
      %s226 = scalar_lea.vmem %s3, %s225
      %s227 = smul.u32 32, %s18
      %v229 = vld [vmem:[%s209] sm:$0xf]
      %v230 = vld [vmem:[%s209 + $0x4] sm:$0xf]
      %v231 = vld [vmem:[%s209 + $0x8] sm:$0xf]
      %v232 = vld [vmem:[%s209 + $0xc] sm:$0xf]
      %v233 = vld [vmem:[%s209 + $0x10] sm:$0xf]
      %v234 = vld [vmem:[%s209 + $0x14] sm:$0xf]
      %v235 = vld [vmem:[%s209 + $0x18] sm:$0xf]
      %v236 = vld [vmem:[%s209 + $0x1c] sm:$0xf]
      %v237 = vld [vmem:[%s209 + $0x20] sm:$0xf]
      %v238 = vld [vmem:[%s209 + $0x24] sm:$0xf]
      %v239 = vld [vmem:[%s209 + $0x28] sm:$0xf]
      %v240 = vld [vmem:[%s209 + $0x2c] sm:$0xf]
      %v241 = vld [vmem:[%s209 + $0x30] sm:$0xf]
      %v242 = vld [vmem:[%s209 + $0x34] sm:$0xf]
      %v243 = vld [vmem:[%s209 + $0x38] sm:$0xf]
      %v244 = vld [vmem:[%s209 + $0x3c] sm:$0xf]
      %v245 = vld [vmem:[%s209 + $0x40] sm:$0xf]
      %v246 = vld [vmem:[%s209 + $0x44] sm:$0xf]
      %v247 = vld [vmem:[%s209 + $0x48] sm:$0xf]
      %v248 = vld [vmem:[%s209 + $0x4c] sm:$0xf]
      %v249 = vld [vmem:[%s209 + $0x50] sm:$0xf]
      %v250 = vld [vmem:[%s209 + $0x54] sm:$0xf]
      %v251 = vld [vmem:[%s209 + $0x58] sm:$0xf]
      %v252 = vld [vmem:[%s209 + $0x5c] sm:$0xf]
      %v253 = vld [vmem:[%s209 + $0x60] sm:$0xf]
      %v254 = vld [vmem:[%s209 + $0x64] sm:$0xf]
      %v255 = vld [vmem:[%s209 + $0x68] sm:$0xf]
      %v256 = vld [vmem:[%s209 + $0x6c] sm:$0xf]
      %v257 = vld [vmem:[%s209 + $0x70] sm:$0xf]
      %v258 = vld [vmem:[%s209 + $0x74] sm:$0xf]
      %v259 = vld [vmem:[%s209 + $0x78] sm:$0xf]
      %v260 = vld [vmem:[%s209 + $0x7c] sm:$0xf]
      %v261 = vld [vmem:[%s214] sm:$0xf]
      %v262 = vld [vmem:[%s214 + $0x4] sm:$0xf]
      %v263 = vld [vmem:[%s214 + $0x8] sm:$0xf]
      %v264 = vld [vmem:[%s214 + $0xc] sm:$0xf]
      %v265 = vld [vmem:[%s214 + $0x10] sm:$0xf]
      %v266 = vld [vmem:[%s214 + $0x14] sm:$0xf]
      %v267 = vld [vmem:[%s214 + $0x18] sm:$0xf]
      %v268 = vld [vmem:[%s214 + $0x1c] sm:$0xf]
      %v269 = vld [vmem:[%s214 + $0x20] sm:$0xf]
      %v270 = vld [vmem:[%s214 + $0x24] sm:$0xf]
      %v271 = vld [vmem:[%s214 + $0x28] sm:$0xf]
      %v272 = vld [vmem:[%s214 + $0x2c] sm:$0xf]
      %v273 = vld [vmem:[%s214 + $0x30] sm:$0xf]
      %v274 = vld [vmem:[%s214 + $0x34] sm:$0xf]
      %v275 = vld [vmem:[%s214 + $0x38] sm:$0xf]
      %v276 = vld [vmem:[%s214 + $0x3c] sm:$0xf]
      %v309 = vunpack.c.l.b16 %v229
      %v310 = vunpack.c.l.b16 %v230
      %v311 = vunpack.c.l.b16 %v231
      %v312 = vunpack.c.l.b16 %v232
      %v313 = vunpack.c.l.b16 %v233
      %v314 = vunpack.c.l.b16 %v234
      %v315 = vunpack.c.l.b16 %v235
      %v316 = vunpack.c.l.b16 %v236
      %v317 = vunpack.c.l.b16 %v237
      %v318 = vunpack.c.l.b16 %v238
      %v319 = vunpack.c.l.b16 %v239
      %v320 = vunpack.c.l.b16 %v240
      %v321 = vunpack.c.l.b16 %v241
      %v322 = vunpack.c.l.b16 %v242
      %v323 = vunpack.c.l.b16 %v243
      %v324 = vunpack.c.l.b16 %v244
      %v325 = vunpack.c.l.b16 %v245
      %v326 = vunpack.c.l.b16 %v246
      %v327 = vunpack.c.l.b16 %v247
      %v328 = vunpack.c.l.b16 %v248
      %v329 = vunpack.c.l.b16 %v249
      %v330 = vunpack.c.l.b16 %v250
      %v331 = vunpack.c.l.b16 %v251
      %v332 = vunpack.c.l.b16 %v252
      %v333 = vunpack.c.l.b16 %v253
      %v334 = vunpack.c.l.b16 %v254
      %v335 = vunpack.c.l.b16 %v255
      %v336 = vunpack.c.l.b16 %v256
      %v337 = vunpack.c.l.b16 %v257
      %v338 = vunpack.c.l.b16 %v258
      %v339 = vunpack.c.l.b16 %v259
      %v340 = vunpack.c.l.b16 %v260
      %v341 = vpack.c.b16 %v310, %v309
      %v342 = vpack.c.b16 %v312, %v311
      %v343 = vpack.c.b16 %v314, %v313
      %v344 = vpack.c.b16 %v316, %v315
      %v345 = vpack.c.b16 %v318, %v317
      %v346 = vpack.c.b16 %v320, %v319
      %v347 = vpack.c.b16 %v322, %v321
      %v348 = vpack.c.b16 %v324, %v323
      %v349 = vpack.c.b16 %v326, %v325
      %v350 = vpack.c.b16 %v328, %v327
      %v351 = vpack.c.b16 %v330, %v329
      %v352 = vpack.c.b16 %v332, %v331
      %v353 = vpack.c.b16 %v334, %v333
      %v354 = vpack.c.b16 %v336, %v335
      %v355 = vpack.c.b16 %v338, %v337
      %v356 = vpack.c.b16 %v340, %v339
      %v389 = vunpack.c.l.b16 %v261
      %v390 = vunpack.c.l.b16 %v262
      %v391 = vunpack.c.l.b16 %v263
      %v392 = vunpack.c.l.b16 %v264
      %v393 = vunpack.c.l.b16 %v265
      %v394 = vunpack.c.l.b16 %v266
      %v395 = vunpack.c.l.b16 %v267
      %v396 = vunpack.c.l.b16 %v268
      %v397 = vunpack.c.l.b16 %v269
      %v398 = vunpack.c.l.b16 %v270
      %v399 = vunpack.c.l.b16 %v271
      %v400 = vunpack.c.l.b16 %v272
      %v401 = vunpack.c.l.b16 %v273
      %v402 = vunpack.c.l.b16 %v274
      %v403 = vunpack.c.l.b16 %v275
      %v404 = vunpack.c.l.b16 %v276
      %v405 = vpack.c.b16 %v390, %v389
      %v406 = vpack.c.b16 %v392, %v391
      %v407 = vpack.c.b16 %v394, %v393
      %v408 = vpack.c.b16 %v396, %v395
      %v409 = vpack.c.b16 %v398, %v397
      %v410 = vpack.c.b16 %v400, %v399
      %v411 = vpack.c.b16 %v402, %v401
      %v412 = vpack.c.b16 %v404, %v403
      %421 = vmatprep.subr.bf16.mxu0 0
      %422 = vmatpush1.bf16.msra.mxu0 %v405
      %423 = vmatprep.subr.bf16.mxu0 0
      %424 = vmatpush1.bf16.msra.mxu0 %v406
      %425 = vmatprep.subr.bf16.mxu0 0
      %426 = vmatpush1.bf16.msra.mxu0 %v407
      %427 = vmatprep.subr.bf16.mxu0 0
      %428 = vmatpush1.bf16.msra.mxu0 %v408
      %429 = vmatprep.subr.bf16.mxu0 0
      %430 = vmatpush1.bf16.msra.mxu0 %v409
      %431 = vmatprep.subr.bf16.mxu0 0
      %432 = vmatpush1.bf16.msra.mxu0 %v410
      %433 = vmatprep.subr.bf16.mxu0 0
      %434 = vmatpush1.bf16.msra.mxu0 %v411
      %435 = vmatprep.subr.bf16.mxu0 0
      %436 = vmatpush1.bf16.msra.mxu0 %v412
      %437 = vmatprep.subr.bf16.mxu0 0
      %438 = vmatpush1.bf16.msra.mxu0 0
      %439 = vmatprep.subr.bf16.mxu0 0
      %440 = vmatpush1.bf16.msra.mxu0 0
      %441 = vmatprep.subr.bf16.mxu0 0
      %442 = vmatpush1.bf16.msra.mxu0 0
      %443 = vmatprep.subr.bf16.mxu0 0
      %444 = vmatpush1.bf16.msra.mxu0 0
      %445 = vmatprep.subr.bf16.mxu0 0
      %446 = vmatpush1.bf16.msra.mxu0 0
      %447 = vmatprep.subr.bf16.mxu0 0
      %448 = vmatpush1.bf16.msra.mxu0 0
      %449 = vmatprep.subr.bf16.mxu0 0
      %450 = vmatpush1.bf16.msra.mxu0 0
      %451 = vmatprep.subr.bf16.mxu0 0
      %452 = vmatpush1.bf16.msra.mxu0 0
      %453 = vmatprep.mubr.bf16.mxu0 0
      %454 = vmatmul.mubr.bf16.gmra.mrb[0].mxu0 %v341
      %v455 = vpop.f32.mrb[0].mxu0
      %v456 = vadd.f32 0.0, %v455
      %v457 = vpop.f32.mrb[0].mxu0
      %v458 = vpop.f32.mrb[0].mxu0
      %v459 = vadd.f32 0.0, %v458
      %v460 = vpop.f32.mrb[0].mxu0
      %461 = vmatprep.mubr.bf16.mxu0 0
      %462 = vmatmul.mubr.bf16.gmra.mrb[0].mxu0 %v342
      %v463 = vpop.f32.mrb[0].mxu0
      %v464 = vadd.f32 0.0, %v463
      %v465 = vpop.f32.mrb[0].mxu0
      %v466 = vpop.f32.mrb[0].mxu0
      %v467 = vadd.f32 0.0, %v466
      %v468 = vpop.f32.mrb[0].mxu0
      %469 = vmatprep.mubr.bf16.mxu0 0
      %470 = vmatmul.mubr.bf16.gmra.mrb[0].mxu0 %v343
      %v471 = vpop.f32.mrb[0].mxu0
      %v472 = vadd.f32 0.0, %v471
      %v473 = vpop.f32.mrb[0].mxu0
      %v474 = vpop.f32.mrb[0].mxu0
      %v475 = vadd.f32 0.0, %v474
      %v476 = vpop.f32.mrb[0].mxu0
      %477 = vmatprep.mubr.bf16.mxu0 0
      %478 = vmatmul.mubr.bf16.gmra.mrb[0].mxu0 %v344
      %v479 = vpop.f32.mrb[0].mxu0
      %v480 = vadd.f32 0.0, %v479
      %v481 = vpop.f32.mrb[0].mxu0
      %v482 = vpop.f32.mrb[0].mxu0
      %v483 = vadd.f32 0.0, %v482
      %v484 = vpop.f32.mrb[0].mxu0
      %485 = vmatprep.mubr.bf16.mxu0 0
      %486 = vmatmul.mubr.bf16.gmra.mrb[0].mxu0 %v345
      %v487 = vpop.f32.mrb[0].mxu0
      %v488 = vadd.f32 0.0, %v487
      %v489 = vpop.f32.mrb[0].mxu0
      %v490 = vpop.f32.mrb[0].mxu0
      %v491 = vadd.f32 0.0, %v490
      %v492 = vpop.f32.mrb[0].mxu0
      %493 = vmatprep.mubr.bf16.mxu0 0
      %494 = vmatmul.mubr.bf16.gmra.mrb[0].mxu0 %v346
      %v495 = vpop.f32.mrb[0].mxu0
      %v496 = vadd.f32 0.0, %v495
      %v497 = vpop.f32.mrb[0].mxu0
      %v498 = vpop.f32.mrb[0].mxu0
      %v499 = vadd.f32 0.0, %v498
      %v500 = vpop.f32.mrb[0].mxu0
      %501 = vmatprep.mubr.bf16.mxu0 0
      %502 = vmatmul.mubr.bf16.gmra.mrb[0].mxu0 %v347
      %v503 = vpop.f32.mrb[0].mxu0
      %v504 = vadd.f32 0.0, %v503
      %v505 = vpop.f32.mrb[0].mxu0
      %v506 = vpop.f32.mrb[0].mxu0
      %v507 = vadd.f32 0.0, %v506
      %v508 = vpop.f32.mrb[0].mxu0
      %509 = vmatprep.mubr.bf16.mxu0 0
      %510 = vmatmul.mubr.bf16.gmra.mrb[0].mxu0 %v348
      %v511 = vpop.f32.mrb[0].mxu0
      %v512 = vadd.f32 0.0, %v511
      %v513 = vpop.f32.mrb[0].mxu0
      %v514 = vpop.f32.mrb[0].mxu0
      %v515 = vadd.f32 0.0, %v514
      %v516 = vpop.f32.mrb[0].mxu0
      %517 = vmatprep.mubr.bf16.mxu0 0
      %518 = vmatmul.mubr.bf16.gmra.mrb[0].mxu0 %v349
      %v519 = vpop.f32.mrb[0].mxu0
      %v520 = vadd.f32 0.0, %v519
      %v521 = vpop.f32.mrb[0].mxu0
      %v522 = vpop.f32.mrb[0].mxu0
      %v523 = vadd.f32 0.0, %v522
      %v524 = vpop.f32.mrb[0].mxu0
      %525 = vmatprep.mubr.bf16.mxu0 0
      %526 = vmatmul.mubr.bf16.gmra.mrb[0].mxu0 %v350
      %v527 = vpop.f32.mrb[0].mxu0
      %v528 = vadd.f32 0.0, %v527
      %v529 = vpop.f32.mrb[0].mxu0
      %v530 = vpop.f32.mrb[0].mxu0
      %v531 = vadd.f32 0.0, %v530
      %v532 = vpop.f32.mrb[0].mxu0
      %533 = vmatprep.mubr.bf16.mxu0 0
      %534 = vmatmul.mubr.bf16.gmra.mrb[0].mxu0 %v351
      %v535 = vpop.f32.mrb[0].mxu0
      %v536 = vadd.f32 0.0, %v535
      %v537 = vpop.f32.mrb[0].mxu0
      %v538 = vpop.f32.mrb[0].mxu0
      %v539 = vadd.f32 0.0, %v538
      %v540 = vpop.f32.mrb[0].mxu0
      %541 = vmatprep.mubr.bf16.mxu0 0
      %542 = vmatmul.mubr.bf16.gmra.mrb[0].mxu0 %v352
      %v543 = vpop.f32.mrb[0].mxu0
      %v544 = vadd.f32 0.0, %v543
      %v545 = vpop.f32.mrb[0].mxu0
      %v546 = vpop.f32.mrb[0].mxu0
      %v547 = vadd.f32 0.0, %v546
      %v548 = vpop.f32.mrb[0].mxu0
      %549 = vmatprep.mubr.bf16.mxu0 0
      %550 = vmatmul.mubr.bf16.gmra.mrb[0].mxu0 %v353
      %v551 = vpop.f32.mrb[0].mxu0
      %v552 = vadd.f32 0.0, %v551
      %v553 = vpop.f32.mrb[0].mxu0
      %v554 = vpop.f32.mrb[0].mxu0
      %v555 = vadd.f32 0.0, %v554
      %v556 = vpop.f32.mrb[0].mxu0
      %557 = vmatprep.mubr.bf16.mxu0 0
      %558 = vmatmul.mubr.bf16.gmra.mrb[0].mxu0 %v354
      %v559 = vpop.f32.mrb[0].mxu0
      %v560 = vadd.f32 0.0, %v559
      %v561 = vpop.f32.mrb[0].mxu0
      %v562 = vpop.f32.mrb[0].mxu0
      %v563 = vadd.f32 0.0, %v562
      %v564 = vpop.f32.mrb[0].mxu0
      %565 = vmatprep.mubr.bf16.mxu0 0
      %566 = vmatmul.mubr.bf16.gmra.mrb[0].mxu0 %v355
      %v567 = vpop.f32.mrb[0].mxu0
      %v568 = vadd.f32 0.0, %v567
      %v569 = vpop.f32.mrb[0].mxu0
      %v570 = vpop.f32.mrb[0].mxu0
      %v571 = vadd.f32 0.0, %v570
      %v572 = vpop.f32.mrb[0].mxu0
      %573 = vmatprep.mubr.bf16.mxu0 0
      %574 = vmatmul.mubr.bf16.gmra.mrb[0].mxu0 %v356
      %v575 = vpop.f32.mrb[0].mxu0
      %v576 = vadd.f32 0.0, %v575
      %v577 = vpop.f32.mrb[0].mxu0
      %v578 = vpop.f32.mrb[0].mxu0
      %v579 = vadd.f32 0.0, %v578
      %v580 = vpop.f32.mrb[0].mxu0
      %581 = vdwg.mxu0
      %v582 = vld [vmem:[%s218] sm:$0xff]
      %v583 = vlaneseq
      %v584 = vshrl.u32 %v583, 7
      %v585 = vsub.s32 0, %v584
      %v586 = vrot.slane %v582, %v585
      %v587 = vmul.f32 %v456, %v586
      %v588 = vmul.f32 %v459, %v586
      %v589 = vmul.f32 %v464, %v586
      %v590 = vmul.f32 %v467, %v586
      %v591 = vmul.f32 %v472, %v586
      %v592 = vmul.f32 %v475, %v586
      %v593 = vmul.f32 %v480, %v586
      %v594 = vmul.f32 %v483, %v586
      %v595 = vmul.f32 %v488, %v586
      %v596 = vmul.f32 %v491, %v586
      %v597 = vmul.f32 %v496, %v586
      %v598 = vmul.f32 %v499, %v586
      %v599 = vmul.f32 %v504, %v586
      %v600 = vmul.f32 %v507, %v586
      %v601 = vmul.f32 %v512, %v586
      %v602 = vmul.f32 %v515, %v586
      %v603 = vmul.f32 %v520, %v586
      %v604 = vmul.f32 %v523, %v586
      %v605 = vmul.f32 %v528, %v586
      %v606 = vmul.f32 %v531, %v586
      %v607 = vmul.f32 %v536, %v586
      %v608 = vmul.f32 %v539, %v586
      %v609 = vmul.f32 %v544, %v586
      %v610 = vmul.f32 %v547, %v586
      %v611 = vmul.f32 %v552, %v586
      %v612 = vmul.f32 %v555, %v586
      %v613 = vmul.f32 %v560, %v586
      %v614 = vmul.f32 %v563, %v586
      %v615 = vmul.f32 %v568, %v586
      %v616 = vmul.f32 %v571, %v586
      %v617 = vmul.f32 %v576, %v586
      %v618 = vmul.f32 %v579, %v586
      %v619 = vlaneseq
      %v620 = vshrl.u32 %v619, 7
      %v621 = vsub.s32 1, %v620
      %v622 = vrot.slane %v582, %v621
      %v623 = vadd.f32 %v587, %v622
      %v624 = vadd.f32 %v588, %v622
      %v625 = vadd.f32 %v589, %v622
      %v626 = vadd.f32 %v590, %v622
      %v627 = vadd.f32 %v591, %v622
      %v628 = vadd.f32 %v592, %v622
      %v629 = vadd.f32 %v593, %v622
      %v630 = vadd.f32 %v594, %v622
      %v631 = vadd.f32 %v595, %v622
      %v632 = vadd.f32 %v596, %v622
      %v633 = vadd.f32 %v597, %v622
      %v634 = vadd.f32 %v598, %v622
      %v635 = vadd.f32 %v599, %v622
      %v636 = vadd.f32 %v600, %v622
      %v637 = vadd.f32 %v601, %v622
      %v638 = vadd.f32 %v602, %v622
      %v639 = vadd.f32 %v603, %v622
      %v640 = vadd.f32 %v604, %v622
      %v641 = vadd.f32 %v605, %v622
      %v642 = vadd.f32 %v606, %v622
      %v643 = vadd.f32 %v607, %v622
      %v644 = vadd.f32 %v608, %v622
      %v645 = vadd.f32 %v609, %v622
      %v646 = vadd.f32 %v610, %v622
      %v647 = vadd.f32 %v611, %v622
      %v648 = vadd.f32 %v612, %v622
      %v649 = vadd.f32 %v613, %v622
      %v650 = vadd.f32 %v614, %v622
      %v651 = vadd.f32 %v615, %v622
      %v652 = vadd.f32 %v616, %v622
      %v653 = vadd.f32 %v617, %v622
      %v654 = vadd.f32 %v618, %v622
      %vm655 = vcmp.ge.f32.partialorder %v623, 0.0
      %vm656 = vcmp.ge.f32.partialorder %v624, 0.0
      %vm657 = vcmp.ge.f32.partialorder %v625, 0.0
      %vm658 = vcmp.ge.f32.partialorder %v626, 0.0
      %vm659 = vcmp.ge.f32.partialorder %v627, 0.0
      %vm660 = vcmp.ge.f32.partialorder %v628, 0.0
      %vm661 = vcmp.ge.f32.partialorder %v629, 0.0
      %vm662 = vcmp.ge.f32.partialorder %v630, 0.0
      %vm663 = vcmp.ge.f32.partialorder %v631, 0.0
      %vm664 = vcmp.ge.f32.partialorder %v632, 0.0
      %vm665 = vcmp.ge.f32.partialorder %v633, 0.0
      %vm666 = vcmp.ge.f32.partialorder %v634, 0.0
      %vm667 = vcmp.ge.f32.partialorder %v635, 0.0
      %vm668 = vcmp.ge.f32.partialorder %v636, 0.0
      %vm669 = vcmp.ge.f32.partialorder %v637, 0.0
      %vm670 = vcmp.ge.f32.partialorder %v638, 0.0
      %vm671 = vcmp.ge.f32.partialorder %v639, 0.0
      %vm672 = vcmp.ge.f32.partialorder %v640, 0.0
      %vm673 = vcmp.ge.f32.partialorder %v641, 0.0
      %vm674 = vcmp.ge.f32.partialorder %v642, 0.0
      %vm675 = vcmp.ge.f32.partialorder %v643, 0.0
      %vm676 = vcmp.ge.f32.partialorder %v644, 0.0
      %vm677 = vcmp.ge.f32.partialorder %v645, 0.0
      %vm678 = vcmp.ge.f32.partialorder %v646, 0.0
      %vm679 = vcmp.ge.f32.partialorder %v647, 0.0
      %vm680 = vcmp.ge.f32.partialorder %v648, 0.0
      %vm681 = vcmp.ge.f32.partialorder %v649, 0.0
      %vm682 = vcmp.ge.f32.partialorder %v650, 0.0
      %vm683 = vcmp.ge.f32.partialorder %v651, 0.0
      %vm684 = vcmp.ge.f32.partialorder %v652, 0.0
      %vm685 = vcmp.ge.f32.partialorder %v653, 0.0
      %vm686 = vcmp.ge.f32.partialorder %v654, 0.0
      %v687 = vlaneseq
      %v688 = vshrl.u32 %v687, 7
      %v689 = vsub.s32 2, %v688
      %v690 = vrot.slane %v582, %v689
      %v691 = vmul.f32 %v690, %v623
      %v692 = vmul.f32 %v690, %v624
      %v693 = vmul.f32 %v690, %v625
      %v694 = vmul.f32 %v690, %v626
      %v695 = vmul.f32 %v690, %v627
      %v696 = vmul.f32 %v690, %v628
      %v697 = vmul.f32 %v690, %v629
      %v698 = vmul.f32 %v690, %v630
      %v699 = vmul.f32 %v690, %v631
      %v700 = vmul.f32 %v690, %v632
      %v701 = vmul.f32 %v690, %v633
      %v702 = vmul.f32 %v690, %v634
      %v703 = vmul.f32 %v690, %v635
      %v704 = vmul.f32 %v690, %v636
      %v705 = vmul.f32 %v690, %v637
      %v706 = vmul.f32 %v690, %v638
      %v707 = vmul.f32 %v690, %v639
      %v708 = vmul.f32 %v690, %v640
      %v709 = vmul.f32 %v690, %v641
      %v710 = vmul.f32 %v690, %v642
      %v711 = vmul.f32 %v690, %v643
      %v712 = vmul.f32 %v690, %v644
      %v713 = vmul.f32 %v690, %v645
      %v714 = vmul.f32 %v690, %v646
      %v715 = vmul.f32 %v690, %v647
      %v716 = vmul.f32 %v690, %v648
      %v717 = vmul.f32 %v690, %v649
      %v718 = vmul.f32 %v690, %v650
      %v719 = vmul.f32 %v690, %v651
      %v720 = vmul.f32 %v690, %v652
      %v721 = vmul.f32 %v690, %v653
      %v722 = vmul.f32 %v690, %v654
      %v723 = vsel %vm655, %v623, %v691
      %v724 = vsel %vm656, %v624, %v692
      %v725 = vsel %vm657, %v625, %v693
      %v726 = vsel %vm658, %v626, %v694
      %v727 = vsel %vm659, %v627, %v695
      %v728 = vsel %vm660, %v628, %v696
      %v729 = vsel %vm661, %v629, %v697
      %v730 = vsel %vm662, %v630, %v698
      %v731 = vsel %vm663, %v631, %v699
      %v732 = vsel %vm664, %v632, %v700
      %v733 = vsel %vm665, %v633, %v701
      %v734 = vsel %vm666, %v634, %v702
      %v735 = vsel %vm667, %v635, %v703
      %v736 = vsel %vm668, %v636, %v704
      %v737 = vsel %vm669, %v637, %v705
      %v738 = vsel %vm670, %v638, %v706
      %v739 = vsel %vm671, %v639, %v707
      %v740 = vsel %vm672, %v640, %v708
      %v741 = vsel %vm673, %v641, %v709
      %v742 = vsel %vm674, %v642, %v710
      %v743 = vsel %vm675, %v643, %v711
      %v744 = vsel %vm676, %v644, %v712
      %v745 = vsel %vm677, %v645, %v713
      %v746 = vsel %vm678, %v646, %v714
      %v747 = vsel %vm679, %v647, %v715
      %v748 = vsel %vm680, %v648, %v716
      %v749 = vsel %vm681, %v649, %v717
      %v750 = vsel %vm682, %v650, %v718
      %v751 = vsel %vm683, %v651, %v719
      %v752 = vsel %vm684, %v652, %v720
      %v753 = vsel %vm685, %v653, %v721
      %v754 = vsel %vm686, %v654, %v722
      %755 = vst [vmem:[%s226] sm:$0xff] %v723
      %756 = vst [vmem:[%s226 + $0x8] sm:$0xff] %v724
      %757 = vst [vmem:[%s226 + $0x10] sm:$0xff] %v725
      %758 = vst [vmem:[%s226 + $0x18] sm:$0xff] %v726
      %759 = vst [vmem:[%s226 + $0x20] sm:$0xff] %v727
      %760 = vst [vmem:[%s226 + $0x28] sm:$0xff] %v728
      %761 = vst [vmem:[%s226 + $0x30] sm:$0xff] %v729
      %762 = vst [vmem:[%s226 + $0x38] sm:$0xff] %v730
      %763 = vst [vmem:[%s226 + $0x40] sm:$0xff] %v731
      %764 = vst [vmem:[%s226 + $0x48] sm:$0xff] %v732
      %765 = vst [vmem:[%s226 + $0x50] sm:$0xff] %v733
      %766 = vst [vmem:[%s226 + $0x58] sm:$0xff] %v734
      %767 = vst [vmem:[%s226 + $0x60] sm:$0xff] %v735
      %768 = vst [vmem:[%s226 + $0x68] sm:$0xff] %v736
      %769 = vst [vmem:[%s226 + $0x70] sm:$0xff] %v737
      %770 = vst [vmem:[%s226 + $0x78] sm:$0xff] %v738
      %771 = vst [vmem:[%s226 + $0x80] sm:$0xff] %v739
      %772 = vst [vmem:[%s226 + $0x88] sm:$0xff] %v740
      %773 = vst [vmem:[%s226 + $0x90] sm:$0xff] %v741
      %774 = vst [vmem:[%s226 + $0x98] sm:$0xff] %v742
      %775 = vst [vmem:[%s226 + $0xa0] sm:$0xff] %v743
      %776 = vst [vmem:[%s226 + $0xa8] sm:$0xff] %v744
      %777 = vst [vmem:[%s226 + $0xb0] sm:$0xff] %v745
      %778 = vst [vmem:[%s226 + $0xb8] sm:$0xff] %v746
      %779 = vst [vmem:[%s226 + $0xc0] sm:$0xff] %v747
      %780 = vst [vmem:[%s226 + $0xc8] sm:$0xff] %v748
      %781 = vst [vmem:[%s226 + $0xd0] sm:$0xff] %v749
      %782 = vst [vmem:[%s226 + $0xd8] sm:$0xff] %v750
      %783 = vst [vmem:[%s226 + $0xe0] sm:$0xff] %v751
      %784 = vst [vmem:[%s226 + $0xe8] sm:$0xff] %v752
      %785 = vst [vmem:[%s226 + $0xf0] sm:$0xff] %v753
      %786 = vst [vmem:[%s226 + $0xf8] sm:$0xff] %v754
      %s787 = smul.u32 32, %s18
      %p788 = scmp.lt.s32.totalorder %s787, 63
      %s789 = scalar_select %p788, %s787, 63
      %p790 = scmp.lt.s32.totalorder %s19, 0
      %s791 = scalar_select %p790, %s19, 0
      %s792 = sadd.s32 %s791, %s789
      %s793 = smul.addr %s792, 8
      %s794 = scalar_lea.vmem %s3, %s793
      // Predicated region
      $region33: #{enet_forward.89} parent=31 // pred_check
        %p795 = pneg %p124
      $region34: #{enet_forward.89} parent=31 // pred_check_branch
        %797 = sbr.rel (%p795) target = $region36
      $region35: #{enet_forward.89} parent=31 // pred_region
        %s798 = smul.u32 32, %s18
      $region36: #{enet_forward.89} parent=31 // pred_fallthru
        _
    $region32: #{enet_forward.89} parent=5 // pred_fallthru
      _
    %p799 = scmp.le.s32.totalorder 2, %s9
    // Predicated region
    $region37: #{enet_forward.89} parent=5 // pred_check
      %p800 = pneg %p799
    $region38: #{enet_forward.89} parent=5 // pred_check_branch
      %802 = sbr.rel (%p800) target = $region40
    $region39: #{enet_forward.89} parent=5 // pred_region
      %s803 = ssub.s32 %s9, 2
      // Predicated region
      $region41: #{enet_forward.89} parent=39 // pred_check
        %p804 = pneg %p130
      $region42: #{enet_forward.89} parent=39 // pred_check_branch
        %806 = sbr.rel (%p804) target = $region44
      $region43: #{enet_forward.89} parent=39 // pred_region
        %s807 = smul.u32 32, %s20
        %p808 = scmp.lt.s32.totalorder %s807, 63
        %s809 = scalar_select %p808, %s807, 63
        %p810 = scmp.lt.s32.totalorder %s21, 0
        %s811 = scalar_select %p810, %s21, 0
        %s812 = sadd.s32 %s811, %s809
        %s813 = smul.addr %s812, 8
        %s814 = scalar_lea.vmem %s3, %s813
      $region44: #{enet_forward.89} parent=39 // pred_fallthru
        _
    $region40: #{enet_forward.89} parent=5 // pred_fallthru
      _
  $region6: #{enet_forward.89} parent=0 // loop_footer
    %s13 = sadd.s32 1, %s9
  $region7: #{enet_forward.89} parent=0 // loop_footer_branch
    %8 = sbr.rel target = $region3
  $region8: #{enet_forward.89} parent=0 // loop_exit
    _

// kernel: enet_forward.90
$region0: #{enet_forward.90}
  #allocation0 [shape = 'u32[]', space=smem, size = 0x4, offset = 0x4, fixed_abs, tag = 'smem constant byte address 0x4 - core index']
  #allocation1 [shape = 'u32[144,128]{1,0:T(1,128)}', space=vmem, size = 0x12000, scoped, tag = 'internal scratch']
  %s0 = inlined_call_operand.vmem [shape: bf16[128,128], index: 0, kind: input, shape index: {}]
  %s1 = inlined_call_operand.vmem [shape: bf16[128,128], index: 1, kind: input, shape index: {}]
  %s2 = inlined_call_operand.vmem [shape: f32[8,128], index: 2, kind: input, shape index: {}]
  %s3 = inlined_call_operand.vmem [shape: f32[128,128], index: 3, kind: output, shape index: {}]
  %s4 = sld [smem:[#allocation0]]
  $region22: #{enet_forward.90} parent=0
    _
  %s6 = ssub.s32 1, %s4
  %s7 = scalar_select 0, %s6, %s4
  // Predicated region
  $region2: #{enet_forward.90} parent=0 // pred_check
    _
  $region3: #{enet_forward.90} parent=0 // pred_check_branch
    %9 = sbr.rel (0) target = $region5
  $region4: #{enet_forward.90} parent=0 // pred_region
    _
  $region5: #{enet_forward.90} parent=0 // pred_fallthru
    _
  // Predicated region
  $region6: #{enet_forward.90} parent=0 // pred_check
    _
  $region7: #{enet_forward.90} parent=0 // pred_check_branch
    %11 = sbr.rel (0) target = $region9
  $region8: #{enet_forward.90} parent=0 // pred_region
    _
  $region9: #{enet_forward.90} parent=0 // pred_fallthru
    _
  // Predicated region
  $region10: #{enet_forward.90} parent=0 // pred_check
    _
  $region11: #{enet_forward.90} parent=0 // pred_check_branch
    %13 = sbr.rel (0) target = $region13
  $region12: #{enet_forward.90} parent=0 // pred_region
    _
  $region13: #{enet_forward.90} parent=0 // pred_fallthru
    _
  %v15 = vld [vmem:[%s0] sm:$0xf]
  %v16 = vld [vmem:[%s0 + $0x4] sm:$0xf]
  %v17 = vld [vmem:[%s0 + $0x8] sm:$0xf]
  %v18 = vld [vmem:[%s0 + $0xc] sm:$0xf]
  %v19 = vld [vmem:[%s0 + $0x10] sm:$0xf]
  %v20 = vld [vmem:[%s0 + $0x14] sm:$0xf]
  %v21 = vld [vmem:[%s0 + $0x18] sm:$0xf]
  %v22 = vld [vmem:[%s0 + $0x1c] sm:$0xf]
  %v23 = vld [vmem:[%s0 + $0x20] sm:$0xf]
  %v24 = vld [vmem:[%s0 + $0x24] sm:$0xf]
  %v25 = vld [vmem:[%s0 + $0x28] sm:$0xf]
  %v26 = vld [vmem:[%s0 + $0x2c] sm:$0xf]
  %v27 = vld [vmem:[%s0 + $0x30] sm:$0xf]
  %v28 = vld [vmem:[%s0 + $0x34] sm:$0xf]
  %v29 = vld [vmem:[%s0 + $0x38] sm:$0xf]
  %v30 = vld [vmem:[%s0 + $0x3c] sm:$0xf]
  %v31 = vld [vmem:[%s1] sm:$0xf]
  %v32 = vld [vmem:[%s1 + $0x4] sm:$0xf]
  %v33 = vld [vmem:[%s1 + $0x8] sm:$0xf]
  %v34 = vld [vmem:[%s1 + $0xc] sm:$0xf]
  %v35 = vld [vmem:[%s1 + $0x10] sm:$0xf]
  %v36 = vld [vmem:[%s1 + $0x14] sm:$0xf]
  %v37 = vld [vmem:[%s1 + $0x18] sm:$0xf]
  %v38 = vld [vmem:[%s1 + $0x1c] sm:$0xf]
  %v39 = vld [vmem:[%s1 + $0x20] sm:$0xf]
  %v40 = vld [vmem:[%s1 + $0x24] sm:$0xf]
  %v41 = vld [vmem:[%s1 + $0x28] sm:$0xf]
  %v42 = vld [vmem:[%s1 + $0x2c] sm:$0xf]
  %v43 = vld [vmem:[%s1 + $0x30] sm:$0xf]
  %v44 = vld [vmem:[%s1 + $0x34] sm:$0xf]
  %v45 = vld [vmem:[%s1 + $0x38] sm:$0xf]
  %v46 = vld [vmem:[%s1 + $0x3c] sm:$0xf]
  %v63 = vunpack.c.l.b16 %v15
  %v64 = vunpack.c.l.b16 %v16
  %v65 = vunpack.c.l.b16 %v17
  %v66 = vunpack.c.l.b16 %v18
  %v67 = vunpack.c.l.b16 %v19
  %v68 = vunpack.c.l.b16 %v20
  %v69 = vunpack.c.l.b16 %v21
  %v70 = vunpack.c.l.b16 %v22
  %v71 = vunpack.c.l.b16 %v23
  %v72 = vunpack.c.l.b16 %v24
  %v73 = vunpack.c.l.b16 %v25
  %v74 = vunpack.c.l.b16 %v26
  %v75 = vunpack.c.l.b16 %v27
  %v76 = vunpack.c.l.b16 %v28
  %v77 = vunpack.c.l.b16 %v29
  %v78 = vunpack.c.l.b16 %v30
  %v79 = vpack.c.b16 %v64, %v63
  %v80 = vpack.c.b16 %v66, %v65
  %v81 = vpack.c.b16 %v68, %v67
  %v82 = vpack.c.b16 %v70, %v69
  %v83 = vpack.c.b16 %v72, %v71
  %v84 = vpack.c.b16 %v74, %v73
  %v85 = vpack.c.b16 %v76, %v75
  %v86 = vpack.c.b16 %v78, %v77
  %v111 = vunpack.c.l.b16 %v31
  %v112 = vunpack.c.l.b16 %v32
  %v113 = vunpack.c.l.b16 %v33
  %v114 = vunpack.c.l.b16 %v34
  %v115 = vunpack.c.l.b16 %v35
  %v116 = vunpack.c.l.b16 %v36
  %v117 = vunpack.c.l.b16 %v37
  %v118 = vunpack.c.l.b16 %v38
  %v119 = vunpack.c.l.b16 %v39
  %v120 = vunpack.c.l.b16 %v40
  %v121 = vunpack.c.l.b16 %v41
  %v122 = vunpack.c.l.b16 %v42
  %v123 = vunpack.c.l.b16 %v43
  %v124 = vunpack.c.l.b16 %v44
  %v125 = vunpack.c.l.b16 %v45
  %v126 = vunpack.c.l.b16 %v46
  %v127 = vpack.c.b16 %v112, %v111
  %v128 = vpack.c.b16 %v114, %v113
  %v129 = vpack.c.b16 %v116, %v115
  %v130 = vpack.c.b16 %v118, %v117
  %v131 = vpack.c.b16 %v120, %v119
  %v132 = vpack.c.b16 %v122, %v121
  %v133 = vpack.c.b16 %v124, %v123
  %v134 = vpack.c.b16 %v126, %v125
  %143 = vmatprep.subr.bf16.mxu0 0
  %144 = vmatpush1.bf16.msra.mxu0 %v127
  %145 = vmatprep.subr.bf16.mxu0 0
  %146 = vmatpush1.bf16.msra.mxu0 %v128
  %147 = vmatprep.subr.bf16.mxu0 0
  %148 = vmatpush1.bf16.msra.mxu0 %v129
  %149 = vmatprep.subr.bf16.mxu0 0
  %150 = vmatpush1.bf16.msra.mxu0 %v130
  %151 = vmatprep.subr.bf16.mxu0 0
  %152 = vmatpush1.bf16.msra.mxu0 %v131
  %153 = vmatprep.subr.bf16.mxu0 0
  %154 = vmatpush1.bf16.msra.mxu0 %v132
  %155 = vmatprep.subr.bf16.mxu0 0
  %156 = vmatpush1.bf16.msra.mxu0 %v133
  %157 = vmatprep.subr.bf16.mxu0 0
  %158 = vmatpush1.bf16.msra.mxu0 %v134
  %159 = vmatprep.subr.bf16.mxu0 0
  %160 = vmatpush1.bf16.msra.mxu0 0
  %161 = vmatprep.subr.bf16.mxu0 0
  %162 = vmatpush1.bf16.msra.mxu0 0
  %163 = vmatprep.subr.bf16.mxu0 0
  %164 = vmatpush1.bf16.msra.mxu0 0
  %165 = vmatprep.subr.bf16.mxu0 0
  %166 = vmatpush1.bf16.msra.mxu0 0
  %167 = vmatprep.subr.bf16.mxu0 0
  %168 = vmatpush1.bf16.msra.mxu0 0
  %169 = vmatprep.subr.bf16.mxu0 0
  %170 = vmatpush1.bf16.msra.mxu0 0
  %171 = vmatprep.subr.bf16.mxu0 0
  %172 = vmatpush1.bf16.msra.mxu0 0
  %173 = vmatprep.subr.bf16.mxu0 0
  %174 = vmatpush1.bf16.msra.mxu0 0
  %175 = vmatprep.mubr.bf16.mxu0 0
  %176 = vmatmul.mubr.bf16.gmra.mrb[0].mxu0 %v79
  %v177 = vpop.f32.mrb[0].mxu0
  %v178 = vadd.f32 0.0, %v177
  %v179 = vpop.f32.mrb[0].mxu0
  %v180 = vpop.f32.mrb[0].mxu0
  %v181 = vadd.f32 0.0, %v180
  %v182 = vpop.f32.mrb[0].mxu0
  %183 = vmatprep.mubr.bf16.mxu0 0
  %184 = vmatmul.mubr.bf16.gmra.mrb[0].mxu0 %v80
  %v185 = vpop.f32.mrb[0].mxu0
  %v186 = vadd.f32 0.0, %v185
  %v187 = vpop.f32.mrb[0].mxu0
  %v188 = vpop.f32.mrb[0].mxu0
  %v189 = vadd.f32 0.0, %v188
  %v190 = vpop.f32.mrb[0].mxu0
  %191 = vmatprep.mubr.bf16.mxu0 0
  %192 = vmatmul.mubr.bf16.gmra.mrb[0].mxu0 %v81
  %v193 = vpop.f32.mrb[0].mxu0
  %v194 = vadd.f32 0.0, %v193
  %v195 = vpop.f32.mrb[0].mxu0
  %v196 = vpop.f32.mrb[0].mxu0
  %v197 = vadd.f32 0.0, %v196
  %v198 = vpop.f32.mrb[0].mxu0
  %199 = vmatprep.mubr.bf16.mxu0 0
  %200 = vmatmul.mubr.bf16.gmra.mrb[0].mxu0 %v82
  %v201 = vpop.f32.mrb[0].mxu0
  %v202 = vadd.f32 0.0, %v201
  %v203 = vpop.f32.mrb[0].mxu0
  %v204 = vpop.f32.mrb[0].mxu0
  %v205 = vadd.f32 0.0, %v204
  %v206 = vpop.f32.mrb[0].mxu0
  %207 = vmatprep.mubr.bf16.mxu0 0
  %208 = vmatmul.mubr.bf16.gmra.mrb[0].mxu0 %v83
  %v209 = vpop.f32.mrb[0].mxu0
  %v210 = vadd.f32 0.0, %v209
  %v211 = vpop.f32.mrb[0].mxu0
  %v212 = vpop.f32.mrb[0].mxu0
  %v213 = vadd.f32 0.0, %v212
  %v214 = vpop.f32.mrb[0].mxu0
  %215 = vmatprep.mubr.bf16.mxu0 0
  %216 = vmatmul.mubr.bf16.gmra.mrb[0].mxu0 %v84
  %v217 = vpop.f32.mrb[0].mxu0
  %v218 = vadd.f32 0.0, %v217
  %v219 = vpop.f32.mrb[0].mxu0
  %v220 = vpop.f32.mrb[0].mxu0
  %v221 = vadd.f32 0.0, %v220
  %v222 = vpop.f32.mrb[0].mxu0
  %223 = vmatprep.mubr.bf16.mxu0 0
  %224 = vmatmul.mubr.bf16.gmra.mrb[0].mxu0 %v85
  %v225 = vpop.f32.mrb[0].mxu0
  %v226 = vadd.f32 0.0, %v225
  %v227 = vpop.f32.mrb[0].mxu0
  %v228 = vpop.f32.mrb[0].mxu0
  %v229 = vadd.f32 0.0, %v228
  %v230 = vpop.f32.mrb[0].mxu0
  %231 = vmatprep.mubr.bf16.mxu0 0
  %232 = vmatmul.mubr.bf16.gmra.mrb[0].mxu0 %v86
  %v233 = vpop.f32.mrb[0].mxu0
  %v234 = vadd.f32 0.0, %v233
  %v235 = vpop.f32.mrb[0].mxu0
  %v236 = vpop.f32.mrb[0].mxu0
  %v237 = vadd.f32 0.0, %v236
  %v238 = vpop.f32.mrb[0].mxu0
  %239 = vdwg.mxu0
  %v240 = vld [vmem:[%s2] sm:$0xff]
  %v241 = vlaneseq
  %v242 = vshrl.u32 %v241, 7
  %v243 = vsub.s32 0, %v242
  %v244 = vrot.slane %v240, %v243
  %v245 = vmul.f32 %v178, %v244
  %v246 = vmul.f32 %v181, %v244
  %v247 = vmul.f32 %v186, %v244
  %v248 = vmul.f32 %v189, %v244
  %v249 = vmul.f32 %v194, %v244
  %v250 = vmul.f32 %v197, %v244
  %v251 = vmul.f32 %v202, %v244
  %v252 = vmul.f32 %v205, %v244
  %v253 = vmul.f32 %v210, %v244
  %v254 = vmul.f32 %v213, %v244
  %v255 = vmul.f32 %v218, %v244
  %v256 = vmul.f32 %v221, %v244
  %v257 = vmul.f32 %v226, %v244
  %v258 = vmul.f32 %v229, %v244
  %v259 = vmul.f32 %v234, %v244
  %v260 = vmul.f32 %v237, %v244
  %v261 = vlaneseq
  %v262 = vshrl.u32 %v261, 7
  %v263 = vsub.s32 1, %v262
  %v264 = vrot.slane %v240, %v263
  %v265 = vadd.f32 %v245, %v264
  %v266 = vadd.f32 %v246, %v264
  %v267 = vadd.f32 %v247, %v264
  %v268 = vadd.f32 %v248, %v264
  %v269 = vadd.f32 %v249, %v264
  %v270 = vadd.f32 %v250, %v264
  %v271 = vadd.f32 %v251, %v264
  %v272 = vadd.f32 %v252, %v264
  %v273 = vadd.f32 %v253, %v264
  %v274 = vadd.f32 %v254, %v264
  %v275 = vadd.f32 %v255, %v264
  %v276 = vadd.f32 %v256, %v264
  %v277 = vadd.f32 %v257, %v264
  %v278 = vadd.f32 %v258, %v264
  %v279 = vadd.f32 %v259, %v264
  %v280 = vadd.f32 %v260, %v264
  %vm281 = vcmp.ge.f32.partialorder %v265, 0.0
  %vm282 = vcmp.ge.f32.partialorder %v266, 0.0
  %vm283 = vcmp.ge.f32.partialorder %v267, 0.0
  %vm284 = vcmp.ge.f32.partialorder %v268, 0.0
  %vm285 = vcmp.ge.f32.partialorder %v269, 0.0
  %vm286 = vcmp.ge.f32.partialorder %v270, 0.0
  %vm287 = vcmp.ge.f32.partialorder %v271, 0.0
  %vm288 = vcmp.ge.f32.partialorder %v272, 0.0
  %vm289 = vcmp.ge.f32.partialorder %v273, 0.0
  %vm290 = vcmp.ge.f32.partialorder %v274, 0.0
  %vm291 = vcmp.ge.f32.partialorder %v275, 0.0
  %vm292 = vcmp.ge.f32.partialorder %v276, 0.0
  %vm293 = vcmp.ge.f32.partialorder %v277, 0.0
  %vm294 = vcmp.ge.f32.partialorder %v278, 0.0
  %vm295 = vcmp.ge.f32.partialorder %v279, 0.0
  %vm296 = vcmp.ge.f32.partialorder %v280, 0.0
  %v297 = vlaneseq
  %v298 = vshrl.u32 %v297, 7
  %v299 = vsub.s32 2, %v298
  %v300 = vrot.slane %v240, %v299
  %v301 = vmul.f32 %v300, %v265
  %v302 = vmul.f32 %v300, %v266
  %v303 = vmul.f32 %v300, %v267
  %v304 = vmul.f32 %v300, %v268
  %v305 = vmul.f32 %v300, %v269
  %v306 = vmul.f32 %v300, %v270
  %v307 = vmul.f32 %v300, %v271
  %v308 = vmul.f32 %v300, %v272
  %v309 = vmul.f32 %v300, %v273
  %v310 = vmul.f32 %v300, %v274
  %v311 = vmul.f32 %v300, %v275
  %v312 = vmul.f32 %v300, %v276
  %v313 = vmul.f32 %v300, %v277
  %v314 = vmul.f32 %v300, %v278
  %v315 = vmul.f32 %v300, %v279
  %v316 = vmul.f32 %v300, %v280
  %v317 = vsel %vm281, %v265, %v301
  %v318 = vsel %vm282, %v266, %v302
  %v319 = vsel %vm283, %v267, %v303
  %v320 = vsel %vm284, %v268, %v304
  %v321 = vsel %vm285, %v269, %v305
  %v322 = vsel %vm286, %v270, %v306
  %v323 = vsel %vm287, %v271, %v307
  %v324 = vsel %vm288, %v272, %v308
  %v325 = vsel %vm289, %v273, %v309
  %v326 = vsel %vm290, %v274, %v310
  %v327 = vsel %vm291, %v275, %v311
  %v328 = vsel %vm292, %v276, %v312
  %v329 = vsel %vm293, %v277, %v313
  %v330 = vsel %vm294, %v278, %v314
  %v331 = vsel %vm295, %v279, %v315
  %v332 = vsel %vm296, %v280, %v316
  %333 = vst [vmem:[%s3] sm:$0xff] %v317
  %334 = vst [vmem:[%s3 + $0x8] sm:$0xff] %v318
  %335 = vst [vmem:[%s3 + $0x10] sm:$0xff] %v319
  %336 = vst [vmem:[%s3 + $0x18] sm:$0xff] %v320
  %337 = vst [vmem:[%s3 + $0x20] sm:$0xff] %v321
  %338 = vst [vmem:[%s3 + $0x28] sm:$0xff] %v322
  %339 = vst [vmem:[%s3 + $0x30] sm:$0xff] %v323
  %340 = vst [vmem:[%s3 + $0x38] sm:$0xff] %v324
  %341 = vst [vmem:[%s3 + $0x40] sm:$0xff] %v325
  %342 = vst [vmem:[%s3 + $0x48] sm:$0xff] %v326
  %343 = vst [vmem:[%s3 + $0x50] sm:$0xff] %v327
  %344 = vst [vmem:[%s3 + $0x58] sm:$0xff] %v328
  %345 = vst [vmem:[%s3 + $0x60] sm:$0xff] %v329
  %346 = vst [vmem:[%s3 + $0x68] sm:$0xff] %v330
  %347 = vst [vmem:[%s3 + $0x70] sm:$0xff] %v331
  %348 = vst [vmem:[%s3 + $0x78] sm:$0xff] %v332
  // Predicated region
  $region14: #{enet_forward.90} parent=0 // pred_check
    _
  $region15: #{enet_forward.90} parent=0 // pred_check_branch
    %350 = sbr.rel (0) target = $region17
  $region16: #{enet_forward.90} parent=0 // pred_region
    _
  $region17: #{enet_forward.90} parent=0 // pred_fallthru
    _
  // Predicated region
  $region18: #{enet_forward.90} parent=0 // pred_check
    _
  $region19: #{enet_forward.90} parent=0 // pred_check_branch
    %352 = sbr.rel (0) target = $region21
  $region20: #{enet_forward.90} parent=0 // pred_region
    _
  $region21: #{enet_forward.90} parent=0 // pred_fallthru
    _

// kernel: enet_forward.92
$region0: #{enet_forward.92}
  #allocation0 [shape = 'u32[]', space=smem, size = 0x4, offset = 0x4, fixed_abs, tag = 'smem constant byte address 0x4 - core index']
  #allocation1 [shape = 'u32[144,128]{1,0:T(1,128)}', space=vmem, size = 0x12000, scoped, tag = 'internal scratch']
  %s0 = inlined_call_operand.vmem [shape: bf16[128,128], index: 0, kind: input, shape index: {}]
  %s1 = inlined_call_operand.vmem [shape: bf16[128,128], index: 1, kind: input, shape index: {}]
  %s2 = inlined_call_operand.vmem [shape: f32[8,128], index: 2, kind: input, shape index: {}]
  %s3 = inlined_call_operand.vmem [shape: f32[128,128], index: 3, kind: input, shape index: {}]
  %s4 = inlined_call_operand.vmem [shape: f32[128,128], index: 4, kind: output, shape index: {}]
  %s5 = sld [smem:[#allocation0]]
  $region26: #{enet_forward.92} parent=0
    _
  %s7 = ssub.s32 1, %s5
  %s8 = scalar_select 0, %s7, %s5
  // Predicated region
  $region2: #{enet_forward.92} parent=0 // pred_check
    _
  $region3: #{enet_forward.92} parent=0 // pred_check_branch
    %10 = sbr.rel (0) target = $region5
  $region4: #{enet_forward.92} parent=0 // pred_region
    _
  $region5: #{enet_forward.92} parent=0 // pred_fallthru
    _
  // Predicated region
  $region6: #{enet_forward.92} parent=0 // pred_check
    _
  $region7: #{enet_forward.92} parent=0 // pred_check_branch
    %12 = sbr.rel (0) target = $region9
  $region8: #{enet_forward.92} parent=0 // pred_region
    _
  $region9: #{enet_forward.92} parent=0 // pred_fallthru
    _
  // Predicated region
  $region10: #{enet_forward.92} parent=0 // pred_check
    _
  $region11: #{enet_forward.92} parent=0 // pred_check_branch
    %14 = sbr.rel (0) target = $region13
  $region12: #{enet_forward.92} parent=0 // pred_region
    _
  $region13: #{enet_forward.92} parent=0 // pred_fallthru
    _
  // Predicated region
  $region14: #{enet_forward.92} parent=0 // pred_check
    _
  $region15: #{enet_forward.92} parent=0 // pred_check_branch
    %16 = sbr.rel (0) target = $region17
  $region16: #{enet_forward.92} parent=0 // pred_region
    _
  $region17: #{enet_forward.92} parent=0 // pred_fallthru
    _
  %v18 = vld [vmem:[%s0] sm:$0xf]
  %v19 = vld [vmem:[%s0 + $0x4] sm:$0xf]
  %v20 = vld [vmem:[%s0 + $0x8] sm:$0xf]
  %v21 = vld [vmem:[%s0 + $0xc] sm:$0xf]
  %v22 = vld [vmem:[%s0 + $0x10] sm:$0xf]
  %v23 = vld [vmem:[%s0 + $0x14] sm:$0xf]
  %v24 = vld [vmem:[%s0 + $0x18] sm:$0xf]
  %v25 = vld [vmem:[%s0 + $0x1c] sm:$0xf]
  %v26 = vld [vmem:[%s0 + $0x20] sm:$0xf]
  %v27 = vld [vmem:[%s0 + $0x24] sm:$0xf]
  %v28 = vld [vmem:[%s0 + $0x28] sm:$0xf]
  %v29 = vld [vmem:[%s0 + $0x2c] sm:$0xf]
  %v30 = vld [vmem:[%s0 + $0x30] sm:$0xf]
  %v31 = vld [vmem:[%s0 + $0x34] sm:$0xf]
  %v32 = vld [vmem:[%s0 + $0x38] sm:$0xf]
  %v33 = vld [vmem:[%s0 + $0x3c] sm:$0xf]
  %v34 = vld [vmem:[%s1] sm:$0xf]
  %v35 = vld [vmem:[%s1 + $0x4] sm:$0xf]
  %v36 = vld [vmem:[%s1 + $0x8] sm:$0xf]
  %v37 = vld [vmem:[%s1 + $0xc] sm:$0xf]
  %v38 = vld [vmem:[%s1 + $0x10] sm:$0xf]
  %v39 = vld [vmem:[%s1 + $0x14] sm:$0xf]
  %v40 = vld [vmem:[%s1 + $0x18] sm:$0xf]
  %v41 = vld [vmem:[%s1 + $0x1c] sm:$0xf]
  %v42 = vld [vmem:[%s1 + $0x20] sm:$0xf]
  %v43 = vld [vmem:[%s1 + $0x24] sm:$0xf]
  %v44 = vld [vmem:[%s1 + $0x28] sm:$0xf]
  %v45 = vld [vmem:[%s1 + $0x2c] sm:$0xf]
  %v46 = vld [vmem:[%s1 + $0x30] sm:$0xf]
  %v47 = vld [vmem:[%s1 + $0x34] sm:$0xf]
  %v48 = vld [vmem:[%s1 + $0x38] sm:$0xf]
  %v49 = vld [vmem:[%s1 + $0x3c] sm:$0xf]
  %v66 = vunpack.c.l.b16 %v18
  %v67 = vunpack.c.l.b16 %v19
  %v68 = vunpack.c.l.b16 %v20
  %v69 = vunpack.c.l.b16 %v21
  %v70 = vunpack.c.l.b16 %v22
  %v71 = vunpack.c.l.b16 %v23
  %v72 = vunpack.c.l.b16 %v24
  %v73 = vunpack.c.l.b16 %v25
  %v74 = vunpack.c.l.b16 %v26
  %v75 = vunpack.c.l.b16 %v27
  %v76 = vunpack.c.l.b16 %v28
  %v77 = vunpack.c.l.b16 %v29
  %v78 = vunpack.c.l.b16 %v30
  %v79 = vunpack.c.l.b16 %v31
  %v80 = vunpack.c.l.b16 %v32
  %v81 = vunpack.c.l.b16 %v33
  %v82 = vpack.c.b16 %v67, %v66
  %v83 = vpack.c.b16 %v69, %v68
  %v84 = vpack.c.b16 %v71, %v70
  %v85 = vpack.c.b16 %v73, %v72
  %v86 = vpack.c.b16 %v75, %v74
  %v87 = vpack.c.b16 %v77, %v76
  %v88 = vpack.c.b16 %v79, %v78
  %v89 = vpack.c.b16 %v81, %v80
  %v114 = vunpack.c.l.b16 %v34
  %v115 = vunpack.c.l.b16 %v35
  %v116 = vunpack.c.l.b16 %v36
  %v117 = vunpack.c.l.b16 %v37
  %v118 = vunpack.c.l.b16 %v38
  %v119 = vunpack.c.l.b16 %v39
  %v120 = vunpack.c.l.b16 %v40
  %v121 = vunpack.c.l.b16 %v41
  %v122 = vunpack.c.l.b16 %v42
  %v123 = vunpack.c.l.b16 %v43
  %v124 = vunpack.c.l.b16 %v44
  %v125 = vunpack.c.l.b16 %v45
  %v126 = vunpack.c.l.b16 %v46
  %v127 = vunpack.c.l.b16 %v47
  %v128 = vunpack.c.l.b16 %v48
  %v129 = vunpack.c.l.b16 %v49
  %v130 = vpack.c.b16 %v115, %v114
  %v131 = vpack.c.b16 %v117, %v116
  %v132 = vpack.c.b16 %v119, %v118
  %v133 = vpack.c.b16 %v121, %v120
  %v134 = vpack.c.b16 %v123, %v122
  %v135 = vpack.c.b16 %v125, %v124
  %v136 = vpack.c.b16 %v127, %v126
  %v137 = vpack.c.b16 %v129, %v128
  %146 = vmatprep.subr.bf16.mxu0 0
  %147 = vmatpush1.bf16.msra.mxu0 %v130
  %148 = vmatprep.subr.bf16.mxu0 0
  %149 = vmatpush1.bf16.msra.mxu0 %v131
  %150 = vmatprep.subr.bf16.mxu0 0
  %151 = vmatpush1.bf16.msra.mxu0 %v132
  %152 = vmatprep.subr.bf16.mxu0 0
  %153 = vmatpush1.bf16.msra.mxu0 %v133
  %154 = vmatprep.subr.bf16.mxu0 0
  %155 = vmatpush1.bf16.msra.mxu0 %v134
  %156 = vmatprep.subr.bf16.mxu0 0
  %157 = vmatpush1.bf16.msra.mxu0 %v135
  %158 = vmatprep.subr.bf16.mxu0 0
  %159 = vmatpush1.bf16.msra.mxu0 %v136
  %160 = vmatprep.subr.bf16.mxu0 0
  %161 = vmatpush1.bf16.msra.mxu0 %v137
  %162 = vmatprep.subr.bf16.mxu0 0
  %163 = vmatpush1.bf16.msra.mxu0 0
  %164 = vmatprep.subr.bf16.mxu0 0
  %165 = vmatpush1.bf16.msra.mxu0 0
  %166 = vmatprep.subr.bf16.mxu0 0
  %167 = vmatpush1.bf16.msra.mxu0 0
  %168 = vmatprep.subr.bf16.mxu0 0
  %169 = vmatpush1.bf16.msra.mxu0 0
  %170 = vmatprep.subr.bf16.mxu0 0
  %171 = vmatpush1.bf16.msra.mxu0 0
  %172 = vmatprep.subr.bf16.mxu0 0
  %173 = vmatpush1.bf16.msra.mxu0 0
  %174 = vmatprep.subr.bf16.mxu0 0
  %175 = vmatpush1.bf16.msra.mxu0 0
  %176 = vmatprep.subr.bf16.mxu0 0
  %177 = vmatpush1.bf16.msra.mxu0 0
  %178 = vmatprep.mubr.bf16.mxu0 0
  %179 = vmatmul.mubr.bf16.gmra.mrb[0].mxu0 %v82
  %v180 = vpop.f32.mrb[0].mxu0
  %v181 = vadd.f32 0.0, %v180
  %v182 = vpop.f32.mrb[0].mxu0
  %v183 = vpop.f32.mrb[0].mxu0
  %v184 = vadd.f32 0.0, %v183
  %v185 = vpop.f32.mrb[0].mxu0
  %186 = vmatprep.mubr.bf16.mxu0 0
  %187 = vmatmul.mubr.bf16.gmra.mrb[0].mxu0 %v83
  %v188 = vpop.f32.mrb[0].mxu0
  %v189 = vadd.f32 0.0, %v188
  %v190 = vpop.f32.mrb[0].mxu0
  %v191 = vpop.f32.mrb[0].mxu0
  %v192 = vadd.f32 0.0, %v191
  %v193 = vpop.f32.mrb[0].mxu0
  %194 = vmatprep.mubr.bf16.mxu0 0
  %195 = vmatmul.mubr.bf16.gmra.mrb[0].mxu0 %v84
  %v196 = vpop.f32.mrb[0].mxu0
  %v197 = vadd.f32 0.0, %v196
  %v198 = vpop.f32.mrb[0].mxu0
  %v199 = vpop.f32.mrb[0].mxu0
  %v200 = vadd.f32 0.0, %v199
  %v201 = vpop.f32.mrb[0].mxu0
  %202 = vmatprep.mubr.bf16.mxu0 0
  %203 = vmatmul.mubr.bf16.gmra.mrb[0].mxu0 %v85
  %v204 = vpop.f32.mrb[0].mxu0
  %v205 = vadd.f32 0.0, %v204
  %v206 = vpop.f32.mrb[0].mxu0
  %v207 = vpop.f32.mrb[0].mxu0
  %v208 = vadd.f32 0.0, %v207
  %v209 = vpop.f32.mrb[0].mxu0
  %210 = vmatprep.mubr.bf16.mxu0 0
  %211 = vmatmul.mubr.bf16.gmra.mrb[0].mxu0 %v86
  %v212 = vpop.f32.mrb[0].mxu0
  %v213 = vadd.f32 0.0, %v212
  %v214 = vpop.f32.mrb[0].mxu0
  %v215 = vpop.f32.mrb[0].mxu0
  %v216 = vadd.f32 0.0, %v215
  %v217 = vpop.f32.mrb[0].mxu0
  %218 = vmatprep.mubr.bf16.mxu0 0
  %219 = vmatmul.mubr.bf16.gmra.mrb[0].mxu0 %v87
  %v220 = vpop.f32.mrb[0].mxu0
  %v221 = vadd.f32 0.0, %v220
  %v222 = vpop.f32.mrb[0].mxu0
  %v223 = vpop.f32.mrb[0].mxu0
  %v224 = vadd.f32 0.0, %v223
  %v225 = vpop.f32.mrb[0].mxu0
  %226 = vmatprep.mubr.bf16.mxu0 0
  %227 = vmatmul.mubr.bf16.gmra.mrb[0].mxu0 %v88
  %v228 = vpop.f32.mrb[0].mxu0
  %v229 = vadd.f32 0.0, %v228
  %v230 = vpop.f32.mrb[0].mxu0
  %v231 = vpop.f32.mrb[0].mxu0
  %v232 = vadd.f32 0.0, %v231
  %v233 = vpop.f32.mrb[0].mxu0
  %234 = vmatprep.mubr.bf16.mxu0 0
  %235 = vmatmul.mubr.bf16.gmra.mrb[0].mxu0 %v89
  %v236 = vpop.f32.mrb[0].mxu0
  %v237 = vadd.f32 0.0, %v236
  %v238 = vpop.f32.mrb[0].mxu0
  %v239 = vpop.f32.mrb[0].mxu0
  %v240 = vadd.f32 0.0, %v239
  %v241 = vpop.f32.mrb[0].mxu0
  %242 = vdwg.mxu0
  %v243 = vld [vmem:[%s3] sm:$0xff]
  %v244 = vld [vmem:[%s3 + $0x8] sm:$0xff]
  %v245 = vld [vmem:[%s3 + $0x10] sm:$0xff]
  %v246 = vld [vmem:[%s3 + $0x18] sm:$0xff]
  %v247 = vld [vmem:[%s3 + $0x20] sm:$0xff]
  %v248 = vld [vmem:[%s3 + $0x28] sm:$0xff]
  %v249 = vld [vmem:[%s3 + $0x30] sm:$0xff]
  %v250 = vld [vmem:[%s3 + $0x38] sm:$0xff]
  %v251 = vld [vmem:[%s3 + $0x40] sm:$0xff]
  %v252 = vld [vmem:[%s3 + $0x48] sm:$0xff]
  %v253 = vld [vmem:[%s3 + $0x50] sm:$0xff]
  %v254 = vld [vmem:[%s3 + $0x58] sm:$0xff]
  %v255 = vld [vmem:[%s3 + $0x60] sm:$0xff]
  %v256 = vld [vmem:[%s3 + $0x68] sm:$0xff]
  %v257 = vld [vmem:[%s3 + $0x70] sm:$0xff]
  %v258 = vld [vmem:[%s3 + $0x78] sm:$0xff]
  %v259 = vld [vmem:[%s2] sm:$0xff]
  %v260 = vlaneseq
  %v261 = vshrl.u32 %v260, 7
  %v262 = vsub.s32 0, %v261
  %v263 = vrot.slane %v259, %v262
  %v264 = vmul.f32 %v181, %v263
  %v265 = vmul.f32 %v184, %v263
  %v266 = vmul.f32 %v189, %v263
  %v267 = vmul.f32 %v192, %v263
  %v268 = vmul.f32 %v197, %v263
  %v269 = vmul.f32 %v200, %v263
  %v270 = vmul.f32 %v205, %v263
  %v271 = vmul.f32 %v208, %v263
  %v272 = vmul.f32 %v213, %v263
  %v273 = vmul.f32 %v216, %v263
  %v274 = vmul.f32 %v221, %v263
  %v275 = vmul.f32 %v224, %v263
  %v276 = vmul.f32 %v229, %v263
  %v277 = vmul.f32 %v232, %v263
  %v278 = vmul.f32 %v237, %v263
  %v279 = vmul.f32 %v240, %v263
  %v280 = vlaneseq
  %v281 = vshrl.u32 %v280, 7
  %v282 = vsub.s32 1, %v281
  %v283 = vrot.slane %v259, %v282
  %v284 = vadd.f32 %v264, %v283
  %v285 = vadd.f32 %v265, %v283
  %v286 = vadd.f32 %v266, %v283
  %v287 = vadd.f32 %v267, %v283
  %v288 = vadd.f32 %v268, %v283
  %v289 = vadd.f32 %v269, %v283
  %v290 = vadd.f32 %v270, %v283
  %v291 = vadd.f32 %v271, %v283
  %v292 = vadd.f32 %v272, %v283
  %v293 = vadd.f32 %v273, %v283
  %v294 = vadd.f32 %v274, %v283
  %v295 = vadd.f32 %v275, %v283
  %v296 = vadd.f32 %v276, %v283
  %v297 = vadd.f32 %v277, %v283
  %v298 = vadd.f32 %v278, %v283
  %v299 = vadd.f32 %v279, %v283
  %vm300 = vcmp.ge.f32.partialorder %v284, 0.0
  %vm301 = vcmp.ge.f32.partialorder %v285, 0.0
  %vm302 = vcmp.ge.f32.partialorder %v286, 0.0
  %vm303 = vcmp.ge.f32.partialorder %v287, 0.0
  %vm304 = vcmp.ge.f32.partialorder %v288, 0.0
  %vm305 = vcmp.ge.f32.partialorder %v289, 0.0
  %vm306 = vcmp.ge.f32.partialorder %v290, 0.0
  %vm307 = vcmp.ge.f32.partialorder %v291, 0.0
  %vm308 = vcmp.ge.f32.partialorder %v292, 0.0
  %vm309 = vcmp.ge.f32.partialorder %v293, 0.0
  %vm310 = vcmp.ge.f32.partialorder %v294, 0.0
  %vm311 = vcmp.ge.f32.partialorder %v295, 0.0
  %vm312 = vcmp.ge.f32.partialorder %v296, 0.0
  %vm313 = vcmp.ge.f32.partialorder %v297, 0.0
  %vm314 = vcmp.ge.f32.partialorder %v298, 0.0
  %vm315 = vcmp.ge.f32.partialorder %v299, 0.0
  %v316 = vlaneseq
  %v317 = vshrl.u32 %v316, 7
  %v318 = vsub.s32 2, %v317
  %v319 = vrot.slane %v259, %v318
  %v320 = vmul.f32 %v319, %v284
  %v321 = vmul.f32 %v319, %v285
  %v322 = vmul.f32 %v319, %v286
  %v323 = vmul.f32 %v319, %v287
  %v324 = vmul.f32 %v319, %v288
  %v325 = vmul.f32 %v319, %v289
  %v326 = vmul.f32 %v319, %v290
  %v327 = vmul.f32 %v319, %v291
  %v328 = vmul.f32 %v319, %v292
  %v329 = vmul.f32 %v319, %v293
  %v330 = vmul.f32 %v319, %v294
  %v331 = vmul.f32 %v319, %v295
  %v332 = vmul.f32 %v319, %v296
  %v333 = vmul.f32 %v319, %v297
  %v334 = vmul.f32 %v319, %v298
  %v335 = vmul.f32 %v319, %v299
  %v336 = vsel %vm300, %v284, %v320
  %v337 = vsel %vm301, %v285, %v321
  %v338 = vsel %vm302, %v286, %v322
  %v339 = vsel %vm303, %v287, %v323
  %v340 = vsel %vm304, %v288, %v324
  %v341 = vsel %vm305, %v289, %v325
  %v342 = vsel %vm306, %v290, %v326
  %v343 = vsel %vm307, %v291, %v327
  %v344 = vsel %vm308, %v292, %v328
  %v345 = vsel %vm309, %v293, %v329
  %v346 = vsel %vm310, %v294, %v330
  %v347 = vsel %vm311, %v295, %v331
  %v348 = vsel %vm312, %v296, %v332
  %v349 = vsel %vm313, %v297, %v333
  %v350 = vsel %vm314, %v298, %v334
  %v351 = vsel %vm315, %v299, %v335
  %v352 = vadd.f32 %v243, %v336
  %v353 = vadd.f32 %v244, %v337
  %v354 = vadd.f32 %v245, %v338
  %v355 = vadd.f32 %v246, %v339
  %v356 = vadd.f32 %v247, %v340
  %v357 = vadd.f32 %v248, %v341
  %v358 = vadd.f32 %v249, %v342
  %v359 = vadd.f32 %v250, %v343
  %v360 = vadd.f32 %v251, %v344
  %v361 = vadd.f32 %v252, %v345
  %v362 = vadd.f32 %v253, %v346
  %v363 = vadd.f32 %v254, %v347
  %v364 = vadd.f32 %v255, %v348
  %v365 = vadd.f32 %v256, %v349
  %v366 = vadd.f32 %v257, %v350
  %v367 = vadd.f32 %v258, %v351
  %v368 = vmax.f32 %v352, 0.0
  %v369 = vmax.f32 %v353, 0.0
  %v370 = vmax.f32 %v354, 0.0
  %v371 = vmax.f32 %v355, 0.0
  %v372 = vmax.f32 %v356, 0.0
  %v373 = vmax.f32 %v357, 0.0
  %v374 = vmax.f32 %v358, 0.0
  %v375 = vmax.f32 %v359, 0.0
  %v376 = vmax.f32 %v360, 0.0
  %v377 = vmax.f32 %v361, 0.0
  %v378 = vmax.f32 %v362, 0.0
  %v379 = vmax.f32 %v363, 0.0
  %v380 = vmax.f32 %v364, 0.0
  %v381 = vmax.f32 %v365, 0.0
  %v382 = vmax.f32 %v366, 0.0
  %v383 = vmax.f32 %v367, 0.0
  %384 = vst [vmem:[%s4] sm:$0xff] %v368
  %385 = vst [vmem:[%s4 + $0x8] sm:$0xff] %v369
  %386 = vst [vmem:[%s4 + $0x10] sm:$0xff] %v370
  %387 = vst [vmem:[%s4 + $0x18] sm:$0xff] %v371
  %388 = vst [vmem:[%s4 + $0x20] sm:$0xff] %v372
  %389 = vst [vmem:[%s4 + $0x28] sm:$0xff] %v373
  %390 = vst [vmem:[%s4 + $0x30] sm:$0xff] %v374
  %391 = vst [vmem:[%s4 + $0x38] sm:$0xff] %v375
  %392 = vst [vmem:[%s4 + $0x40] sm:$0xff] %v376
  %393 = vst [vmem:[%s4 + $0x48] sm:$0xff] %v377
  %394 = vst [vmem:[%s4 + $0x50] sm:$0xff] %v378
  %395 = vst [vmem:[%s4 + $0x58] sm:$0xff] %v379
  %396 = vst [vmem:[%s4 + $0x60] sm:$0xff] %v380
  %397 = vst [vmem:[%s4 + $0x68] sm:$0xff] %v381
  %398 = vst [vmem:[%s4 + $0x70] sm:$0xff] %v382
  %399 = vst [vmem:[%s4 + $0x78] sm:$0xff] %v383
  // Predicated region
  $region18: #{enet_forward.92} parent=0 // pred_check
    _
  $region19: #{enet_forward.92} parent=0 // pred_check_branch
    %401 = sbr.rel (0) target = $region21
  $region20: #{enet_forward.92} parent=0 // pred_region
    _
  $region21: #{enet_forward.92} parent=0 // pred_fallthru
    _
  // Predicated region
  $region22: #{enet_forward.92} parent=0 // pred_check
    _
  $region23: #{enet_forward.92} parent=0 // pred_check_branch
    %403 = sbr.rel (0) target = $region25
  $region24: #{enet_forward.92} parent=0 // pred_region
    _
  $region25: #{enet_forward.92} parent=0 // pred_fallthru
    _

// kernel: enet_forward.105
$region0: #{enet_forward.105}
  #allocation0 [shape = 'u32[]', space=smem, size = 0x4, offset = 0x4, fixed_abs, tag = 'smem constant byte address 0x4 - core index']
  #allocation1 [shape = 'u32[144,128]{1,0:T(1,128)}', space=vmem, size = 0x12000, scoped, tag = 'internal scratch']
  %s0 = inlined_call_operand.vmem [shape: bf16[32,128], index: 0, kind: input, shape index: {}]
  %s1 = inlined_call_operand.vmem [shape: bf16[128,128], index: 1, kind: input, shape index: {}]
  %s2 = inlined_call_operand.vmem [shape: f32[8,128], index: 2, kind: input, shape index: {}]
  %s3 = inlined_call_operand.vmem [shape: f32[32,128], index: 3, kind: output, shape index: {}]
  %s4 = sld [smem:[#allocation0]]
  $region22: #{enet_forward.105} parent=0
    _
  %s6 = ssub.s32 1, %s4
  %s7 = scalar_select 0, %s6, %s4
  // Predicated region
  $region2: #{enet_forward.105} parent=0 // pred_check
    _
  $region3: #{enet_forward.105} parent=0 // pred_check_branch
    %9 = sbr.rel (0) target = $region5
  $region4: #{enet_forward.105} parent=0 // pred_region
    _
  $region5: #{enet_forward.105} parent=0 // pred_fallthru
    _
  // Predicated region
  $region6: #{enet_forward.105} parent=0 // pred_check
    _
  $region7: #{enet_forward.105} parent=0 // pred_check_branch
    %11 = sbr.rel (0) target = $region9
  $region8: #{enet_forward.105} parent=0 // pred_region
    _
  $region9: #{enet_forward.105} parent=0 // pred_fallthru
    _
  // Predicated region
  $region10: #{enet_forward.105} parent=0 // pred_check
    _
  $region11: #{enet_forward.105} parent=0 // pred_check_branch
    %13 = sbr.rel (0) target = $region13
  $region12: #{enet_forward.105} parent=0 // pred_region
    _
  $region13: #{enet_forward.105} parent=0 // pred_fallthru
    _
  %v15 = vld [vmem:[%s0] sm:$0xf]
  %v16 = vld [vmem:[%s0 + $0x4] sm:$0xf]
  %v17 = vld [vmem:[%s0 + $0x8] sm:$0xf]
  %v18 = vld [vmem:[%s0 + $0xc] sm:$0xf]
  %v19 = vld [vmem:[%s1] sm:$0xf]
  %v20 = vld [vmem:[%s1 + $0x4] sm:$0xf]
  %v21 = vld [vmem:[%s1 + $0x8] sm:$0xf]
  %v22 = vld [vmem:[%s1 + $0xc] sm:$0xf]
  %v23 = vld [vmem:[%s1 + $0x10] sm:$0xf]
  %v24 = vld [vmem:[%s1 + $0x14] sm:$0xf]
  %v25 = vld [vmem:[%s1 + $0x18] sm:$0xf]
  %v26 = vld [vmem:[%s1 + $0x1c] sm:$0xf]
  %v27 = vld [vmem:[%s1 + $0x20] sm:$0xf]
  %v28 = vld [vmem:[%s1 + $0x24] sm:$0xf]
  %v29 = vld [vmem:[%s1 + $0x28] sm:$0xf]
  %v30 = vld [vmem:[%s1 + $0x2c] sm:$0xf]
  %v31 = vld [vmem:[%s1 + $0x30] sm:$0xf]
  %v32 = vld [vmem:[%s1 + $0x34] sm:$0xf]
  %v33 = vld [vmem:[%s1 + $0x38] sm:$0xf]
  %v34 = vld [vmem:[%s1 + $0x3c] sm:$0xf]
  %v39 = vunpack.c.l.b16 %v15
  %v40 = vunpack.c.l.b16 %v16
  %v41 = vunpack.c.l.b16 %v17
  %v42 = vunpack.c.l.b16 %v18
  %v43 = vpack.c.b16 %v40, %v39
  %v44 = vpack.c.b16 %v42, %v41
  %v63 = vunpack.c.l.b16 %v19
  %v64 = vunpack.c.l.b16 %v20
  %v65 = vunpack.c.l.b16 %v21
  %v66 = vunpack.c.l.b16 %v22
  %v67 = vunpack.c.l.b16 %v23
  %v68 = vunpack.c.l.b16 %v24
  %v69 = vunpack.c.l.b16 %v25
  %v70 = vunpack.c.l.b16 %v26
  %v71 = vunpack.c.l.b16 %v27
  %v72 = vunpack.c.l.b16 %v28
  %v73 = vunpack.c.l.b16 %v29
  %v74 = vunpack.c.l.b16 %v30
  %v75 = vunpack.c.l.b16 %v31
  %v76 = vunpack.c.l.b16 %v32
  %v77 = vunpack.c.l.b16 %v33
  %v78 = vunpack.c.l.b16 %v34
  %v79 = vpack.c.b16 %v64, %v63
  %v80 = vpack.c.b16 %v66, %v65
  %v81 = vpack.c.b16 %v68, %v67
  %v82 = vpack.c.b16 %v70, %v69
  %v83 = vpack.c.b16 %v72, %v71
  %v84 = vpack.c.b16 %v74, %v73
  %v85 = vpack.c.b16 %v76, %v75
  %v86 = vpack.c.b16 %v78, %v77
  %95 = vmatprep.subr.bf16.mxu0 0
  %96 = vmatpush1.bf16.msra.mxu0 %v79
  %97 = vmatprep.subr.bf16.mxu0 0
  %98 = vmatpush1.bf16.msra.mxu0 %v80
  %99 = vmatprep.subr.bf16.mxu0 0
  %100 = vmatpush1.bf16.msra.mxu0 %v81
  %101 = vmatprep.subr.bf16.mxu0 0
  %102 = vmatpush1.bf16.msra.mxu0 %v82
  %103 = vmatprep.subr.bf16.mxu0 0
  %104 = vmatpush1.bf16.msra.mxu0 %v83
  %105 = vmatprep.subr.bf16.mxu0 0
  %106 = vmatpush1.bf16.msra.mxu0 %v84
  %107 = vmatprep.subr.bf16.mxu0 0
  %108 = vmatpush1.bf16.msra.mxu0 %v85
  %109 = vmatprep.subr.bf16.mxu0 0
  %110 = vmatpush1.bf16.msra.mxu0 %v86
  %111 = vmatprep.subr.bf16.mxu0 0
  %112 = vmatpush1.bf16.msra.mxu0 0
  %113 = vmatprep.subr.bf16.mxu0 0
  %114 = vmatpush1.bf16.msra.mxu0 0
  %115 = vmatprep.subr.bf16.mxu0 0
  %116 = vmatpush1.bf16.msra.mxu0 0
  %117 = vmatprep.subr.bf16.mxu0 0
  %118 = vmatpush1.bf16.msra.mxu0 0
  %119 = vmatprep.subr.bf16.mxu0 0
  %120 = vmatpush1.bf16.msra.mxu0 0
  %121 = vmatprep.subr.bf16.mxu0 0
  %122 = vmatpush1.bf16.msra.mxu0 0
  %123 = vmatprep.subr.bf16.mxu0 0
  %124 = vmatpush1.bf16.msra.mxu0 0
  %125 = vmatprep.subr.bf16.mxu0 0
  %126 = vmatpush1.bf16.msra.mxu0 0
  %127 = vmatprep.mubr.bf16.mxu0 0
  %128 = vmatmul.mubr.bf16.gmra.mrb[0].mxu0 %v43
  %v129 = vpop.f32.mrb[0].mxu0
  %v130 = vadd.f32 0.0, %v129
  %v131 = vpop.f32.mrb[0].mxu0
  %v132 = vpop.f32.mrb[0].mxu0
  %v133 = vadd.f32 0.0, %v132
  %v134 = vpop.f32.mrb[0].mxu0
  %135 = vmatprep.mubr.bf16.mxu0 0
  %136 = vmatmul.mubr.bf16.gmra.mrb[0].mxu0 %v44
  %v137 = vpop.f32.mrb[0].mxu0
  %v138 = vadd.f32 0.0, %v137
  %v139 = vpop.f32.mrb[0].mxu0
  %v140 = vpop.f32.mrb[0].mxu0
  %v141 = vadd.f32 0.0, %v140
  %v142 = vpop.f32.mrb[0].mxu0
  %143 = vdwg.mxu0
  %v144 = vld [vmem:[%s2] sm:$0xff]
  %v145 = vlaneseq
  %v146 = vshrl.u32 %v145, 7
  %v147 = vsub.s32 0, %v146
  %v148 = vrot.slane %v144, %v147
  %v149 = vmul.f32 %v130, %v148
  %v150 = vmul.f32 %v133, %v148
  %v151 = vmul.f32 %v138, %v148
  %v152 = vmul.f32 %v141, %v148
  %v153 = vlaneseq
  %v154 = vshrl.u32 %v153, 7
  %v155 = vsub.s32 1, %v154
  %v156 = vrot.slane %v144, %v155
  %v157 = vadd.f32 %v149, %v156
  %v158 = vadd.f32 %v150, %v156
  %v159 = vadd.f32 %v151, %v156
  %v160 = vadd.f32 %v152, %v156
  %vm161 = vcmp.ge.f32.partialorder %v157, 0.0
  %vm162 = vcmp.ge.f32.partialorder %v158, 0.0
  %vm163 = vcmp.ge.f32.partialorder %v159, 0.0
  %vm164 = vcmp.ge.f32.partialorder %v160, 0.0
  %v165 = vlaneseq
  %v166 = vshrl.u32 %v165, 7
  %v167 = vsub.s32 2, %v166
  %v168 = vrot.slane %v144, %v167
  %v169 = vmul.f32 %v168, %v157
  %v170 = vmul.f32 %v168, %v158
  %v171 = vmul.f32 %v168, %v159
  %v172 = vmul.f32 %v168, %v160
  %v173 = vsel %vm161, %v157, %v169
  %v174 = vsel %vm162, %v158, %v170
  %v175 = vsel %vm163, %v159, %v171
  %v176 = vsel %vm164, %v160, %v172
  %177 = vst [vmem:[%s3] sm:$0xff] %v173
  %178 = vst [vmem:[%s3 + $0x8] sm:$0xff] %v174
  %179 = vst [vmem:[%s3 + $0x10] sm:$0xff] %v175
  %180 = vst [vmem:[%s3 + $0x18] sm:$0xff] %v176
  // Predicated region
  $region14: #{enet_forward.105} parent=0 // pred_check
    _
  $region15: #{enet_forward.105} parent=0 // pred_check_branch
    %182 = sbr.rel (0) target = $region17
  $region16: #{enet_forward.105} parent=0 // pred_region
    _
  $region17: #{enet_forward.105} parent=0 // pred_fallthru
    _
  // Predicated region
  $region18: #{enet_forward.105} parent=0 // pred_check
    _
  $region19: #{enet_forward.105} parent=0 // pred_check_branch
    %184 = sbr.rel (0) target = $region21
  $region20: #{enet_forward.105} parent=0 // pred_region
    _
  $region21: #{enet_forward.105} parent=0 // pred_fallthru
    _

// kernel: enet_forward.106
$region0: #{enet_forward.106}
  #allocation0 [shape = 'u32[]', space=smem, size = 0x4, offset = 0x4, fixed_abs, tag = 'smem constant byte address 0x4 - core index']
  #allocation1 [shape = 'u32[144,128]{1,0:T(1,128)}', space=vmem, size = 0x12000, scoped, tag = 'internal scratch']
  %s0 = inlined_call_operand.vmem [shape: bf16[32,256], index: 0, kind: input, shape index: {}]
  %s1 = inlined_call_operand.vmem [shape: bf16[256,128], index: 1, kind: input, shape index: {}]
  %s2 = inlined_call_operand.vmem [shape: f32[8,128], index: 2, kind: input, shape index: {}]
  %s3 = inlined_call_operand.vmem [shape: f32[32,128], index: 3, kind: output, shape index: {}]
  %s4 = sld [smem:[#allocation0]]
  $region22: #{enet_forward.106} parent=0
    _
  %s6 = ssub.s32 1, %s4
  %s7 = scalar_select 0, %s6, %s4
  // Predicated region
  $region2: #{enet_forward.106} parent=0 // pred_check
    _
  $region3: #{enet_forward.106} parent=0 // pred_check_branch
    %9 = sbr.rel (0) target = $region5
  $region4: #{enet_forward.106} parent=0 // pred_region
    _
  $region5: #{enet_forward.106} parent=0 // pred_fallthru
    _
  // Predicated region
  $region6: #{enet_forward.106} parent=0 // pred_check
    _
  $region7: #{enet_forward.106} parent=0 // pred_check_branch
    %11 = sbr.rel (0) target = $region9
  $region8: #{enet_forward.106} parent=0 // pred_region
    _
  $region9: #{enet_forward.106} parent=0 // pred_fallthru
    _
  // Predicated region
  $region10: #{enet_forward.106} parent=0 // pred_check
    _
  $region11: #{enet_forward.106} parent=0 // pred_check_branch
    %13 = sbr.rel (0) target = $region13
  $region12: #{enet_forward.106} parent=0 // pred_region
    _
  $region13: #{enet_forward.106} parent=0 // pred_fallthru
    _
  %v15 = vld [vmem:[%s0] sm:$0xff]
  %v16 = vld [vmem:[%s0 + $0x8] sm:$0xff]
  %v17 = vld [vmem:[%s0 + $0x10] sm:$0xff]
  %v18 = vld [vmem:[%s0 + $0x18] sm:$0xff]
  %v19 = vld [vmem:[%s1] sm:$0xf]
  %v20 = vld [vmem:[%s1 + $0x4] sm:$0xf]
  %v21 = vld [vmem:[%s1 + $0x8] sm:$0xf]
  %v22 = vld [vmem:[%s1 + $0xc] sm:$0xf]
  %v23 = vld [vmem:[%s1 + $0x10] sm:$0xf]
  %v24 = vld [vmem:[%s1 + $0x14] sm:$0xf]
  %v25 = vld [vmem:[%s1 + $0x18] sm:$0xf]
  %v26 = vld [vmem:[%s1 + $0x1c] sm:$0xf]
  %v27 = vld [vmem:[%s1 + $0x20] sm:$0xf]
  %v28 = vld [vmem:[%s1 + $0x24] sm:$0xf]
  %v29 = vld [vmem:[%s1 + $0x28] sm:$0xf]
  %v30 = vld [vmem:[%s1 + $0x2c] sm:$0xf]
  %v31 = vld [vmem:[%s1 + $0x30] sm:$0xf]
  %v32 = vld [vmem:[%s1 + $0x34] sm:$0xf]
  %v33 = vld [vmem:[%s1 + $0x38] sm:$0xf]
  %v34 = vld [vmem:[%s1 + $0x3c] sm:$0xf]
  %v35 = vld [vmem:[%s1 + $0x40] sm:$0xf]
  %v36 = vld [vmem:[%s1 + $0x44] sm:$0xf]
  %v37 = vld [vmem:[%s1 + $0x48] sm:$0xf]
  %v38 = vld [vmem:[%s1 + $0x4c] sm:$0xf]
  %v39 = vld [vmem:[%s1 + $0x50] sm:$0xf]
  %v40 = vld [vmem:[%s1 + $0x54] sm:$0xf]
  %v41 = vld [vmem:[%s1 + $0x58] sm:$0xf]
  %v42 = vld [vmem:[%s1 + $0x5c] sm:$0xf]
  %v43 = vld [vmem:[%s1 + $0x60] sm:$0xf]
  %v44 = vld [vmem:[%s1 + $0x64] sm:$0xf]
  %v45 = vld [vmem:[%s1 + $0x68] sm:$0xf]
  %v46 = vld [vmem:[%s1 + $0x6c] sm:$0xf]
  %v47 = vld [vmem:[%s1 + $0x70] sm:$0xf]
  %v48 = vld [vmem:[%s1 + $0x74] sm:$0xf]
  %v49 = vld [vmem:[%s1 + $0x78] sm:$0xf]
  %v50 = vld [vmem:[%s1 + $0x7c] sm:$0xf]
  %v55 = vunpack.c.l.b16 %v15
  %v56 = vunpack.c.h.b16 %v15
  %v57 = vunpack.c.l.b16 %v16
  %v58 = vunpack.c.h.b16 %v16
  %v59 = vunpack.c.l.b16 %v17
  %v60 = vunpack.c.h.b16 %v17
  %v61 = vunpack.c.l.b16 %v18
  %v62 = vunpack.c.h.b16 %v18
  %v63 = vpack.c.b16 %v57, %v55
  %v64 = vpack.c.b16 %v58, %v56
  %v65 = vpack.c.b16 %v61, %v59
  %v66 = vpack.c.b16 %v62, %v60
  %v103 = vunpack.c.l.b16 %v19
  %v104 = vunpack.c.l.b16 %v20
  %v105 = vunpack.c.l.b16 %v21
  %v106 = vunpack.c.l.b16 %v22
  %v107 = vunpack.c.l.b16 %v23
  %v108 = vunpack.c.l.b16 %v24
  %v109 = vunpack.c.l.b16 %v25
  %v110 = vunpack.c.l.b16 %v26
  %v111 = vunpack.c.l.b16 %v27
  %v112 = vunpack.c.l.b16 %v28
  %v113 = vunpack.c.l.b16 %v29
  %v114 = vunpack.c.l.b16 %v30
  %v115 = vunpack.c.l.b16 %v31
  %v116 = vunpack.c.l.b16 %v32
  %v117 = vunpack.c.l.b16 %v33
  %v118 = vunpack.c.l.b16 %v34
  %v119 = vunpack.c.l.b16 %v35
  %v120 = vunpack.c.l.b16 %v36
  %v121 = vunpack.c.l.b16 %v37
  %v122 = vunpack.c.l.b16 %v38
  %v123 = vunpack.c.l.b16 %v39
  %v124 = vunpack.c.l.b16 %v40
  %v125 = vunpack.c.l.b16 %v41
  %v126 = vunpack.c.l.b16 %v42
  %v127 = vunpack.c.l.b16 %v43
  %v128 = vunpack.c.l.b16 %v44
  %v129 = vunpack.c.l.b16 %v45
  %v130 = vunpack.c.l.b16 %v46
  %v131 = vunpack.c.l.b16 %v47
  %v132 = vunpack.c.l.b16 %v48
  %v133 = vunpack.c.l.b16 %v49
  %v134 = vunpack.c.l.b16 %v50
  %v135 = vpack.c.b16 %v104, %v103
  %v136 = vpack.c.b16 %v106, %v105
  %v137 = vpack.c.b16 %v108, %v107
  %v138 = vpack.c.b16 %v110, %v109
  %v139 = vpack.c.b16 %v112, %v111
  %v140 = vpack.c.b16 %v114, %v113
  %v141 = vpack.c.b16 %v116, %v115
  %v142 = vpack.c.b16 %v118, %v117
  %v143 = vpack.c.b16 %v120, %v119
  %v144 = vpack.c.b16 %v122, %v121
  %v145 = vpack.c.b16 %v124, %v123
  %v146 = vpack.c.b16 %v126, %v125
  %v147 = vpack.c.b16 %v128, %v127
  %v148 = vpack.c.b16 %v130, %v129
  %v149 = vpack.c.b16 %v132, %v131
  %v150 = vpack.c.b16 %v134, %v133
  %167 = vmatprep.subr.bf16.mxu0 0
  %168 = vmatpush1.bf16.msra.mxu0 %v135
  %169 = vmatprep.subr.bf16.mxu0 0
  %170 = vmatpush1.bf16.msra.mxu0 %v136
  %171 = vmatprep.subr.bf16.mxu0 0
  %172 = vmatpush1.bf16.msra.mxu0 %v137
  %173 = vmatprep.subr.bf16.mxu0 0
  %174 = vmatpush1.bf16.msra.mxu0 %v138
  %175 = vmatprep.subr.bf16.mxu0 0
  %176 = vmatpush1.bf16.msra.mxu0 %v139
  %177 = vmatprep.subr.bf16.mxu0 0
  %178 = vmatpush1.bf16.msra.mxu0 %v140
  %179 = vmatprep.subr.bf16.mxu0 0
  %180 = vmatpush1.bf16.msra.mxu0 %v141
  %181 = vmatprep.subr.bf16.mxu0 0
  %182 = vmatpush1.bf16.msra.mxu0 %v142
  %183 = vmatprep.subr.bf16.mxu0 0
  %184 = vmatpush1.bf16.msra.mxu0 %v143
  %185 = vmatprep.subr.bf16.mxu0 0
  %186 = vmatpush1.bf16.msra.mxu0 %v144
  %187 = vmatprep.subr.bf16.mxu0 0
  %188 = vmatpush1.bf16.msra.mxu0 %v145
  %189 = vmatprep.subr.bf16.mxu0 0
  %190 = vmatpush1.bf16.msra.mxu0 %v146
  %191 = vmatprep.subr.bf16.mxu0 0
  %192 = vmatpush1.bf16.msra.mxu0 %v147
  %193 = vmatprep.subr.bf16.mxu0 0
  %194 = vmatpush1.bf16.msra.mxu0 %v148
  %195 = vmatprep.subr.bf16.mxu0 0
  %196 = vmatpush1.bf16.msra.mxu0 %v149
  %197 = vmatprep.subr.bf16.mxu0 0
  %198 = vmatpush1.bf16.msra.mxu0 %v150
  %199 = vmatprep.mubr.bf16.mxu0 %v64
  %200 = vmatmul.mubr.bf16.gmra.mrb[0].mxu0 %v63
  %v201 = vpop.f32.mrb[0].mxu0
  %v202 = vadd.f32 0.0, %v201
  %v203 = vpop.f32.mrb[0].mxu0
  %v204 = vpop.f32.mrb[0].mxu0
  %v205 = vadd.f32 0.0, %v204
  %v206 = vpop.f32.mrb[0].mxu0
  %207 = vmatprep.mubr.bf16.mxu0 %v66
  %208 = vmatmul.mubr.bf16.gmra.mrb[0].mxu0 %v65
  %v209 = vpop.f32.mrb[0].mxu0
  %v210 = vadd.f32 0.0, %v209
  %v211 = vpop.f32.mrb[0].mxu0
  %v212 = vpop.f32.mrb[0].mxu0
  %v213 = vadd.f32 0.0, %v212
  %v214 = vpop.f32.mrb[0].mxu0
  %215 = vdwg.mxu0
  %v216 = vld [vmem:[%s2] sm:$0xff]
  %v217 = vlaneseq
  %v218 = vshrl.u32 %v217, 7
  %v219 = vsub.s32 0, %v218
  %v220 = vrot.slane %v216, %v219
  %v221 = vmul.f32 %v202, %v220
  %v222 = vmul.f32 %v205, %v220
  %v223 = vmul.f32 %v210, %v220
  %v224 = vmul.f32 %v213, %v220
  %v225 = vlaneseq
  %v226 = vshrl.u32 %v225, 7
  %v227 = vsub.s32 1, %v226
  %v228 = vrot.slane %v216, %v227
  %v229 = vadd.f32 %v221, %v228
  %v230 = vadd.f32 %v222, %v228
  %v231 = vadd.f32 %v223, %v228
  %v232 = vadd.f32 %v224, %v228
  %vm233 = vcmp.ge.f32.partialorder %v229, 0.0
  %vm234 = vcmp.ge.f32.partialorder %v230, 0.0
  %vm235 = vcmp.ge.f32.partialorder %v231, 0.0
  %vm236 = vcmp.ge.f32.partialorder %v232, 0.0
  %v237 = vlaneseq
  %v238 = vshrl.u32 %v237, 7
  %v239 = vsub.s32 2, %v238
  %v240 = vrot.slane %v216, %v239
  %v241 = vmul.f32 %v240, %v229
  %v242 = vmul.f32 %v240, %v230
  %v243 = vmul.f32 %v240, %v231
  %v244 = vmul.f32 %v240, %v232
  %v245 = vsel %vm233, %v229, %v241
  %v246 = vsel %vm234, %v230, %v242
  %v247 = vsel %vm235, %v231, %v243
  %v248 = vsel %vm236, %v232, %v244
  %249 = vst [vmem:[%s3] sm:$0xff] %v245
  %250 = vst [vmem:[%s3 + $0x8] sm:$0xff] %v246
  %251 = vst [vmem:[%s3 + $0x10] sm:$0xff] %v247
  %252 = vst [vmem:[%s3 + $0x18] sm:$0xff] %v248
  // Predicated region
  $region14: #{enet_forward.106} parent=0 // pred_check
    _
  $region15: #{enet_forward.106} parent=0 // pred_check_branch
    %254 = sbr.rel (0) target = $region17
  $region16: #{enet_forward.106} parent=0 // pred_region
    _
  $region17: #{enet_forward.106} parent=0 // pred_fallthru
    _
  // Predicated region
  $region18: #{enet_forward.106} parent=0 // pred_check
    _
  $region19: #{enet_forward.106} parent=0 // pred_check_branch
    %256 = sbr.rel (0) target = $region21
  $region20: #{enet_forward.106} parent=0 // pred_region
    _
  $region21: #{enet_forward.106} parent=0 // pred_fallthru
    _

// kernel: enet_forward.107
$region0: #{enet_forward.107}
  #allocation0 [shape = 'u32[]', space=smem, size = 0x4, offset = 0x4, fixed_abs, tag = 'smem constant byte address 0x4 - core index']
  #allocation1 [shape = 'u32[144,128]{1,0:T(1,128)}', space=vmem, size = 0x12000, scoped, tag = 'internal scratch']
  %s0 = inlined_call_operand.vmem [shape: bf16[32,128], index: 0, kind: input, shape index: {}]
  %s1 = inlined_call_operand.vmem [shape: bf16[128,128], index: 1, kind: input, shape index: {}]
  %s2 = inlined_call_operand.vmem [shape: f32[8,128], index: 2, kind: input, shape index: {}]
  %s3 = inlined_call_operand.vmem [shape: f32[32,128], index: 3, kind: input, shape index: {}]
  %s4 = inlined_call_operand.vmem [shape: f32[32,128], index: 4, kind: output, shape index: {}]
  %s5 = sld [smem:[#allocation0]]
  $region26: #{enet_forward.107} parent=0
    _
  %s7 = ssub.s32 1, %s5
  %s8 = scalar_select 0, %s7, %s5
  // Predicated region
  $region2: #{enet_forward.107} parent=0 // pred_check
    _
  $region3: #{enet_forward.107} parent=0 // pred_check_branch
    %10 = sbr.rel (0) target = $region5
  $region4: #{enet_forward.107} parent=0 // pred_region
    _
  $region5: #{enet_forward.107} parent=0 // pred_fallthru
    _
  // Predicated region
  $region6: #{enet_forward.107} parent=0 // pred_check
    _
  $region7: #{enet_forward.107} parent=0 // pred_check_branch
    %12 = sbr.rel (0) target = $region9
  $region8: #{enet_forward.107} parent=0 // pred_region
    _
  $region9: #{enet_forward.107} parent=0 // pred_fallthru
    _
  // Predicated region
  $region10: #{enet_forward.107} parent=0 // pred_check
    _
  $region11: #{enet_forward.107} parent=0 // pred_check_branch
    %14 = sbr.rel (0) target = $region13
  $region12: #{enet_forward.107} parent=0 // pred_region
    _
  $region13: #{enet_forward.107} parent=0 // pred_fallthru
    _
  // Predicated region
  $region14: #{enet_forward.107} parent=0 // pred_check
    _
  $region15: #{enet_forward.107} parent=0 // pred_check_branch
    %16 = sbr.rel (0) target = $region17
  $region16: #{enet_forward.107} parent=0 // pred_region
    _
  $region17: #{enet_forward.107} parent=0 // pred_fallthru
    _
  %v18 = vld [vmem:[%s0] sm:$0xf]
  %v19 = vld [vmem:[%s0 + $0x4] sm:$0xf]
  %v20 = vld [vmem:[%s0 + $0x8] sm:$0xf]
  %v21 = vld [vmem:[%s0 + $0xc] sm:$0xf]
  %v22 = vld [vmem:[%s1] sm:$0xf]
  %v23 = vld [vmem:[%s1 + $0x4] sm:$0xf]
  %v24 = vld [vmem:[%s1 + $0x8] sm:$0xf]
  %v25 = vld [vmem:[%s1 + $0xc] sm:$0xf]
  %v26 = vld [vmem:[%s1 + $0x10] sm:$0xf]
  %v27 = vld [vmem:[%s1 + $0x14] sm:$0xf]
  %v28 = vld [vmem:[%s1 + $0x18] sm:$0xf]
  %v29 = vld [vmem:[%s1 + $0x1c] sm:$0xf]
  %v30 = vld [vmem:[%s1 + $0x20] sm:$0xf]
  %v31 = vld [vmem:[%s1 + $0x24] sm:$0xf]
  %v32 = vld [vmem:[%s1 + $0x28] sm:$0xf]
  %v33 = vld [vmem:[%s1 + $0x2c] sm:$0xf]
  %v34 = vld [vmem:[%s1 + $0x30] sm:$0xf]
  %v35 = vld [vmem:[%s1 + $0x34] sm:$0xf]
  %v36 = vld [vmem:[%s1 + $0x38] sm:$0xf]
  %v37 = vld [vmem:[%s1 + $0x3c] sm:$0xf]
  %v42 = vunpack.c.l.b16 %v18
  %v43 = vunpack.c.l.b16 %v19
  %v44 = vunpack.c.l.b16 %v20
  %v45 = vunpack.c.l.b16 %v21
  %v46 = vpack.c.b16 %v43, %v42
  %v47 = vpack.c.b16 %v45, %v44
  %v66 = vunpack.c.l.b16 %v22
  %v67 = vunpack.c.l.b16 %v23
  %v68 = vunpack.c.l.b16 %v24
  %v69 = vunpack.c.l.b16 %v25
  %v70 = vunpack.c.l.b16 %v26
  %v71 = vunpack.c.l.b16 %v27
  %v72 = vunpack.c.l.b16 %v28
  %v73 = vunpack.c.l.b16 %v29
  %v74 = vunpack.c.l.b16 %v30
  %v75 = vunpack.c.l.b16 %v31
  %v76 = vunpack.c.l.b16 %v32
  %v77 = vunpack.c.l.b16 %v33
  %v78 = vunpack.c.l.b16 %v34
  %v79 = vunpack.c.l.b16 %v35
  %v80 = vunpack.c.l.b16 %v36
  %v81 = vunpack.c.l.b16 %v37
  %v82 = vpack.c.b16 %v67, %v66
  %v83 = vpack.c.b16 %v69, %v68
  %v84 = vpack.c.b16 %v71, %v70
  %v85 = vpack.c.b16 %v73, %v72
  %v86 = vpack.c.b16 %v75, %v74
  %v87 = vpack.c.b16 %v77, %v76
  %v88 = vpack.c.b16 %v79, %v78
  %v89 = vpack.c.b16 %v81, %v80
  %98 = vmatprep.subr.bf16.mxu0 0
  %99 = vmatpush1.bf16.msra.mxu0 %v82
  %100 = vmatprep.subr.bf16.mxu0 0
  %101 = vmatpush1.bf16.msra.mxu0 %v83
  %102 = vmatprep.subr.bf16.mxu0 0
  %103 = vmatpush1.bf16.msra.mxu0 %v84
  %104 = vmatprep.subr.bf16.mxu0 0
  %105 = vmatpush1.bf16.msra.mxu0 %v85
  %106 = vmatprep.subr.bf16.mxu0 0
  %107 = vmatpush1.bf16.msra.mxu0 %v86
  %108 = vmatprep.subr.bf16.mxu0 0
  %109 = vmatpush1.bf16.msra.mxu0 %v87
  %110 = vmatprep.subr.bf16.mxu0 0
  %111 = vmatpush1.bf16.msra.mxu0 %v88
  %112 = vmatprep.subr.bf16.mxu0 0
  %113 = vmatpush1.bf16.msra.mxu0 %v89
  %114 = vmatprep.subr.bf16.mxu0 0
  %115 = vmatpush1.bf16.msra.mxu0 0
  %116 = vmatprep.subr.bf16.mxu0 0
  %117 = vmatpush1.bf16.msra.mxu0 0
  %118 = vmatprep.subr.bf16.mxu0 0
  %119 = vmatpush1.bf16.msra.mxu0 0
  %120 = vmatprep.subr.bf16.mxu0 0
  %121 = vmatpush1.bf16.msra.mxu0 0
  %122 = vmatprep.subr.bf16.mxu0 0
  %123 = vmatpush1.bf16.msra.mxu0 0
  %124 = vmatprep.subr.bf16.mxu0 0
  %125 = vmatpush1.bf16.msra.mxu0 0
  %126 = vmatprep.subr.bf16.mxu0 0
  %127 = vmatpush1.bf16.msra.mxu0 0
  %128 = vmatprep.subr.bf16.mxu0 0
  %129 = vmatpush1.bf16.msra.mxu0 0
  %130 = vmatprep.mubr.bf16.mxu0 0
  %131 = vmatmul.mubr.bf16.gmra.mrb[0].mxu0 %v46
  %v132 = vpop.f32.mrb[0].mxu0
  %v133 = vadd.f32 0.0, %v132
  %v134 = vpop.f32.mrb[0].mxu0
  %v135 = vpop.f32.mrb[0].mxu0
  %v136 = vadd.f32 0.0, %v135
  %v137 = vpop.f32.mrb[0].mxu0
  %138 = vmatprep.mubr.bf16.mxu0 0
  %139 = vmatmul.mubr.bf16.gmra.mrb[0].mxu0 %v47
  %v140 = vpop.f32.mrb[0].mxu0
  %v141 = vadd.f32 0.0, %v140
  %v142 = vpop.f32.mrb[0].mxu0
  %v143 = vpop.f32.mrb[0].mxu0
  %v144 = vadd.f32 0.0, %v143
  %v145 = vpop.f32.mrb[0].mxu0
  %146 = vdwg.mxu0
  %v147 = vld [vmem:[%s3] sm:$0xff]
  %v148 = vld [vmem:[%s3 + $0x8] sm:$0xff]
  %v149 = vld [vmem:[%s3 + $0x10] sm:$0xff]
  %v150 = vld [vmem:[%s3 + $0x18] sm:$0xff]
  %v151 = vld [vmem:[%s2] sm:$0xff]
  %v152 = vlaneseq
  %v153 = vshrl.u32 %v152, 7
  %v154 = vsub.s32 0, %v153
  %v155 = vrot.slane %v151, %v154
  %v156 = vmul.f32 %v133, %v155
  %v157 = vmul.f32 %v136, %v155
  %v158 = vmul.f32 %v141, %v155
  %v159 = vmul.f32 %v144, %v155
  %v160 = vlaneseq
  %v161 = vshrl.u32 %v160, 7
  %v162 = vsub.s32 1, %v161
  %v163 = vrot.slane %v151, %v162
  %v164 = vadd.f32 %v156, %v163
  %v165 = vadd.f32 %v157, %v163
  %v166 = vadd.f32 %v158, %v163
  %v167 = vadd.f32 %v159, %v163
  %vm168 = vcmp.ge.f32.partialorder %v164, 0.0
  %vm169 = vcmp.ge.f32.partialorder %v165, 0.0
  %vm170 = vcmp.ge.f32.partialorder %v166, 0.0
  %vm171 = vcmp.ge.f32.partialorder %v167, 0.0
  %v172 = vlaneseq
  %v173 = vshrl.u32 %v172, 7
  %v174 = vsub.s32 2, %v173
  %v175 = vrot.slane %v151, %v174
  %v176 = vmul.f32 %v175, %v164
  %v177 = vmul.f32 %v175, %v165
  %v178 = vmul.f32 %v175, %v166
  %v179 = vmul.f32 %v175, %v167
  %v180 = vsel %vm168, %v164, %v176
  %v181 = vsel %vm169, %v165, %v177
  %v182 = vsel %vm170, %v166, %v178
  %v183 = vsel %vm171, %v167, %v179
  %v184 = vadd.f32 %v147, %v180
  %v185 = vadd.f32 %v148, %v181
  %v186 = vadd.f32 %v149, %v182
  %v187 = vadd.f32 %v150, %v183
  %v188 = vmax.f32 %v184, 0.0
  %v189 = vmax.f32 %v185, 0.0
  %v190 = vmax.f32 %v186, 0.0
  %v191 = vmax.f32 %v187, 0.0
  %192 = vst [vmem:[%s4] sm:$0xff] %v188
  %193 = vst [vmem:[%s4 + $0x8] sm:$0xff] %v189
  %194 = vst [vmem:[%s4 + $0x10] sm:$0xff] %v190
  %195 = vst [vmem:[%s4 + $0x18] sm:$0xff] %v191
  // Predicated region
  $region18: #{enet_forward.107} parent=0 // pred_check
    _
  $region19: #{enet_forward.107} parent=0 // pred_check_branch
    %197 = sbr.rel (0) target = $region21
  $region20: #{enet_forward.107} parent=0 // pred_region
    _
  $region21: #{enet_forward.107} parent=0 // pred_fallthru
    _
  // Predicated region
  $region22: #{enet_forward.107} parent=0 // pred_check
    _
  $region23: #{enet_forward.107} parent=0 // pred_check_branch
    %199 = sbr.rel (0) target = $region25
  $region24: #{enet_forward.107} parent=0 // pred_region
    _
  $region25: #{enet_forward.107} parent=0 // pred_fallthru
    _

// kernel: tile.38
$region0: #{tile.38}
  #allocation0 [shape = 's32[1]{0}', space=sflag, size = 0x4, scoped, tag = 'scoped memory for tile.38']
  %s0 = inlined_call_operand.vmem [shape: f32[8], index: 0, kind: input, shape index: {}]
  %s1 = inlined_call_operand.vmem [shape: f32[4,8], index: 1, kind: output, shape index: {}]
  // Predicated region
  $region2: #{tile.38} parent=0 // pred_check
    _
  $region3: #{tile.38} parent=0 // pred_check_branch
    %3 = sbr.rel (0) target = $region5
  $region4: #{tile.38} parent=0 // pred_region
    _
  $region5: #{tile.38} parent=0 // pred_fallthru
    _
  %v4 = vld [vmem:[%s0] ss:$0 sm:$0xff]
  %5 = vst [vmem:[%s1] sm:$0xf] %v4

// kernel: tile.53
$region0: #{tile.53}
  #allocation0 [shape = 's32[1]{0}', space=sflag, size = 0x4, scoped, tag = 'scoped memory for tile.53']
  %s0 = inlined_call_operand.vmem [shape: f32[4], index: 0, kind: input, shape index: {}]
  %s1 = inlined_call_operand.vmem [shape: f32[4,4], index: 1, kind: output, shape index: {}]
  // Predicated region
  $region2: #{tile.53} parent=0 // pred_check
    _
  $region3: #{tile.53} parent=0 // pred_check_branch
    %3 = sbr.rel (0) target = $region5
  $region4: #{tile.53} parent=0 // pred_region
    _
  $region5: #{tile.53} parent=0 // pred_fallthru
    _
  %v4 = vld [vmem:[%s0] ss:$0 sm:$0xff]
  %5 = vst [vmem:[%s1] sm:$0xf] %v4

// kernel: enet_forward.173
$region0: #{enet_forward.173}
  #allocation0 [shape = 'u32[]', space=smem, size = 0x4, offset = 0x4, fixed_abs, tag = 'smem constant byte address 0x4 - core index']
  #allocation1 [shape = 'u32[144,128]{1,0:T(1,128)}', space=vmem, size = 0x12000, scoped, tag = 'internal scratch']
  %s0 = inlined_call_operand.vmem [shape: bf16[512,128], index: 0, kind: input, shape index: {}]
  %s1 = inlined_call_operand.vmem [shape: bf16[128,128], index: 1, kind: input, shape index: {}]
  %s2 = inlined_call_operand.vmem [shape: f32[8,128], index: 2, kind: input, shape index: {}]
  %s3 = inlined_call_operand.vmem [shape: f32[512,128], index: 3, kind: input, shape index: {}]
  %s4 = inlined_call_operand.vmem [shape: f32[512,128], index: 4, kind: output, shape index: {}]
  %s5 = sld [smem:[#allocation0]]
  $region49: #{enet_forward.173} parent=0
    _
  %s7 = ssub.s32 1, %s5
  %s8 = scalar_select 0, %s7, %s5
  loop: start=0, step=1, limit=4
  $region2: #{enet_forward.173} parent=0 // loop_pre_header
    _
  $region3: #{enet_forward.173} parent=0 // loop_header
    %s10 = sphi 0, %s14
    %p11 = scmp.ge.s32.totalorder %s10, 4
    %s17 = sphi 0, %s29
    %s18 = sphi 0, %s25
    %s19 = sphi 0, %s17
    %s20 = sphi 0, %s18
    %s21 = sphi 0, %s19
    %s22 = sphi 0, %s20
    %s32 = sphi 0, %s34
    %s35 = sphi 0, %s32
    %s36 = sphi 0, %s35
    %s52 = sphi 0, %s36
    %s58 = sphi 0, %s60
    %s61 = sphi 0, %s58
    %s62 = sphi 0, %s61
    %s78 = sphi 0, %s62
    %s84 = sphi 0, %s86
    %s87 = sphi 0, %s84
    %s88 = sphi 0, %s87
    %s104 = sphi 0, %s88
    %s112 = sphi 0, %s114
    %s115 = sphi 0, %s112
    %s116 = sphi 0, %s115
    %s132 = sphi 0, %s116
    %s140 = sphi 0, %s142
    %s143 = sphi 0, %s140
    %s144 = sphi 0, %s143
    %s160 = sphi 0, %s144
  $region4: #{enet_forward.173} parent=0 // loop_header_branch
    %13 = sbr.rel (%p11) target = $region8
  $region5: #{enet_forward.173} parent=0 // loop_body
    %s15 = ssub.s32 %s10, 1
    %s16 = ssub.s32 %s10, 2
    %s23 = sadd.s32 1, %s18
    %p24 = scmp.ge.s32.totalorder %s23, 1
    %s25 = scalar_select %p24, 0, %s23
    %s26 = sadd.s32 1, %s17
    %s27 = scalar_select %p24, %s26, %s17
    %p28 = scmp.ge.s32.totalorder %s27, 2
    %s29 = scalar_select %p28, 0, %s27
    %s30 = ssub.s32 %s17, %s29
    %p31 = scmp.eq.s32.totalorder %s30, 0
    %s33 = sadd.s32 %s32, 1
    %s34 = scalar_select %p31, %s32, %s33
    %p37 = pneg %p31
    %p38 = scmp.eq.s32.totalorder %s10, 1
    %p39 = por %p37, %p38
    %p40 = scmp.ne.s32.totalorder %s32, %s35
    %p41 = scmp.eq.s32.totalorder %s10, 0
    %p42 = por %p40, %p41
    %p43 = scmp.ne.s32.totalorder %s32, %s35
    %p44 = scmp.eq.s32.totalorder %s15, 1
    %p45 = por %p43, %p44
    %p46 = scmp.ne.s32.totalorder %s35, %s36
    %p47 = scmp.eq.s32.totalorder %s15, 0
    %p48 = por %p46, %p47
    %p49 = scmp.ne.s32.totalorder %s35, %s36
    %p50 = scmp.eq.s32.totalorder %s16, 1
    %p51 = por %p49, %p50
    %p53 = scmp.ne.s32.totalorder %s36, %s52
    %p54 = scmp.eq.s32.totalorder %s16, 0
    %p55 = por %p53, %p54
    %s56 = ssub.s32 %s18, %s25
    %p57 = scmp.eq.s32.totalorder %s56, 0
    %s59 = sadd.s32 %s58, 1
    %s60 = scalar_select %p57, %s58, %s59
    %p63 = pneg %p57
    %p64 = scmp.eq.s32.totalorder %s10, 1
    %p65 = por %p63, %p64
    %p66 = scmp.ne.s32.totalorder %s58, %s61
    %p67 = scmp.eq.s32.totalorder %s10, 0
    %p68 = por %p66, %p67
    %p69 = scmp.ne.s32.totalorder %s58, %s61
    %p70 = scmp.eq.s32.totalorder %s15, 1
    %p71 = por %p69, %p70
    %p72 = scmp.ne.s32.totalorder %s61, %s62
    %p73 = scmp.eq.s32.totalorder %s15, 0
    %p74 = por %p72, %p73
    %p75 = scmp.ne.s32.totalorder %s61, %s62
    %p76 = scmp.eq.s32.totalorder %s16, 1
    %p77 = por %p75, %p76
    %p79 = scmp.ne.s32.totalorder %s62, %s78
    %p80 = scmp.eq.s32.totalorder %s16, 0
    %p81 = por %p79, %p80
    %s82 = ssub.s32 %s18, %s25
    %p83 = scmp.eq.s32.totalorder %s82, 0
    %s85 = sadd.s32 %s84, 1
    %s86 = scalar_select %p83, %s84, %s85
    %p89 = pneg %p83
    %p90 = scmp.eq.s32.totalorder %s10, 1
    %p91 = por %p89, %p90
    %p92 = scmp.ne.s32.totalorder %s84, %s87
    %p93 = scmp.eq.s32.totalorder %s10, 0
    %p94 = por %p92, %p93
    %p95 = scmp.ne.s32.totalorder %s84, %s87
    %p96 = scmp.eq.s32.totalorder %s15, 1
    %p97 = por %p95, %p96
    %p98 = scmp.ne.s32.totalorder %s87, %s88
    %p99 = scmp.eq.s32.totalorder %s15, 0
    %p100 = por %p98, %p99
    %p101 = scmp.ne.s32.totalorder %s87, %s88
    %p102 = scmp.eq.s32.totalorder %s16, 1
    %p103 = por %p101, %p102
    %p105 = scmp.ne.s32.totalorder %s88, %s104
    %p106 = scmp.eq.s32.totalorder %s16, 0
    %p107 = por %p105, %p106
    %s108 = ssub.s32 %s17, %s29
    %s109 = ssub.s32 %s18, %s25
    %s110 = sor.u32 %s108, %s109
    %p111 = scmp.eq.s32.totalorder %s110, 0
    %s113 = sadd.s32 %s112, 1
    %s114 = scalar_select %p111, %s112, %s113
    %p117 = pneg %p111
    %p118 = scmp.eq.s32.totalorder %s10, 1
    %p119 = por %p117, %p118
    %p120 = scmp.ne.s32.totalorder %s112, %s115
    %p121 = scmp.eq.s32.totalorder %s10, 0
    %p122 = por %p120, %p121
    %p123 = scmp.ne.s32.totalorder %s112, %s115
    %p124 = scmp.eq.s32.totalorder %s15, 1
    %p125 = por %p123, %p124
    %p126 = scmp.ne.s32.totalorder %s115, %s116
    %p127 = scmp.eq.s32.totalorder %s15, 0
    %p128 = por %p126, %p127
    %p129 = scmp.ne.s32.totalorder %s115, %s116
    %p130 = scmp.eq.s32.totalorder %s16, 1
    %p131 = por %p129, %p130
    %p133 = scmp.ne.s32.totalorder %s116, %s132
    %p134 = scmp.eq.s32.totalorder %s16, 0
    %p135 = por %p133, %p134
    %s136 = ssub.s32 %s17, %s29
    %s137 = ssub.s32 %s18, %s25
    %s138 = sor.u32 %s136, %s137
    %p139 = scmp.eq.s32.totalorder %s138, 0
    %s141 = sadd.s32 %s140, 1
    %s142 = scalar_select %p139, %s140, %s141
    %p145 = pneg %p139
    %p146 = scmp.eq.s32.totalorder %s10, 1
    %p147 = por %p145, %p146
    %p148 = scmp.ne.s32.totalorder %s140, %s143
    %p149 = scmp.eq.s32.totalorder %s10, 0
    %p150 = por %p148, %p149
    %p151 = scmp.ne.s32.totalorder %s140, %s143
    %p152 = scmp.eq.s32.totalorder %s15, 1
    %p153 = por %p151, %p152
    %p154 = scmp.ne.s32.totalorder %s143, %s144
    %p155 = scmp.eq.s32.totalorder %s15, 0
    %p156 = por %p154, %p155
    %p157 = scmp.ne.s32.totalorder %s143, %s144
    %p158 = scmp.eq.s32.totalorder %s16, 1
    %p159 = por %p157, %p158
    %p161 = scmp.ne.s32.totalorder %s144, %s160
    %p162 = scmp.eq.s32.totalorder %s16, 0
    %p163 = por %p161, %p162
    %p164 = scmp.le.s32.totalorder 1, %s10
    %p165 = scmp.lt.s32.totalorder %s10, 3
    %p166 = pnand %p164, %p165
    %p167 = pneg %p166
    // Predicated region
    $region9: #{enet_forward.173} parent=5 // pred_check
      _
    $region10: #{enet_forward.173} parent=5 // pred_check_branch
      %169 = sbr.rel (%p166) target = $region12
    $region11: #{enet_forward.173} parent=5 // pred_region
      %s170 = ssub.s32 %s10, 1
      // Predicated region
      $region13: #{enet_forward.173} parent=11 // pred_check
        %p171 = pneg %p74
      $region14: #{enet_forward.173} parent=11 // pred_check_branch
        %173 = sbr.rel (%p171) target = $region16
      $region15: #{enet_forward.173} parent=11 // pred_region
        %p174 = scmp.lt.s32.totalorder %s20, 0
        %s175 = scalar_select %p174, %s20, 0
        %s176 = smul.addr %s175, 4
        %s177 = scalar_lea.vmem %s1, %s176
      $region16: #{enet_forward.173} parent=11 // pred_fallthru
        _
      // Predicated region
      $region17: #{enet_forward.173} parent=11 // pred_check
        %p178 = pneg %p100
      $region18: #{enet_forward.173} parent=11 // pred_check_branch
        %180 = sbr.rel (%p178) target = $region20
      $region19: #{enet_forward.173} parent=11 // pred_region
        %p181 = scmp.lt.s32.totalorder %s20, 0
        %s182 = scalar_select %p181, %s20, 0
        %s183 = smul.addr %s182, 8
        %s184 = scalar_lea.vmem %s2, %s183
      $region20: #{enet_forward.173} parent=11 // pred_fallthru
        _
    $region12: #{enet_forward.173} parent=5 // pred_fallthru
      _
    %p185 = scmp.lt.s32.totalorder %s10, 2
    // Predicated region
    $region21: #{enet_forward.173} parent=5 // pred_check
      %p186 = pneg %p185
    $region22: #{enet_forward.173} parent=5 // pred_check_branch
      %188 = sbr.rel (%p186) target = $region24
    $region23: #{enet_forward.173} parent=5 // pred_region
      // Predicated region
      $region25: #{enet_forward.173} parent=23 // pred_check
        %p189 = pneg %p42
      $region26: #{enet_forward.173} parent=23 // pred_check_branch
        %191 = sbr.rel (%p189) target = $region28
      $region27: #{enet_forward.173} parent=23 // pred_region
        %s192 = smul.u32 32, %s17
        %p193 = scmp.lt.s32.totalorder %s192, 63
        %s194 = scalar_select %p193, %s192, 63
        %s195 = smul.addr %s194, 4
        %s196 = scalar_lea.vmem %s0, %s195
        %s197 = smul.u32 32, %s17
      $region28: #{enet_forward.173} parent=23 // pred_fallthru
        _
      // Predicated region
      $region29: #{enet_forward.173} parent=23 // pred_check
        %p198 = pneg %p122
      $region30: #{enet_forward.173} parent=23 // pred_check_branch
        %200 = sbr.rel (%p198) target = $region32
      $region31: #{enet_forward.173} parent=23 // pred_region
        %s201 = smul.u32 32, %s17
        %p202 = scmp.lt.s32.totalorder %s201, 63
        %s203 = scalar_select %p202, %s201, 63
        %p204 = scmp.lt.s32.totalorder %s18, 0
        %s205 = scalar_select %p204, %s18, 0
        %s206 = sadd.s32 %s205, %s203
        %s207 = smul.addr %s206, 8
        %s208 = scalar_lea.vmem %s3, %s207
        %s209 = smul.u32 32, %s17
      $region32: #{enet_forward.173} parent=23 // pred_fallthru
        _
    $region24: #{enet_forward.173} parent=5 // pred_fallthru
      _
    %p210 = scmp.le.s32.totalorder 1, %s10
    %p211 = scmp.lt.s32.totalorder %s10, 3
    %p212 = pnand %p210, %p211
    %p213 = pneg %p212
    // Predicated region
    $region33: #{enet_forward.173} parent=5 // pred_check
      _
    $region34: #{enet_forward.173} parent=5 // pred_check_branch
      %215 = sbr.rel (%p212) target = $region36
    $region35: #{enet_forward.173} parent=5 // pred_region
      %s216 = ssub.s32 %s10, 1
      %s217 = smul.u32 32, %s19
      %p218 = scmp.lt.s32.totalorder %s217, 63
      %s219 = scalar_select %p218, %s217, 63
      %s220 = smul.addr %s219, 4
      %s221 = scalar_lea.vmem %s0, %s220
      %p222 = pneg %p48
      %p223 = pneg %p45
      %p224 = scmp.lt.s32.totalorder %s20, 0
      %s225 = scalar_select %p224, %s20, 0
      %s226 = smul.addr %s225, 4
      %s227 = scalar_lea.vmem %s1, %s226
      %p228 = pneg %p74
      %p229 = pneg %p71
      %p230 = scmp.lt.s32.totalorder %s20, 0
      %s231 = scalar_select %p230, %s20, 0
      %s232 = smul.addr %s231, 8
      %s233 = scalar_lea.vmem %s2, %s232
      %p234 = pneg %p100
      %p235 = pneg %p97
      %s236 = smul.u32 32, %s19
      %p237 = scmp.lt.s32.totalorder %s236, 63
      %s238 = scalar_select %p237, %s236, 63
      %p239 = scmp.lt.s32.totalorder %s20, 0
      %s240 = scalar_select %p239, %s20, 0
      %s241 = sadd.s32 %s240, %s238
      %s242 = smul.addr %s241, 8
      %s243 = scalar_lea.vmem %s3, %s242
      %p244 = pneg %p128
      %p245 = pneg %p125
      %p246 = pneg %p156
      %p247 = pneg %p153
      %s248 = smul.u32 32, %s19
      %p249 = scmp.lt.s32.totalorder %s248, 63
      %s250 = scalar_select %p249, %s248, 63
      %p251 = scmp.lt.s32.totalorder %s20, 0
      %s252 = scalar_select %p251, %s20, 0
      %s253 = sadd.s32 %s252, %s250
      %s254 = smul.addr %s253, 8
      %s255 = scalar_lea.vmem %s4, %s254
      %s256 = smul.u32 32, %s19
      %p257 = scmp.lt.s32.totalorder %s256, 63
      %s258 = scalar_select %p257, %s256, 63
      %s259 = smul.addr %s258, 4
      %s260 = scalar_lea.vmem %s0, %s259
      %s261 = smul.u32 32, %s19
      %p262 = scmp.lt.s32.totalorder %s20, 0
      %s263 = scalar_select %p262, %s20, 0
      %s264 = smul.addr %s263, 4
      %s265 = scalar_lea.vmem %s1, %s264
      %p266 = scmp.lt.s32.totalorder %s20, 0
      %s267 = scalar_select %p266, %s20, 0
      %s268 = smul.addr %s267, 8
      %s269 = scalar_lea.vmem %s2, %s268
      %s270 = smul.u32 32, %s19
      %p271 = scmp.lt.s32.totalorder %s270, 63
      %s272 = scalar_select %p271, %s270, 63
      %p273 = scmp.lt.s32.totalorder %s20, 0
      %s274 = scalar_select %p273, %s20, 0
      %s275 = sadd.s32 %s274, %s272
      %s276 = smul.addr %s275, 8
      %s277 = scalar_lea.vmem %s3, %s276
      %s278 = smul.u32 32, %s19
      %s279 = smul.u32 32, %s19
      %p280 = scmp.lt.s32.totalorder %s279, 63
      %s281 = scalar_select %p280, %s279, 63
      %p282 = scmp.lt.s32.totalorder %s20, 0
      %s283 = scalar_select %p282, %s20, 0
      %s284 = sadd.s32 %s283, %s281
      %s285 = smul.addr %s284, 8
      %s286 = scalar_lea.vmem %s4, %s285
      %s287 = smul.u32 32, %s19
      %v289 = vld [vmem:[%s260] sm:$0xf]
      %v290 = vld [vmem:[%s260 + $0x4] sm:$0xf]
      %v291 = vld [vmem:[%s260 + $0x8] sm:$0xf]
      %v292 = vld [vmem:[%s260 + $0xc] sm:$0xf]
      %v293 = vld [vmem:[%s260 + $0x10] sm:$0xf]
      %v294 = vld [vmem:[%s260 + $0x14] sm:$0xf]
      %v295 = vld [vmem:[%s260 + $0x18] sm:$0xf]
      %v296 = vld [vmem:[%s260 + $0x1c] sm:$0xf]
      %v297 = vld [vmem:[%s260 + $0x20] sm:$0xf]
      %v298 = vld [vmem:[%s260 + $0x24] sm:$0xf]
      %v299 = vld [vmem:[%s260 + $0x28] sm:$0xf]
      %v300 = vld [vmem:[%s260 + $0x2c] sm:$0xf]
      %v301 = vld [vmem:[%s260 + $0x30] sm:$0xf]
      %v302 = vld [vmem:[%s260 + $0x34] sm:$0xf]
      %v303 = vld [vmem:[%s260 + $0x38] sm:$0xf]
      %v304 = vld [vmem:[%s260 + $0x3c] sm:$0xf]
      %v305 = vld [vmem:[%s260 + $0x40] sm:$0xf]
      %v306 = vld [vmem:[%s260 + $0x44] sm:$0xf]
      %v307 = vld [vmem:[%s260 + $0x48] sm:$0xf]
      %v308 = vld [vmem:[%s260 + $0x4c] sm:$0xf]
      %v309 = vld [vmem:[%s260 + $0x50] sm:$0xf]
      %v310 = vld [vmem:[%s260 + $0x54] sm:$0xf]
      %v311 = vld [vmem:[%s260 + $0x58] sm:$0xf]
      %v312 = vld [vmem:[%s260 + $0x5c] sm:$0xf]
      %v313 = vld [vmem:[%s260 + $0x60] sm:$0xf]
      %v314 = vld [vmem:[%s260 + $0x64] sm:$0xf]
      %v315 = vld [vmem:[%s260 + $0x68] sm:$0xf]
      %v316 = vld [vmem:[%s260 + $0x6c] sm:$0xf]
      %v317 = vld [vmem:[%s260 + $0x70] sm:$0xf]
      %v318 = vld [vmem:[%s260 + $0x74] sm:$0xf]
      %v319 = vld [vmem:[%s260 + $0x78] sm:$0xf]
      %v320 = vld [vmem:[%s260 + $0x7c] sm:$0xf]
      %v321 = vld [vmem:[%s265] sm:$0xf]
      %v322 = vld [vmem:[%s265 + $0x4] sm:$0xf]
      %v323 = vld [vmem:[%s265 + $0x8] sm:$0xf]
      %v324 = vld [vmem:[%s265 + $0xc] sm:$0xf]
      %v325 = vld [vmem:[%s265 + $0x10] sm:$0xf]
      %v326 = vld [vmem:[%s265 + $0x14] sm:$0xf]
      %v327 = vld [vmem:[%s265 + $0x18] sm:$0xf]
      %v328 = vld [vmem:[%s265 + $0x1c] sm:$0xf]
      %v329 = vld [vmem:[%s265 + $0x20] sm:$0xf]
      %v330 = vld [vmem:[%s265 + $0x24] sm:$0xf]
      %v331 = vld [vmem:[%s265 + $0x28] sm:$0xf]
      %v332 = vld [vmem:[%s265 + $0x2c] sm:$0xf]
      %v333 = vld [vmem:[%s265 + $0x30] sm:$0xf]
      %v334 = vld [vmem:[%s265 + $0x34] sm:$0xf]
      %v335 = vld [vmem:[%s265 + $0x38] sm:$0xf]
      %v336 = vld [vmem:[%s265 + $0x3c] sm:$0xf]
      %v369 = vunpack.c.l.b16 %v289
      %v370 = vunpack.c.l.b16 %v290
      %v371 = vunpack.c.l.b16 %v291
      %v372 = vunpack.c.l.b16 %v292
      %v373 = vunpack.c.l.b16 %v293
      %v374 = vunpack.c.l.b16 %v294
      %v375 = vunpack.c.l.b16 %v295
      %v376 = vunpack.c.l.b16 %v296
      %v377 = vunpack.c.l.b16 %v297
      %v378 = vunpack.c.l.b16 %v298
      %v379 = vunpack.c.l.b16 %v299
      %v380 = vunpack.c.l.b16 %v300
      %v381 = vunpack.c.l.b16 %v301
      %v382 = vunpack.c.l.b16 %v302
      %v383 = vunpack.c.l.b16 %v303
      %v384 = vunpack.c.l.b16 %v304
      %v385 = vunpack.c.l.b16 %v305
      %v386 = vunpack.c.l.b16 %v306
      %v387 = vunpack.c.l.b16 %v307
      %v388 = vunpack.c.l.b16 %v308
      %v389 = vunpack.c.l.b16 %v309
      %v390 = vunpack.c.l.b16 %v310
      %v391 = vunpack.c.l.b16 %v311
      %v392 = vunpack.c.l.b16 %v312
      %v393 = vunpack.c.l.b16 %v313
      %v394 = vunpack.c.l.b16 %v314
      %v395 = vunpack.c.l.b16 %v315
      %v396 = vunpack.c.l.b16 %v316
      %v397 = vunpack.c.l.b16 %v317
      %v398 = vunpack.c.l.b16 %v318
      %v399 = vunpack.c.l.b16 %v319
      %v400 = vunpack.c.l.b16 %v320
      %v401 = vpack.c.b16 %v370, %v369
      %v402 = vpack.c.b16 %v372, %v371
      %v403 = vpack.c.b16 %v374, %v373
      %v404 = vpack.c.b16 %v376, %v375
      %v405 = vpack.c.b16 %v378, %v377
      %v406 = vpack.c.b16 %v380, %v379
      %v407 = vpack.c.b16 %v382, %v381
      %v408 = vpack.c.b16 %v384, %v383
      %v409 = vpack.c.b16 %v386, %v385
      %v410 = vpack.c.b16 %v388, %v387
      %v411 = vpack.c.b16 %v390, %v389
      %v412 = vpack.c.b16 %v392, %v391
      %v413 = vpack.c.b16 %v394, %v393
      %v414 = vpack.c.b16 %v396, %v395
      %v415 = vpack.c.b16 %v398, %v397
      %v416 = vpack.c.b16 %v400, %v399
      %v449 = vunpack.c.l.b16 %v321
      %v450 = vunpack.c.l.b16 %v322
      %v451 = vunpack.c.l.b16 %v323
      %v452 = vunpack.c.l.b16 %v324
      %v453 = vunpack.c.l.b16 %v325
      %v454 = vunpack.c.l.b16 %v326
      %v455 = vunpack.c.l.b16 %v327
      %v456 = vunpack.c.l.b16 %v328
      %v457 = vunpack.c.l.b16 %v329
      %v458 = vunpack.c.l.b16 %v330
      %v459 = vunpack.c.l.b16 %v331
      %v460 = vunpack.c.l.b16 %v332
      %v461 = vunpack.c.l.b16 %v333
      %v462 = vunpack.c.l.b16 %v334
      %v463 = vunpack.c.l.b16 %v335
      %v464 = vunpack.c.l.b16 %v336
      %v465 = vpack.c.b16 %v450, %v449
      %v466 = vpack.c.b16 %v452, %v451
      %v467 = vpack.c.b16 %v454, %v453
      %v468 = vpack.c.b16 %v456, %v455
      %v469 = vpack.c.b16 %v458, %v457
      %v470 = vpack.c.b16 %v460, %v459
      %v471 = vpack.c.b16 %v462, %v461
      %v472 = vpack.c.b16 %v464, %v463
      %481 = vmatprep.subr.bf16.mxu0 0
      %482 = vmatpush1.bf16.msra.mxu0 %v465
      %483 = vmatprep.subr.bf16.mxu0 0
      %484 = vmatpush1.bf16.msra.mxu0 %v466
      %485 = vmatprep.subr.bf16.mxu0 0
      %486 = vmatpush1.bf16.msra.mxu0 %v467
      %487 = vmatprep.subr.bf16.mxu0 0
      %488 = vmatpush1.bf16.msra.mxu0 %v468
      %489 = vmatprep.subr.bf16.mxu0 0
      %490 = vmatpush1.bf16.msra.mxu0 %v469
      %491 = vmatprep.subr.bf16.mxu0 0
      %492 = vmatpush1.bf16.msra.mxu0 %v470
      %493 = vmatprep.subr.bf16.mxu0 0
      %494 = vmatpush1.bf16.msra.mxu0 %v471
      %495 = vmatprep.subr.bf16.mxu0 0
      %496 = vmatpush1.bf16.msra.mxu0 %v472
      %497 = vmatprep.subr.bf16.mxu0 0
      %498 = vmatpush1.bf16.msra.mxu0 0
      %499 = vmatprep.subr.bf16.mxu0 0
      %500 = vmatpush1.bf16.msra.mxu0 0
      %501 = vmatprep.subr.bf16.mxu0 0
      %502 = vmatpush1.bf16.msra.mxu0 0
      %503 = vmatprep.subr.bf16.mxu0 0
      %504 = vmatpush1.bf16.msra.mxu0 0
      %505 = vmatprep.subr.bf16.mxu0 0
      %506 = vmatpush1.bf16.msra.mxu0 0
      %507 = vmatprep.subr.bf16.mxu0 0
      %508 = vmatpush1.bf16.msra.mxu0 0
      %509 = vmatprep.subr.bf16.mxu0 0
      %510 = vmatpush1.bf16.msra.mxu0 0
      %511 = vmatprep.subr.bf16.mxu0 0
      %512 = vmatpush1.bf16.msra.mxu0 0
      %513 = vmatprep.mubr.bf16.mxu0 0
      %514 = vmatmul.mubr.bf16.gmra.mrb[0].mxu0 %v401
      %v515 = vpop.f32.mrb[0].mxu0
      %v516 = vadd.f32 0.0, %v515
      %v517 = vpop.f32.mrb[0].mxu0
      %v518 = vpop.f32.mrb[0].mxu0
      %v519 = vadd.f32 0.0, %v518
      %v520 = vpop.f32.mrb[0].mxu0
      %521 = vmatprep.mubr.bf16.mxu0 0
      %522 = vmatmul.mubr.bf16.gmra.mrb[0].mxu0 %v402
      %v523 = vpop.f32.mrb[0].mxu0
      %v524 = vadd.f32 0.0, %v523
      %v525 = vpop.f32.mrb[0].mxu0
      %v526 = vpop.f32.mrb[0].mxu0
      %v527 = vadd.f32 0.0, %v526
      %v528 = vpop.f32.mrb[0].mxu0
      %529 = vmatprep.mubr.bf16.mxu0 0
      %530 = vmatmul.mubr.bf16.gmra.mrb[0].mxu0 %v403
      %v531 = vpop.f32.mrb[0].mxu0
      %v532 = vadd.f32 0.0, %v531
      %v533 = vpop.f32.mrb[0].mxu0
      %v534 = vpop.f32.mrb[0].mxu0
      %v535 = vadd.f32 0.0, %v534
      %v536 = vpop.f32.mrb[0].mxu0
      %537 = vmatprep.mubr.bf16.mxu0 0
      %538 = vmatmul.mubr.bf16.gmra.mrb[0].mxu0 %v404
      %v539 = vpop.f32.mrb[0].mxu0
      %v540 = vadd.f32 0.0, %v539
      %v541 = vpop.f32.mrb[0].mxu0
      %v542 = vpop.f32.mrb[0].mxu0
      %v543 = vadd.f32 0.0, %v542
      %v544 = vpop.f32.mrb[0].mxu0
      %545 = vmatprep.mubr.bf16.mxu0 0
      %546 = vmatmul.mubr.bf16.gmra.mrb[0].mxu0 %v405
      %v547 = vpop.f32.mrb[0].mxu0
      %v548 = vadd.f32 0.0, %v547
      %v549 = vpop.f32.mrb[0].mxu0
      %v550 = vpop.f32.mrb[0].mxu0
      %v551 = vadd.f32 0.0, %v550
      %v552 = vpop.f32.mrb[0].mxu0
      %553 = vmatprep.mubr.bf16.mxu0 0
      %554 = vmatmul.mubr.bf16.gmra.mrb[0].mxu0 %v406
      %v555 = vpop.f32.mrb[0].mxu0
      %v556 = vadd.f32 0.0, %v555
      %v557 = vpop.f32.mrb[0].mxu0
      %v558 = vpop.f32.mrb[0].mxu0
      %v559 = vadd.f32 0.0, %v558
      %v560 = vpop.f32.mrb[0].mxu0
      %561 = vmatprep.mubr.bf16.mxu0 0
      %562 = vmatmul.mubr.bf16.gmra.mrb[0].mxu0 %v407
      %v563 = vpop.f32.mrb[0].mxu0
      %v564 = vadd.f32 0.0, %v563
      %v565 = vpop.f32.mrb[0].mxu0
      %v566 = vpop.f32.mrb[0].mxu0
      %v567 = vadd.f32 0.0, %v566
      %v568 = vpop.f32.mrb[0].mxu0
      %569 = vmatprep.mubr.bf16.mxu0 0
      %570 = vmatmul.mubr.bf16.gmra.mrb[0].mxu0 %v408
      %v571 = vpop.f32.mrb[0].mxu0
      %v572 = vadd.f32 0.0, %v571
      %v573 = vpop.f32.mrb[0].mxu0
      %v574 = vpop.f32.mrb[0].mxu0
      %v575 = vadd.f32 0.0, %v574
      %v576 = vpop.f32.mrb[0].mxu0
      %577 = vmatprep.mubr.bf16.mxu0 0
      %578 = vmatmul.mubr.bf16.gmra.mrb[0].mxu0 %v409
      %v579 = vpop.f32.mrb[0].mxu0
      %v580 = vadd.f32 0.0, %v579
      %v581 = vpop.f32.mrb[0].mxu0
      %v582 = vpop.f32.mrb[0].mxu0
      %v583 = vadd.f32 0.0, %v582
      %v584 = vpop.f32.mrb[0].mxu0
      %585 = vmatprep.mubr.bf16.mxu0 0
      %586 = vmatmul.mubr.bf16.gmra.mrb[0].mxu0 %v410
      %v587 = vpop.f32.mrb[0].mxu0
      %v588 = vadd.f32 0.0, %v587
      %v589 = vpop.f32.mrb[0].mxu0
      %v590 = vpop.f32.mrb[0].mxu0
      %v591 = vadd.f32 0.0, %v590
      %v592 = vpop.f32.mrb[0].mxu0
      %593 = vmatprep.mubr.bf16.mxu0 0
      %594 = vmatmul.mubr.bf16.gmra.mrb[0].mxu0 %v411
      %v595 = vpop.f32.mrb[0].mxu0
      %v596 = vadd.f32 0.0, %v595
      %v597 = vpop.f32.mrb[0].mxu0
      %v598 = vpop.f32.mrb[0].mxu0
      %v599 = vadd.f32 0.0, %v598
      %v600 = vpop.f32.mrb[0].mxu0
      %601 = vmatprep.mubr.bf16.mxu0 0
      %602 = vmatmul.mubr.bf16.gmra.mrb[0].mxu0 %v412
      %v603 = vpop.f32.mrb[0].mxu0
      %v604 = vadd.f32 0.0, %v603
      %v605 = vpop.f32.mrb[0].mxu0
      %v606 = vpop.f32.mrb[0].mxu0
      %v607 = vadd.f32 0.0, %v606
      %v608 = vpop.f32.mrb[0].mxu0
      %609 = vmatprep.mubr.bf16.mxu0 0
      %610 = vmatmul.mubr.bf16.gmra.mrb[0].mxu0 %v413
      %v611 = vpop.f32.mrb[0].mxu0
      %v612 = vadd.f32 0.0, %v611
      %v613 = vpop.f32.mrb[0].mxu0
      %v614 = vpop.f32.mrb[0].mxu0
      %v615 = vadd.f32 0.0, %v614
      %v616 = vpop.f32.mrb[0].mxu0
      %617 = vmatprep.mubr.bf16.mxu0 0
      %618 = vmatmul.mubr.bf16.gmra.mrb[0].mxu0 %v414
      %v619 = vpop.f32.mrb[0].mxu0
      %v620 = vadd.f32 0.0, %v619
      %v621 = vpop.f32.mrb[0].mxu0
      %v622 = vpop.f32.mrb[0].mxu0
      %v623 = vadd.f32 0.0, %v622
      %v624 = vpop.f32.mrb[0].mxu0
      %625 = vmatprep.mubr.bf16.mxu0 0
      %626 = vmatmul.mubr.bf16.gmra.mrb[0].mxu0 %v415
      %v627 = vpop.f32.mrb[0].mxu0
      %v628 = vadd.f32 0.0, %v627
      %v629 = vpop.f32.mrb[0].mxu0
      %v630 = vpop.f32.mrb[0].mxu0
      %v631 = vadd.f32 0.0, %v630
      %v632 = vpop.f32.mrb[0].mxu0
      %633 = vmatprep.mubr.bf16.mxu0 0
      %634 = vmatmul.mubr.bf16.gmra.mrb[0].mxu0 %v416
      %v635 = vpop.f32.mrb[0].mxu0
      %v636 = vadd.f32 0.0, %v635
      %v637 = vpop.f32.mrb[0].mxu0
      %v638 = vpop.f32.mrb[0].mxu0
      %v639 = vadd.f32 0.0, %v638
      %v640 = vpop.f32.mrb[0].mxu0
      %641 = vdwg.mxu0
      %v642 = vld [vmem:[%s277] sm:$0xff]
      %v643 = vld [vmem:[%s277 + $0x8] sm:$0xff]
      %v644 = vld [vmem:[%s277 + $0x10] sm:$0xff]
      %v645 = vld [vmem:[%s277 + $0x18] sm:$0xff]
      %v646 = vld [vmem:[%s277 + $0x20] sm:$0xff]
      %v647 = vld [vmem:[%s277 + $0x28] sm:$0xff]
      %v648 = vld [vmem:[%s277 + $0x30] sm:$0xff]
      %v649 = vld [vmem:[%s277 + $0x38] sm:$0xff]
      %v650 = vld [vmem:[%s277 + $0x40] sm:$0xff]
      %v651 = vld [vmem:[%s277 + $0x48] sm:$0xff]
      %v652 = vld [vmem:[%s277 + $0x50] sm:$0xff]
      %v653 = vld [vmem:[%s277 + $0x58] sm:$0xff]
      %v654 = vld [vmem:[%s277 + $0x60] sm:$0xff]
      %v655 = vld [vmem:[%s277 + $0x68] sm:$0xff]
      %v656 = vld [vmem:[%s277 + $0x70] sm:$0xff]
      %v657 = vld [vmem:[%s277 + $0x78] sm:$0xff]
      %v658 = vld [vmem:[%s277 + $0x80] sm:$0xff]
      %v659 = vld [vmem:[%s277 + $0x88] sm:$0xff]
      %v660 = vld [vmem:[%s277 + $0x90] sm:$0xff]
      %v661 = vld [vmem:[%s277 + $0x98] sm:$0xff]
      %v662 = vld [vmem:[%s277 + $0xa0] sm:$0xff]
      %v663 = vld [vmem:[%s277 + $0xa8] sm:$0xff]
      %v664 = vld [vmem:[%s277 + $0xb0] sm:$0xff]
      %v665 = vld [vmem:[%s277 + $0xb8] sm:$0xff]
      %v666 = vld [vmem:[%s277 + $0xc0] sm:$0xff]
      %v667 = vld [vmem:[%s277 + $0xc8] sm:$0xff]
      %v668 = vld [vmem:[%s277 + $0xd0] sm:$0xff]
      %v669 = vld [vmem:[%s277 + $0xd8] sm:$0xff]
      %v670 = vld [vmem:[%s277 + $0xe0] sm:$0xff]
      %v671 = vld [vmem:[%s277 + $0xe8] sm:$0xff]
      %v672 = vld [vmem:[%s277 + $0xf0] sm:$0xff]
      %v673 = vld [vmem:[%s277 + $0xf8] sm:$0xff]
      %v674 = vld [vmem:[%s269] sm:$0xff]
      %v675 = vlaneseq
      %v676 = vshrl.u32 %v675, 7
      %v677 = vsub.s32 0, %v676
      %v678 = vrot.slane %v674, %v677
      %v679 = vmul.f32 %v516, %v678
      %v680 = vmul.f32 %v519, %v678
      %v681 = vmul.f32 %v524, %v678
      %v682 = vmul.f32 %v527, %v678
      %v683 = vmul.f32 %v532, %v678
      %v684 = vmul.f32 %v535, %v678
      %v685 = vmul.f32 %v540, %v678
      %v686 = vmul.f32 %v543, %v678
      %v687 = vmul.f32 %v548, %v678
      %v688 = vmul.f32 %v551, %v678
      %v689 = vmul.f32 %v556, %v678
      %v690 = vmul.f32 %v559, %v678
      %v691 = vmul.f32 %v564, %v678
      %v692 = vmul.f32 %v567, %v678
      %v693 = vmul.f32 %v572, %v678
      %v694 = vmul.f32 %v575, %v678
      %v695 = vmul.f32 %v580, %v678
      %v696 = vmul.f32 %v583, %v678
      %v697 = vmul.f32 %v588, %v678
      %v698 = vmul.f32 %v591, %v678
      %v699 = vmul.f32 %v596, %v678
      %v700 = vmul.f32 %v599, %v678
      %v701 = vmul.f32 %v604, %v678
      %v702 = vmul.f32 %v607, %v678
      %v703 = vmul.f32 %v612, %v678
      %v704 = vmul.f32 %v615, %v678
      %v705 = vmul.f32 %v620, %v678
      %v706 = vmul.f32 %v623, %v678
      %v707 = vmul.f32 %v628, %v678
      %v708 = vmul.f32 %v631, %v678
      %v709 = vmul.f32 %v636, %v678
      %v710 = vmul.f32 %v639, %v678
      %v711 = vlaneseq
      %v712 = vshrl.u32 %v711, 7
      %v713 = vsub.s32 1, %v712
      %v714 = vrot.slane %v674, %v713
      %v715 = vadd.f32 %v679, %v714
      %v716 = vadd.f32 %v680, %v714
      %v717 = vadd.f32 %v681, %v714
      %v718 = vadd.f32 %v682, %v714
      %v719 = vadd.f32 %v683, %v714
      %v720 = vadd.f32 %v684, %v714
      %v721 = vadd.f32 %v685, %v714
      %v722 = vadd.f32 %v686, %v714
      %v723 = vadd.f32 %v687, %v714
      %v724 = vadd.f32 %v688, %v714
      %v725 = vadd.f32 %v689, %v714
      %v726 = vadd.f32 %v690, %v714
      %v727 = vadd.f32 %v691, %v714
      %v728 = vadd.f32 %v692, %v714
      %v729 = vadd.f32 %v693, %v714
      %v730 = vadd.f32 %v694, %v714
      %v731 = vadd.f32 %v695, %v714
      %v732 = vadd.f32 %v696, %v714
      %v733 = vadd.f32 %v697, %v714
      %v734 = vadd.f32 %v698, %v714
      %v735 = vadd.f32 %v699, %v714
      %v736 = vadd.f32 %v700, %v714
      %v737 = vadd.f32 %v701, %v714
      %v738 = vadd.f32 %v702, %v714
      %v739 = vadd.f32 %v703, %v714
      %v740 = vadd.f32 %v704, %v714
      %v741 = vadd.f32 %v705, %v714
      %v742 = vadd.f32 %v706, %v714
      %v743 = vadd.f32 %v707, %v714
      %v744 = vadd.f32 %v708, %v714
      %v745 = vadd.f32 %v709, %v714
      %v746 = vadd.f32 %v710, %v714
      %vm747 = vcmp.ge.f32.partialorder %v715, 0.0
      %vm748 = vcmp.ge.f32.partialorder %v716, 0.0
      %vm749 = vcmp.ge.f32.partialorder %v717, 0.0
      %vm750 = vcmp.ge.f32.partialorder %v718, 0.0
      %vm751 = vcmp.ge.f32.partialorder %v719, 0.0
      %vm752 = vcmp.ge.f32.partialorder %v720, 0.0
      %vm753 = vcmp.ge.f32.partialorder %v721, 0.0
      %vm754 = vcmp.ge.f32.partialorder %v722, 0.0
      %vm755 = vcmp.ge.f32.partialorder %v723, 0.0
      %vm756 = vcmp.ge.f32.partialorder %v724, 0.0
      %vm757 = vcmp.ge.f32.partialorder %v725, 0.0
      %vm758 = vcmp.ge.f32.partialorder %v726, 0.0
      %vm759 = vcmp.ge.f32.partialorder %v727, 0.0
      %vm760 = vcmp.ge.f32.partialorder %v728, 0.0
      %vm761 = vcmp.ge.f32.partialorder %v729, 0.0
      %vm762 = vcmp.ge.f32.partialorder %v730, 0.0
      %vm763 = vcmp.ge.f32.partialorder %v731, 0.0
      %vm764 = vcmp.ge.f32.partialorder %v732, 0.0
      %vm765 = vcmp.ge.f32.partialorder %v733, 0.0
      %vm766 = vcmp.ge.f32.partialorder %v734, 0.0
      %vm767 = vcmp.ge.f32.partialorder %v735, 0.0
      %vm768 = vcmp.ge.f32.partialorder %v736, 0.0
      %vm769 = vcmp.ge.f32.partialorder %v737, 0.0
      %vm770 = vcmp.ge.f32.partialorder %v738, 0.0
      %vm771 = vcmp.ge.f32.partialorder %v739, 0.0
      %vm772 = vcmp.ge.f32.partialorder %v740, 0.0
      %vm773 = vcmp.ge.f32.partialorder %v741, 0.0
      %vm774 = vcmp.ge.f32.partialorder %v742, 0.0
      %vm775 = vcmp.ge.f32.partialorder %v743, 0.0
      %vm776 = vcmp.ge.f32.partialorder %v744, 0.0
      %vm777 = vcmp.ge.f32.partialorder %v745, 0.0
      %vm778 = vcmp.ge.f32.partialorder %v746, 0.0
      %v779 = vlaneseq
      %v780 = vshrl.u32 %v779, 7
      %v781 = vsub.s32 2, %v780
      %v782 = vrot.slane %v674, %v781
      %v783 = vmul.f32 %v782, %v715
      %v784 = vmul.f32 %v782, %v716
      %v785 = vmul.f32 %v782, %v717
      %v786 = vmul.f32 %v782, %v718
      %v787 = vmul.f32 %v782, %v719
      %v788 = vmul.f32 %v782, %v720
      %v789 = vmul.f32 %v782, %v721
      %v790 = vmul.f32 %v782, %v722
      %v791 = vmul.f32 %v782, %v723
      %v792 = vmul.f32 %v782, %v724
      %v793 = vmul.f32 %v782, %v725
      %v794 = vmul.f32 %v782, %v726
      %v795 = vmul.f32 %v782, %v727
      %v796 = vmul.f32 %v782, %v728
      %v797 = vmul.f32 %v782, %v729
      %v798 = vmul.f32 %v782, %v730
      %v799 = vmul.f32 %v782, %v731
      %v800 = vmul.f32 %v782, %v732
      %v801 = vmul.f32 %v782, %v733
      %v802 = vmul.f32 %v782, %v734
      %v803 = vmul.f32 %v782, %v735
      %v804 = vmul.f32 %v782, %v736
      %v805 = vmul.f32 %v782, %v737
      %v806 = vmul.f32 %v782, %v738
      %v807 = vmul.f32 %v782, %v739
      %v808 = vmul.f32 %v782, %v740
      %v809 = vmul.f32 %v782, %v741
      %v810 = vmul.f32 %v782, %v742
      %v811 = vmul.f32 %v782, %v743
      %v812 = vmul.f32 %v782, %v744
      %v813 = vmul.f32 %v782, %v745
      %v814 = vmul.f32 %v782, %v746
      %v815 = vsel %vm747, %v715, %v783
      %v816 = vsel %vm748, %v716, %v784
      %v817 = vsel %vm749, %v717, %v785
      %v818 = vsel %vm750, %v718, %v786
      %v819 = vsel %vm751, %v719, %v787
      %v820 = vsel %vm752, %v720, %v788
      %v821 = vsel %vm753, %v721, %v789
      %v822 = vsel %vm754, %v722, %v790
      %v823 = vsel %vm755, %v723, %v791
      %v824 = vsel %vm756, %v724, %v792
      %v825 = vsel %vm757, %v725, %v793
      %v826 = vsel %vm758, %v726, %v794
      %v827 = vsel %vm759, %v727, %v795
      %v828 = vsel %vm760, %v728, %v796
      %v829 = vsel %vm761, %v729, %v797
      %v830 = vsel %vm762, %v730, %v798
      %v831 = vsel %vm763, %v731, %v799
      %v832 = vsel %vm764, %v732, %v800
      %v833 = vsel %vm765, %v733, %v801
      %v834 = vsel %vm766, %v734, %v802
      %v835 = vsel %vm767, %v735, %v803
      %v836 = vsel %vm768, %v736, %v804
      %v837 = vsel %vm769, %v737, %v805
      %v838 = vsel %vm770, %v738, %v806
      %v839 = vsel %vm771, %v739, %v807
      %v840 = vsel %vm772, %v740, %v808
      %v841 = vsel %vm773, %v741, %v809
      %v842 = vsel %vm774, %v742, %v810
      %v843 = vsel %vm775, %v743, %v811
      %v844 = vsel %vm776, %v744, %v812
      %v845 = vsel %vm777, %v745, %v813
      %v846 = vsel %vm778, %v746, %v814
      %v847 = vadd.f32 %v642, %v815
      %v848 = vadd.f32 %v643, %v816
      %v849 = vadd.f32 %v644, %v817
      %v850 = vadd.f32 %v645, %v818
      %v851 = vadd.f32 %v646, %v819
      %v852 = vadd.f32 %v647, %v820
      %v853 = vadd.f32 %v648, %v821
      %v854 = vadd.f32 %v649, %v822
      %v855 = vadd.f32 %v650, %v823
      %v856 = vadd.f32 %v651, %v824
      %v857 = vadd.f32 %v652, %v825
      %v858 = vadd.f32 %v653, %v826
      %v859 = vadd.f32 %v654, %v827
      %v860 = vadd.f32 %v655, %v828
      %v861 = vadd.f32 %v656, %v829
      %v862 = vadd.f32 %v657, %v830
      %v863 = vadd.f32 %v658, %v831
      %v864 = vadd.f32 %v659, %v832
      %v865 = vadd.f32 %v660, %v833
      %v866 = vadd.f32 %v661, %v834
      %v867 = vadd.f32 %v662, %v835
      %v868 = vadd.f32 %v663, %v836
      %v869 = vadd.f32 %v664, %v837
      %v870 = vadd.f32 %v665, %v838
      %v871 = vadd.f32 %v666, %v839
      %v872 = vadd.f32 %v667, %v840
      %v873 = vadd.f32 %v668, %v841
      %v874 = vadd.f32 %v669, %v842
      %v875 = vadd.f32 %v670, %v843
      %v876 = vadd.f32 %v671, %v844
      %v877 = vadd.f32 %v672, %v845
      %v878 = vadd.f32 %v673, %v846
      %v879 = vmax.f32 %v847, 0.0
      %v880 = vmax.f32 %v848, 0.0
      %v881 = vmax.f32 %v849, 0.0
      %v882 = vmax.f32 %v850, 0.0
      %v883 = vmax.f32 %v851, 0.0
      %v884 = vmax.f32 %v852, 0.0
      %v885 = vmax.f32 %v853, 0.0
      %v886 = vmax.f32 %v854, 0.0
      %v887 = vmax.f32 %v855, 0.0
      %v888 = vmax.f32 %v856, 0.0
      %v889 = vmax.f32 %v857, 0.0
      %v890 = vmax.f32 %v858, 0.0
      %v891 = vmax.f32 %v859, 0.0
      %v892 = vmax.f32 %v860, 0.0
      %v893 = vmax.f32 %v861, 0.0
      %v894 = vmax.f32 %v862, 0.0
      %v895 = vmax.f32 %v863, 0.0
      %v896 = vmax.f32 %v864, 0.0
      %v897 = vmax.f32 %v865, 0.0
      %v898 = vmax.f32 %v866, 0.0
      %v899 = vmax.f32 %v867, 0.0
      %v900 = vmax.f32 %v868, 0.0
      %v901 = vmax.f32 %v869, 0.0
      %v902 = vmax.f32 %v870, 0.0
      %v903 = vmax.f32 %v871, 0.0
      %v904 = vmax.f32 %v872, 0.0
      %v905 = vmax.f32 %v873, 0.0
      %v906 = vmax.f32 %v874, 0.0
      %v907 = vmax.f32 %v875, 0.0
      %v908 = vmax.f32 %v876, 0.0
      %v909 = vmax.f32 %v877, 0.0
      %v910 = vmax.f32 %v878, 0.0
      %911 = vst [vmem:[%s286] sm:$0xff] %v879
      %912 = vst [vmem:[%s286 + $0x8] sm:$0xff] %v880
      %913 = vst [vmem:[%s286 + $0x10] sm:$0xff] %v881
      %914 = vst [vmem:[%s286 + $0x18] sm:$0xff] %v882
      %915 = vst [vmem:[%s286 + $0x20] sm:$0xff] %v883
      %916 = vst [vmem:[%s286 + $0x28] sm:$0xff] %v884
      %917 = vst [vmem:[%s286 + $0x30] sm:$0xff] %v885
      %918 = vst [vmem:[%s286 + $0x38] sm:$0xff] %v886
      %919 = vst [vmem:[%s286 + $0x40] sm:$0xff] %v887
      %920 = vst [vmem:[%s286 + $0x48] sm:$0xff] %v888
      %921 = vst [vmem:[%s286 + $0x50] sm:$0xff] %v889
      %922 = vst [vmem:[%s286 + $0x58] sm:$0xff] %v890
      %923 = vst [vmem:[%s286 + $0x60] sm:$0xff] %v891
      %924 = vst [vmem:[%s286 + $0x68] sm:$0xff] %v892
      %925 = vst [vmem:[%s286 + $0x70] sm:$0xff] %v893
      %926 = vst [vmem:[%s286 + $0x78] sm:$0xff] %v894
      %927 = vst [vmem:[%s286 + $0x80] sm:$0xff] %v895
      %928 = vst [vmem:[%s286 + $0x88] sm:$0xff] %v896
      %929 = vst [vmem:[%s286 + $0x90] sm:$0xff] %v897
      %930 = vst [vmem:[%s286 + $0x98] sm:$0xff] %v898
      %931 = vst [vmem:[%s286 + $0xa0] sm:$0xff] %v899
      %932 = vst [vmem:[%s286 + $0xa8] sm:$0xff] %v900
      %933 = vst [vmem:[%s286 + $0xb0] sm:$0xff] %v901
      %934 = vst [vmem:[%s286 + $0xb8] sm:$0xff] %v902
      %935 = vst [vmem:[%s286 + $0xc0] sm:$0xff] %v903
      %936 = vst [vmem:[%s286 + $0xc8] sm:$0xff] %v904
      %937 = vst [vmem:[%s286 + $0xd0] sm:$0xff] %v905
      %938 = vst [vmem:[%s286 + $0xd8] sm:$0xff] %v906
      %939 = vst [vmem:[%s286 + $0xe0] sm:$0xff] %v907
      %940 = vst [vmem:[%s286 + $0xe8] sm:$0xff] %v908
      %941 = vst [vmem:[%s286 + $0xf0] sm:$0xff] %v909
      %942 = vst [vmem:[%s286 + $0xf8] sm:$0xff] %v910
      %s943 = smul.u32 32, %s19
      %p944 = scmp.lt.s32.totalorder %s943, 63
      %s945 = scalar_select %p944, %s943, 63
      %p946 = scmp.lt.s32.totalorder %s20, 0
      %s947 = scalar_select %p946, %s20, 0
      %s948 = sadd.s32 %s947, %s945
      %s949 = smul.addr %s948, 8
      %s950 = scalar_lea.vmem %s4, %s949
      // Predicated region
      $region37: #{enet_forward.173} parent=35 // pred_check
        %p951 = pneg %p153
      $region38: #{enet_forward.173} parent=35 // pred_check_branch
        %953 = sbr.rel (%p951) target = $region40
      $region39: #{enet_forward.173} parent=35 // pred_region
        %s954 = smul.u32 32, %s19
      $region40: #{enet_forward.173} parent=35 // pred_fallthru
        _
    $region36: #{enet_forward.173} parent=5 // pred_fallthru
      _
    %p955 = scmp.le.s32.totalorder 2, %s10
    // Predicated region
    $region41: #{enet_forward.173} parent=5 // pred_check
      %p956 = pneg %p955
    $region42: #{enet_forward.173} parent=5 // pred_check_branch
      %958 = sbr.rel (%p956) target = $region44
    $region43: #{enet_forward.173} parent=5 // pred_region
      %s959 = ssub.s32 %s10, 2
      // Predicated region
      $region45: #{enet_forward.173} parent=43 // pred_check
        %p960 = pneg %p159
      $region46: #{enet_forward.173} parent=43 // pred_check_branch
        %962 = sbr.rel (%p960) target = $region48
      $region47: #{enet_forward.173} parent=43 // pred_region
        %s963 = smul.u32 32, %s21
        %p964 = scmp.lt.s32.totalorder %s963, 63
        %s965 = scalar_select %p964, %s963, 63
        %p966 = scmp.lt.s32.totalorder %s22, 0
        %s967 = scalar_select %p966, %s22, 0
        %s968 = sadd.s32 %s967, %s965
        %s969 = smul.addr %s968, 8
        %s970 = scalar_lea.vmem %s4, %s969
      $region48: #{enet_forward.173} parent=43 // pred_fallthru
        _
    $region44: #{enet_forward.173} parent=5 // pred_fallthru
      _
  $region6: #{enet_forward.173} parent=0 // loop_footer
    %s14 = sadd.s32 1, %s10
  $region7: #{enet_forward.173} parent=0 // loop_footer_branch
    %9 = sbr.rel target = $region3
  $region8: #{enet_forward.173} parent=0 // loop_exit
    _

</llo_original>
